<compile_context>
chip_gen: v5e
topology: v5e:2x2
jax: 0.10.0
libtpu: 0.0.40
codegen_flags: <defaults>
</compile_context>

<pallas_src>
import math
import functools

import jax
import jax.numpy as jnp
from jax.experimental import pallas as pl
from jax.experimental.pallas import tpu as pltpu

_SQRT_HALF = 1.0 / math.sqrt(2.0)


def _gelu_exact(x):
    # torch.nn.GELU() default: 0.5 * x * (1 + erf(x / sqrt(2)))
    return 0.5 * x * (1.0 + jax.lax.erf(x * _SQRT_HALF))


# --------------------------- weights-resident path ---------------------------

def _mlp_resident_kernel(x_ref, wfc_ref, bfc_ref, wproj_ref, bproj_ref, o_ref):
    # x_ref:     (tm, C)   native dtype (e.g. bf16)
    # wfc_ref:   (C, H)    full W_fc, resident      bfc_ref:   (1, H)
    # wproj_ref: (H, C)    full W_proj, resident    bproj_ref: (1, C)
    # o_ref:     (tm, C)
    h = jnp.dot(x_ref[...], wfc_ref[...], preferred_element_type=jnp.float32)
    h = _gelu_exact(h + bfc_ref[...].astype(jnp.float32))
    y = jnp.dot(h.astype(wproj_ref.dtype), wproj_ref[...],
                preferred_element_type=jnp.float32)
    o_ref[...] = (y + bproj_ref[...].astype(jnp.float32)).astype(o_ref.dtype)
    # TODO(synk): training-mode dropout (pltpu.prng_seed + prng_random_bits
    # mask) not applied; identity in eval mode / dropout p == 0.


# ------------------------ streaming (hidden-reduction) path ------------------

def _mlp_streaming_kernel(x_ref, wfc_ref, bfc_ref, wproj_ref, bproj_ref,
                          o_ref, acc_ref):
    # wfc_ref: (C, th) hidden slice; bfc_ref: (1, H) resident; wproj_ref: (th, C)
    # acc_ref: (tm, C) f32 accumulator for the second matmul.
    k = pl.program_id(1)
    th = wfc_ref.shape[1]

    @pl.when(k == 0)
    def _():
        # Seed accumulator with b_proj -> no broadcast/add in the epilogue.
        acc_ref[...] = jnp.broadcast_to(
            bproj_ref[...].astype(jnp.float32), acc_ref.shape)

    h = jnp.dot(x_ref[...], wfc_ref[...], preferred_element_type=jnp.float32)
    start = pl.multiple_of(k * th, th)
    h = _gelu_exact(h + bfc_ref[:, pl.ds(start, th)].astype(jnp.float32))
    acc_ref[...] += jnp.dot(h.astype(wproj_ref.dtype), wproj_ref[...],
                            preferred_element_type=jnp.float32)

    @pl.when(k == pl.num_programs(1) - 1)
    def _():
        o_ref[...] = acc_ref[...].astype(o_ref.dtype)


# --------------------------------- wrapper -----------------------------------

def _vmem_capacity_bytes():
    try:
        return int(pltpu.get_tpu_info().vmem_capacity_bytes)
    except Exception:
        return 128 * 1024 * 1024  # conservative default (v5e/v6e physical)


def _choose_row_tile(M):
    if M < 128:
        return max(8, ((M + 7) // 8) * 8)          # tiny M: one padded tile
    # Prefer large MXU-aligned tiles, but keep an even tile count when possible
    # so the 'parallel' M axis balances across v7x's two TensorCores.
    for cand in (512, 256, 128):
        if M % cand == 0 and (M // cand) % 2 == 0:
            return cand
    for cand in (512, 256, 128):
        if M % cand == 0:
            return cand
    return 128                                      # ragged edge handled by padding


def _choose_hidden_tile(H, C, tm, itemsize, budget):
    for cand in (512, 256, 128):                    # never below 256 unless forced
        if H % cand != 0:
            continue
        est = (2 * (tm * C + C * cand + cand * C + tm * C) * itemsize
               + (H + C) * itemsize
               + tm * cand * (4 + itemsize) + tm * C * 4)
        if est <= budget:
            return cand
    return 128 if H % 128 == 0 else H


@functools.partial(jax.jit, static_argnames=("tm", "th"))
def mlp_forward(x, w_fc_t, b_fc, w_proj_t, b_proj, *, tm=None, th=None):
    """x: (B, T, n_embd). Weights pre-transposed to (in, out) layout."""
    B, T, C = x.shape
    H = w_fc_t.shape[1]                    # 4 * n_embd
    M = B * T
    itemsize = jnp.dtype(x.dtype).itemsize

    if tm is None:
        tm = _choose_row_tile(M)
    m_tiles = pl.cdiv(M, tm)
    M_pad = m_tiles * tm

    x2d = x.reshape(M, C)
    if M_pad != M:
        x2d = jnp.pad(x2d, ((0, M_pad - M), (0, 0)))
    b_fc2 = b_fc.reshape(1, H)
    b_proj2 = b_proj.reshape(1, C)

    budget = int(0.70 * _vmem_capacity_bytes())     # leave compiler headroom

    # Resident-path VMEM estimate (weights counted double-buffered to be safe,
    # plus double-buffered x/out tiles and the GELU/proj temporaries).
    resident_bytes = (
        2 * (C * H + H * C + H + C) * itemsize       # W_fc, W_proj, biases
        + 2 * 2 * tm * C * itemsize                  # x + out tiles
        + tm * H * (4 + itemsize)                    # f32 GELU interm. + cast copy
        + tm * C * 4)                                # f32 proj result
    use_resident = resident_bytes <= budget

    if use_resident:
        grid = (m_tiles,)
        in_specs = [
            pl.BlockSpec((tm, C), lambda i: (i, 0)),     # x row tile
            pl.BlockSpec((C, H), lambda i: (0, 0)),      # W_fc (resident)
            pl.BlockSpec((1, H), lambda i: (0, 0)),      # b_fc (resident)
            pl.BlockSpec((H, C), lambda i: (0, 0)),      # W_proj (resident)
            pl.BlockSpec((1, C), lambda i: (0, 0)),      # b_proj (resident)
        ]
        out_specs = pl.BlockSpec((tm, C), lambda i: (i, 0))
        scratch_shapes = []
        kernel = _mlp_resident_kernel
        dim_sems = ("parallel",)
        vmem_needed = resident_bytes
        bytes_accessed = (2 * M_pad * C + 2 * C * H + H + C) * itemsize
    else:
        if th is None:
            th = _choose_hidden_tile(H, C, tm, itemsize, budget)
        grid = (m_tiles, pl.cdiv(H, th))
        in_specs = [
            pl.BlockSpec((tm, C), lambda i, k: (i, 0)),   # x row tile (const over k)
            pl.BlockSpec((C, th), lambda i, k: (0, k)),   # W_fc hidden slice
            pl.BlockSpec((1, H), lambda i, k: (0, 0)),    # b_fc (resident, pl.ds in-kernel)
            pl.BlockSpec((th, C), lambda i, k: (k, 0)),   # W_proj hidden slice
            pl.BlockSpec((1, C), lambda i, k: (0, 0)),    # b_proj (resident)
        ]
        out_specs = pl.BlockSpec((tm, C), lambda i, k: (i, 0))
        scratch_shapes = [pltpu.VMEM((tm, C), jnp.float32)]
        kernel = _mlp_streaming_kernel
        dim_sems = ("parallel", "arbitrary")
        vmem_needed = (
            2 * (tm * C + C * th + th * C + tm * C) * itemsize
            + (H + C) * itemsize
            + tm * th * (4 + itemsize) + tm * C * 4)
        # Weights are re-streamed once per row tile.
        bytes_accessed = (2 * M_pad * C + m_tiles * 2 * C * H + H + C) * itemsize

    cp_kwargs = dict(dimension_semantics=dim_sems)
    if vmem_needed > 12 * 1024 * 1024:
        cp_kwargs["vmem_limit_bytes"] = int(
            min(max(2 * vmem_needed, 32 * 1024 * 1024), budget))

    cost = pl.CostEstimate(
        flops=4 * M_pad * C * H,            # two (M, C, H) matmuls
        transcendentals=M_pad * H,          # erf per activation
        bytes_accessed=int(bytes_accessed),
    )

    out2d = pl.pallas_call(
        kernel,
        out_shape=jax.ShapeDtypeStruct((M_pad, C), x.dtype),
        grid_spec=pltpu.PrefetchScalarGridSpec(
            num_scalar_prefetch=0,
            grid=grid,
            in_specs=in_specs,
            out_specs=out_specs,
            scratch_shapes=scratch_shapes,
        ),
        compiler_params=pltpu.CompilerParams(**cp_kwargs),
        cost_estimate=cost,
    )(x2d, w_fc_t, b_fc2, w_proj_t, b_proj2)

    if M_pad != M:
        out2d = out2d[:M]
    return out2d.reshape(B, T, C)


def init_mlp_params(key, n_embd, dtype=jnp.float32):
    """PyTorch-Linear-style init: U(-1/sqrt(fan_in), 1/sqrt(fan_in)); (in, out) layout."""
    hidden = 4 * n_embd
    k1, k2, k3, k4 = jax.random.split(key, 4)
    bound_fc = 1.0 / math.sqrt(n_embd)
    bound_proj = 1.0 / math.sqrt(hidden)
    w_fc_t = jax.random.uniform(k1, (n_embd, hidden), jnp.float32,
                                -bound_fc, bound_fc).astype(dtype)
    b_fc = jax.random.uniform(k2, (hidden,), jnp.float32,
                              -bound_fc, bound_fc).astype(dtype)
    w_proj_t = jax.random.uniform(k3, (hidden, n_embd), jnp.float32,
                                  -bound_proj, bound_proj).astype(dtype)
    b_proj = jax.random.uniform(k4, (n_embd,), jnp.float32,
                                -bound_proj, bound_proj).astype(dtype)
    return w_fc_t, b_fc, w_proj_t, b_proj


if __name__ == "__main__":
    # Small, lane-dense GPT-ish config: n_embd = 128 (hidden = 512), seq = 128.
    B, T, n_embd = 2, 128, 128
    dtype = jnp.bfloat16             # fast MXU dtype; f32 accumulation in-kernel

    key = jax.random.PRNGKey(0)
    kx, kp = jax.random.split(key)
    x = jax.random.normal(kx, (B, T, n_embd), dtype=jnp.float32).astype(dtype)
    w_fc_t, b_fc, w_proj_t, b_proj = init_mlp_params(kp, n_embd, dtype=dtype)

    out = mlp_forward(x, w_fc_t, b_fc, w_proj_t, b_proj)
    out = jax.block_until_ready(out)

    # Reference: same math in plain JAX (bf16 operands, f32 accumulation).
    x2d = x.reshape(-1, n_embd)
    h_ref = (jnp.dot(x2d, w_fc_t, preferred_element_type=jnp.float32)
             + b_fc.astype(jnp.float32))
    h_ref = 0.5 * h_ref * (1.0 + jax.lax.erf(h_ref / math.sqrt(2.0)))
    y_ref = (jnp.dot(h_ref.astype(dtype), w_proj_t,
                     preferred_element_type=jnp.float32)
             + b_proj.astype(jnp.float32)).astype(dtype).reshape(B, T, n_embd)

    assert jnp.allclose(out.astype(jnp.float32), y_ref.astype(jnp.float32),
                        atol=2e-2, rtol=2e-2), "mismatch vs reference"
    print("KERNEL_OK")
</pallas_src>

<mosaic_0001>
module attributes {stable_mosaic.version = 11 : i64} {
  func.func @_mlp_resident_kernel(%arg0: i32, %arg1: memref<128x128xbf16, #tpu.memory_space<vmem>>, %arg2: memref<128x512xbf16, #tpu.memory_space<vmem>>, %arg3: memref<1x512xbf16, #tpu.memory_space<vmem>>, %arg4: memref<512x128xbf16, #tpu.memory_space<vmem>>, %arg5: memref<1x128xbf16, #tpu.memory_space<vmem>>, %arg6: memref<128x128xbf16, #tpu.memory_space<vmem>>) attributes {dimension_semantics = [#tpu.dimension_semantics<parallel>], iteration_bounds = array<i64: 2>, scalar_prefetch = 0 : i64, scratch_operands = 0 : i64, tpu.core_type = #tpu.core_type<tc>, window_params = [{transform_indices = @transform_0, window_bounds = array<i64: 128, 128>}, {pipeline_mode = #tpu.pipeline_mode<synchronous>, transform_indices = @transform_1, window_bounds = array<i64: 128, 512>}, {pipeline_mode = #tpu.pipeline_mode<synchronous>, transform_indices = @transform_2, window_bounds = array<i64: 1, 512>}, {pipeline_mode = #tpu.pipeline_mode<synchronous>, transform_indices = @transform_3, window_bounds = array<i64: 512, 128>}, {pipeline_mode = #tpu.pipeline_mode<synchronous>, transform_indices = @transform_4, window_bounds = array<i64: 1, 128>}, {transform_indices = @transform_5, window_bounds = array<i64: 128, 128>}]} {
    %c0 = arith.constant 0 : index
    %c0_0 = arith.constant 0 : index
    %0 = vector.load %arg1[%c0, %c0_0] : memref<128x128xbf16, #tpu.memory_space<vmem>>, vector<128x128xbf16>
    %c0_1 = arith.constant 0 : index
    %c0_2 = arith.constant 0 : index
    %1 = vector.load %arg2[%c0_1, %c0_2] : memref<128x512xbf16, #tpu.memory_space<vmem>>, vector<128x512xbf16>
    %cst = arith.constant dense<0.000000e+00> : vector<128x512xf32>
    %2 = tpu.matmul %0, %1, %cst {dimension_numbers = #tpu.dot_dimension_numbers<[1], [0], [0], [1], [0, 0, 1, 1], [], []>} : vector<128x128xbf16>, vector<128x512xbf16>, vector<128x512xf32> -> vector<128x512xf32>
    %c0_3 = arith.constant 0 : index
    %c0_4 = arith.constant 0 : index
    %3 = vector.load %arg3[%c0_3, %c0_4] : memref<1x512xbf16, #tpu.memory_space<vmem>>, vector<1x512xbf16>
    %4 = arith.extf %3 : vector<1x512xbf16> to vector<1x512xf32>
    %5 = vector.broadcast %4 : vector<1x512xf32> to vector<128x512xf32>
    %6 = arith.addf %2, %5 : vector<128x512xf32>
    %cst_5 = arith.constant 5.000000e-01 : f32
    %7 = vector.broadcast %cst_5 : f32 to vector<128x512xf32>
    %8 = arith.mulf %7, %6 : vector<128x512xf32>
    %cst_6 = arith.constant 0.707106769 : f32
    %9 = vector.broadcast %cst_6 : f32 to vector<128x512xf32>
    %10 = arith.mulf %6, %9 : vector<128x512xf32>
    %11 = math.erf %10 : vector<128x512xf32>
    %cst_7 = arith.constant 1.000000e+00 : f32
    %12 = vector.broadcast %cst_7 : f32 to vector<128x512xf32>
    %13 = arith.addf %12, %11 : vector<128x512xf32>
    %14 = arith.mulf %8, %13 : vector<128x512xf32>
    %15 = arith.truncf %14 : vector<128x512xf32> to vector<128x512xbf16>
    %c0_8 = arith.constant 0 : index
    %c0_9 = arith.constant 0 : index
    %16 = vector.load %arg4[%c0_8, %c0_9] : memref<512x128xbf16, #tpu.memory_space<vmem>>, vector<512x128xbf16>
    %cst_10 = arith.constant dense<0.000000e+00> : vector<128x128xf32>
    %17 = tpu.matmul %15, %16, %cst_10 {dimension_numbers = #tpu.dot_dimension_numbers<[1], [0], [0], [1], [0, 0, 1, 1], [], []>} : vector<128x512xbf16>, vector<512x128xbf16>, vector<128x128xf32> -> vector<128x128xf32>
    %c0_11 = arith.constant 0 : index
    %c0_12 = arith.constant 0 : index
    %18 = vector.load %arg5[%c0_11, %c0_12] : memref<1x128xbf16, #tpu.memory_space<vmem>>, vector<1x128xbf16>
    %19 = arith.extf %18 : vector<1x128xbf16> to vector<1x128xf32>
    %20 = vector.broadcast %19 : vector<1x128xf32> to vector<128x128xf32>
    %21 = arith.addf %17, %20 : vector<128x128xf32>
    %22 = arith.truncf %21 : vector<128x128xf32> to vector<128x128xbf16>
    %c0_13 = arith.constant 0 : index
    %c0_14 = arith.constant 0 : index
    %23 = vector.load %arg6[%c0_13, %c0_14] : memref<128x128xbf16, #tpu.memory_space<vmem>>, vector<128x128xbf16>
    tpu.vector_store %arg6[%c0_13, %c0_14], %22 {strides = array<i32>} : memref<128x128xbf16, #tpu.memory_space<vmem>>, vector<128x128xbf16>,
    return
  }
  func.func @transform_0(%arg0: i32) -> (i32, i32) {
    %c0_i32 = arith.constant 0 : i32
    %c0_i32_0 = arith.constant 0 : i32
    return %arg0, %c0_i32 : i32, i32
  }
  func.func @transform_1(%arg0: i32) -> (i32, i32) {
    %c0_i32 = arith.constant 0 : i32
    %c0_i32_0 = arith.constant 0 : i32
    %c0_i32_1 = arith.constant 0 : i32
    return %c0_i32, %c0_i32_0 : i32, i32
  }
  func.func @transform_2(%arg0: i32) -> (i32, i32) {
    %c0_i32 = arith.constant 0 : i32
    %c0_i32_0 = arith.constant 0 : i32
    %c0_i32_1 = arith.constant 0 : i32
    return %c0_i32, %c0_i32_0 : i32, i32
  }
  func.func @transform_3(%arg0: i32) -> (i32, i32) {
    %c0_i32 = arith.constant 0 : i32
    %c0_i32_0 = arith.constant 0 : i32
    %c0_i32_1 = arith.constant 0 : i32
    return %c0_i32, %c0_i32_0 : i32, i32
  }
  func.func @transform_4(%arg0: i32) -> (i32, i32) {
    %c0_i32 = arith.constant 0 : i32
    %c0_i32_0 = arith.constant 0 : i32
    %c0_i32_1 = arith.constant 0 : i32
    return %c0_i32, %c0_i32_0 : i32, i32
  }
  func.func @transform_5(%arg0: i32) -> (i32, i32) {
    %c0_i32 = arith.constant 0 : i32
    %c0_i32_0 = arith.constant 0 : i32
    return %arg0, %c0_i32 : i32, i32
  }
}

</mosaic_0001>

<llo_original>
// kernel: mlp_forward.1
$region0: #{mlp_forward.1}
  #allocation0 [shape = 'u32[]', space=smem, size = 0x4, offset = 0x4, fixed_abs, tag = 'smem constant byte address 0x4 - core index']
  #allocation1 [shape = 'u32[72,128]{1,0:T(1,128)}', space=vmem, size = 0x9000, scoped, tag = 'internal scratch']
  %s0 = inlined_call_operand.hbm [shape: bf16[256,128], index: 0, kind: input, shape index: {}]
  %s1 = inlined_call_operand.hbm [shape: bf16[128,512], index: 1, kind: input, shape index: {}]
  %s2 = inlined_call_operand.vmem [shape: bf16[1,512], index: 2, kind: input, shape index: {}]
  %s3 = inlined_call_operand.hbm [shape: bf16[512,128], index: 3, kind: input, shape index: {}]
  %s4 = inlined_call_operand.vmem [shape: bf16[1,128], index: 4, kind: input, shape index: {}]
  %s5 = inlined_call_operand.hbm [shape: bf16[256,128], index: 5, kind: output, shape index: {}]
  %s6 = sld [smem:[#allocation0]]
  $region65: #{mlp_forward.1} parent=0
    _
  %s8 = ssub.s32 1, %s6
  %s9 = scalar_select 0, %s8, %s6
  $region1: #{mlp_forward.1} parent=0
    #allocation2 [shape = 'u8[65536]{0}', space=vmem, size = 0x10000, scoped, tag = 'input window, operand 0']
    #allocation3 [shape = 's32[2]{0}', space=sflag, size = 0x8, scoped, tag = 'scoped memory for mlp_forward.1']
    #allocation4 [shape = 's32[2]{0}', space=sflag, size = 0x8, scoped, tag = 'scoped memory for mlp_forward.1']
    #allocation5 [shape = 'u8[131072]{0}', space=vmem, size = 0x20000, scoped, tag = 'input window, operand 1, single buffered']
    #allocation6 [shape = 's32[1]{0}', space=sflag, size = 0x4, scoped, tag = 'scoped memory for mlp_forward.1']
    #allocation7 [shape = 'u8[131072]{0}', space=vmem, size = 0x20000, scoped, tag = 'input window, operand 3, single buffered']
    #allocation8 [shape = 'u8[65536]{0}', space=vmem, size = 0x10000, scoped, tag = 'output window, operand 0']
    %10 = vsyncpa [#allocation3], 0
    %s11 = scalar_lea.sflag [#allocation3], 1
    %12 = vsyncpa %s11, 0
    %13 = vsyncpa [#allocation6], 0
    %14 = vsyncpa [#allocation4], 0
    %s15 = scalar_lea.sflag [#allocation4], 1
    %16 = vsyncpa %s15, 0
    loop: start=0, step=1, limit=4
    $region2: #{mlp_forward.1} parent=1 // loop_pre_header
      _
    $region3: #{mlp_forward.1} parent=1 // loop_header
      %s18 = sphi 0, %s22
      %p19 = scmp.ge.s32.totalorder %s18, 4
      %s28 = sphi 0, %s30
      %s31 = sphi 0, %s28
      %s32 = sphi 0, %s31
      %s48 = sphi 0, %s32
      %s52 = sphi 0, %s52
      %s54 = sphi 0, %s52
      %s55 = sphi 0, %s54
      %s69 = sphi 0, %s55
      %s73 = sphi 0, %s73
      %s75 = sphi 0, %s73
      %s76 = sphi 0, %s75
      %s90 = sphi 0, %s76
      %s94 = sphi 0, %s94
      %s96 = sphi 0, %s94
      %s97 = sphi 0, %s96
      %s111 = sphi 0, %s97
      %s115 = sphi 0, %s115
      %s117 = sphi 0, %s115
      %s118 = sphi 0, %s117
      %s132 = sphi 0, %s118
      %s138 = sphi 0, %s140
      %s141 = sphi 0, %s138
      %s142 = sphi 0, %s141
      %s158 = sphi 0, %s142
    $region4: #{mlp_forward.1} parent=1 // loop_header_branch
      %21 = sbr.rel (%p19) target = $region8
    $region5: #{mlp_forward.1} parent=1 // loop_body
      %s23 = ssub.s32 %s18, 1
      %s24 = ssub.s32 %s18, 2
      %s25 = sadd.s32 %s18, 1
      %s26 = ssub.s32 %s18, %s25
      %p27 = scmp.eq.s32.totalorder %s26, 0
      %s29 = sadd.s32 %s28, 1
      %s30 = scalar_select %p27, %s28, %s29
      %p33 = pneg %p27
      %p34 = scmp.eq.s32.totalorder %s18, 1
      %p35 = por %p33, %p34
      %p36 = scmp.ne.s32.totalorder %s28, %s31
      %p37 = scmp.eq.s32.totalorder %s18, 0
      %p38 = por %p36, %p37
      %p39 = scmp.ne.s32.totalorder %s28, %s31
      %p40 = scmp.eq.s32.totalorder %s23, 1
      %p41 = por %p39, %p40
      %p42 = scmp.ne.s32.totalorder %s31, %s32
      %p43 = scmp.eq.s32.totalorder %s23, 0
      %p44 = por %p42, %p43
      %p45 = scmp.ne.s32.totalorder %s31, %s32
      %p46 = scmp.eq.s32.totalorder %s24, 1
      %p47 = por %p45, %p46
      %p49 = scmp.ne.s32.totalorder %s32, %s48
      %p50 = scmp.eq.s32.totalorder %s24, 0
      %p51 = por %p49, %p50
      %s53 = sadd.s32 %s52, 1
      %p56 = scmp.eq.s32.totalorder %s18, 1
      %p57 = scmp.ne.s32.totalorder %s52, %s54
      %p58 = scmp.eq.s32.totalorder %s18, 0
      %p59 = por %p57, %p58
      %p60 = scmp.ne.s32.totalorder %s52, %s54
      %p61 = scmp.eq.s32.totalorder %s23, 1
      %p62 = por %p60, %p61
      %p63 = scmp.ne.s32.totalorder %s54, %s55
      %p64 = scmp.eq.s32.totalorder %s23, 0
      %p65 = por %p63, %p64
      %p66 = scmp.ne.s32.totalorder %s54, %s55
      %p67 = scmp.eq.s32.totalorder %s24, 1
      %p68 = por %p66, %p67
      %p70 = scmp.ne.s32.totalorder %s55, %s69
      %p71 = scmp.eq.s32.totalorder %s24, 0
      %p72 = por %p70, %p71
      %s74 = sadd.s32 %s73, 1
      %p77 = scmp.eq.s32.totalorder %s18, 1
      %p78 = scmp.ne.s32.totalorder %s73, %s75
      %p79 = scmp.eq.s32.totalorder %s18, 0
      %p80 = por %p78, %p79
      %p81 = scmp.ne.s32.totalorder %s73, %s75
      %p82 = scmp.eq.s32.totalorder %s23, 1
      %p83 = por %p81, %p82
      %p84 = scmp.ne.s32.totalorder %s75, %s76
      %p85 = scmp.eq.s32.totalorder %s23, 0
      %p86 = por %p84, %p85
      %p87 = scmp.ne.s32.totalorder %s75, %s76
      %p88 = scmp.eq.s32.totalorder %s24, 1
      %p89 = por %p87, %p88
      %p91 = scmp.ne.s32.totalorder %s76, %s90
      %p92 = scmp.eq.s32.totalorder %s24, 0
      %p93 = por %p91, %p92
      %s95 = sadd.s32 %s94, 1
      %p98 = scmp.eq.s32.totalorder %s18, 1
      %p99 = scmp.ne.s32.totalorder %s94, %s96
      %p100 = scmp.eq.s32.totalorder %s18, 0
      %p101 = por %p99, %p100
      %p102 = scmp.ne.s32.totalorder %s94, %s96
      %p103 = scmp.eq.s32.totalorder %s23, 1
      %p104 = por %p102, %p103
      %p105 = scmp.ne.s32.totalorder %s96, %s97
      %p106 = scmp.eq.s32.totalorder %s23, 0
      %p107 = por %p105, %p106
      %p108 = scmp.ne.s32.totalorder %s96, %s97
      %p109 = scmp.eq.s32.totalorder %s24, 1
      %p110 = por %p108, %p109
      %p112 = scmp.ne.s32.totalorder %s97, %s111
      %p113 = scmp.eq.s32.totalorder %s24, 0
      %p114 = por %p112, %p113
      %s116 = sadd.s32 %s115, 1
      %p119 = scmp.eq.s32.totalorder %s18, 1
      %p120 = scmp.ne.s32.totalorder %s115, %s117
      %p121 = scmp.eq.s32.totalorder %s18, 0
      %p122 = por %p120, %p121
      %p123 = scmp.ne.s32.totalorder %s115, %s117
      %p124 = scmp.eq.s32.totalorder %s23, 1
      %p125 = por %p123, %p124
      %p126 = scmp.ne.s32.totalorder %s117, %s118
      %p127 = scmp.eq.s32.totalorder %s23, 0
      %p128 = por %p126, %p127
      %p129 = scmp.ne.s32.totalorder %s117, %s118
      %p130 = scmp.eq.s32.totalorder %s24, 1
      %p131 = por %p129, %p130
      %p133 = scmp.ne.s32.totalorder %s118, %s132
      %p134 = scmp.eq.s32.totalorder %s24, 0
      %p135 = por %p133, %p134
      %s136 = ssub.s32 %s18, %s25
      %p137 = scmp.eq.s32.totalorder %s136, 0
      %s139 = sadd.s32 %s138, 1
      %s140 = scalar_select %p137, %s138, %s139
      %p143 = pneg %p137
      %p144 = scmp.eq.s32.totalorder %s18, 1
      %p145 = por %p143, %p144
      %p146 = scmp.ne.s32.totalorder %s138, %s141
      %p147 = scmp.eq.s32.totalorder %s18, 0
      %p148 = por %p146, %p147
      %p149 = scmp.ne.s32.totalorder %s138, %s141
      %p150 = scmp.eq.s32.totalorder %s23, 1
      %p151 = por %p149, %p150
      %p152 = scmp.ne.s32.totalorder %s141, %s142
      %p153 = scmp.eq.s32.totalorder %s23, 0
      %p154 = por %p152, %p153
      %p155 = scmp.ne.s32.totalorder %s141, %s142
      %p156 = scmp.eq.s32.totalorder %s24, 1
      %p157 = por %p155, %p156
      %p159 = scmp.ne.s32.totalorder %s142, %s158
      %p160 = scmp.eq.s32.totalorder %s24, 0
      %p161 = por %p159, %p160
      %p162 = scmp.le.s32.totalorder 1, %s18
      %p163 = scmp.lt.s32.totalorder %s18, 3
      %p164 = pnand %p162, %p163
      %p165 = pneg %p164
      // Predicated region
      $region9: #{mlp_forward.1} parent=5 // pred_check
        _
      $region10: #{mlp_forward.1} parent=5 // pred_check_branch
        %167 = sbr.rel (%p164) target = $region12
      $region11: #{mlp_forward.1} parent=5 // pred_region
        %s168 = ssub.s32 %s18, 1
        // Predicated region
        $region13: #{mlp_forward.1} parent=11 // pred_check
          %p169 = pneg %p65
        $region14: #{mlp_forward.1} parent=11 // pred_check_branch
          %171 = sbr.rel (%p169) target = $region16
        $region15: #{mlp_forward.1} parent=11 // pred_region
          %173 = vsyncadd [#allocation6], 0
          %s174 = sshll.u32 %s1, 4
          %s175 = int_to_ptr.hbm [resolvable:$true] %s174
          %s176 = sshll.u32 [#allocation5], 4
          %s177 = int_to_ptr.vmem [resolvable:$true] %s176
          %182 = dma.hbm_to_vmem [thread:$0]  %s175, 4096, %s177, [#allocation6], 256, 256, 16
        $region16: #{mlp_forward.1} parent=11 // pred_fallthru
          _
        // Predicated region
        $region17: #{mlp_forward.1} parent=11 // pred_check
          %p183 = pneg %p86
        $region18: #{mlp_forward.1} parent=11 // pred_check_branch
          %185 = sbr.rel (%p183) target = $region20
        $region19: #{mlp_forward.1} parent=11 // pred_region
          _
        $region20: #{mlp_forward.1} parent=11 // pred_fallthru
          _
        // Predicated region
        $region21: #{mlp_forward.1} parent=11 // pred_check
          %p186 = pneg %p107
        $region22: #{mlp_forward.1} parent=11 // pred_check_branch
          %188 = sbr.rel (%p186) target = $region24
        $region23: #{mlp_forward.1} parent=11 // pred_region
          %190 = vsyncadd [#allocation6], 0
          %s191 = sshll.u32 %s3, 4
          %s192 = int_to_ptr.hbm [resolvable:$true] %s191
          %s193 = sshll.u32 [#allocation7], 4
          %s194 = int_to_ptr.vmem [resolvable:$true] %s193
          %199 = dma.hbm_to_vmem [thread:$0]  %s192, 4096, %s194, [#allocation6], 64, 64, 4
        $region24: #{mlp_forward.1} parent=11 // pred_fallthru
          _
        // Predicated region
        $region25: #{mlp_forward.1} parent=11 // pred_check
          %p200 = pneg %p128
        $region26: #{mlp_forward.1} parent=11 // pred_check_branch
          %202 = sbr.rel (%p200) target = $region28
        $region27: #{mlp_forward.1} parent=11 // pred_region
          _
        $region28: #{mlp_forward.1} parent=11 // pred_fallthru
          _
      $region12: #{mlp_forward.1} parent=5 // pred_fallthru
        _
      %p203 = scmp.lt.s32.totalorder %s18, 2
      // Predicated region
      $region29: #{mlp_forward.1} parent=5 // pred_check
        %p204 = pneg %p203
      $region30: #{mlp_forward.1} parent=5 // pred_check_branch
        %206 = sbr.rel (%p204) target = $region32
      $region31: #{mlp_forward.1} parent=5 // pred_region
        // Predicated region
        $region33: #{mlp_forward.1} parent=31 // pred_check
          %p207 = pneg %p38
        $region34: #{mlp_forward.1} parent=31 // pred_check_branch
          %209 = sbr.rel (%p207) target = $region36
        $region35: #{mlp_forward.1} parent=31 // pred_region
          %s210 = sand.u32 %s28, 1
          %s211 = scalar_lea.sflag [#allocation3], %s210
          %s212 = sand.u32 %s28, 1
          %s213 = smul.addr %s212, 64
          %s214 = scalar_lea.vmem [#allocation2], %s213
          %s215 = smul.u32 16, %s18
          %217 = vsyncadd %s211, 0
          %s218 = smul.addr %s215, 4
          %s219 = scalar_lea.hbm %s0, %s218
          %s220 = sshll.u32 %s219, 4
          %s221 = int_to_ptr.hbm [resolvable:$true] %s220
          %s222 = sshll.u32 %s214, 4
          %s223 = int_to_ptr.vmem [resolvable:$true] %s222
          %228 = dma.hbm_to_vmem [thread:$0]  %s221, 1024, %s223, %s211, 64, 64, 4
        $region36: #{mlp_forward.1} parent=31 // pred_fallthru
          _
      $region32: #{mlp_forward.1} parent=5 // pred_fallthru
        _
      %p229 = scmp.le.s32.totalorder 1, %s18
      %p230 = scmp.lt.s32.totalorder %s18, 3
      %p231 = pnand %p229, %p230
      %p232 = pneg %p231
      // Predicated region
      $region37: #{mlp_forward.1} parent=5 // pred_check
        _
      $region38: #{mlp_forward.1} parent=5 // pred_check_branch
        %234 = sbr.rel (%p231) target = $region40
      $region39: #{mlp_forward.1} parent=5 // pred_region
        %s235 = ssub.s32 %s18, 1
        %s236 = sand.u32 %s31, 1
        %s237 = scalar_lea.sflag [#allocation3], %s236
        %s238 = sand.u32 %s31, 1
        %s239 = smul.addr %s238, 64
        %s240 = scalar_lea.vmem [#allocation2], %s239
        // Predicated region
        $region41: #{mlp_forward.1} parent=39 // pred_check
          %p241 = pneg %p44
        $region42: #{mlp_forward.1} parent=39 // pred_check_branch
          %243 = sbr.rel (%p241) target = $region44
        $region43: #{mlp_forward.1} parent=39 // pred_region
          %245 = dma.done %s237, 1024
        $region44: #{mlp_forward.1} parent=39 // pred_fallthru
          _
        // Predicated region
        $region45: #{mlp_forward.1} parent=39 // pred_check
          %p246 = pneg %p65
        $region46: #{mlp_forward.1} parent=39 // pred_check_branch
          %248 = sbr.rel (%p246) target = $region48
        $region47: #{mlp_forward.1} parent=39 // pred_region
          %250 = dma.done [#allocation6], 4096
        $region48: #{mlp_forward.1} parent=39 // pred_fallthru
          _
        // Predicated region
        $region49: #{mlp_forward.1} parent=39 // pred_check
          %p251 = pneg %p107
        $region50: #{mlp_forward.1} parent=39 // pred_check_branch
          %253 = sbr.rel (%p251) target = $region52
        $region51: #{mlp_forward.1} parent=39 // pred_region
          %255 = dma.done [#allocation6], 4096
        $region52: #{mlp_forward.1} parent=39 // pred_fallthru
          _
        %s256 = sand.u32 %s31, 1
        %s257 = scalar_lea.sflag [#allocation3], %s256
        %s258 = sand.u32 %s31, 1
        %s259 = smul.addr %s258, 64
        %s260 = scalar_lea.vmem [#allocation2], %s259
        %p261 = pneg %p44
        %p262 = pneg %p41
        %p263 = pneg %p65
        %p264 = pneg %p62
        %p265 = pneg %p86
        %p266 = pneg %p83
        %p267 = pneg %p107
        %p268 = pneg %p104
        %p269 = pneg %p128
        %p270 = pneg %p125
        %p271 = pneg %p154
        %p272 = pneg %p151
        %s273 = sand.u32 %s141, 1
        %s274 = scalar_lea.sflag [#allocation4], %s273
        %s275 = sand.u32 %s141, 1
        %s276 = smul.addr %s275, 64
        %s277 = scalar_lea.vmem [#allocation8], %s276
        %s278 = smul.u32 16, %s23
        %s279 = smul.u32 16, %s23
        %v280 = vld [vmem:[%s240] sm:$0xf]
        %v281 = vld [vmem:[%s240 + $0x4] sm:$0xf]
        %v282 = vld [vmem:[%s240 + $0x8] sm:$0xf]
        %v283 = vld [vmem:[%s240 + $0xc] sm:$0xf]
        %v284 = vld [vmem:[%s240 + $0x10] sm:$0xf]
        %v285 = vld [vmem:[%s240 + $0x14] sm:$0xf]
        %v286 = vld [vmem:[%s240 + $0x18] sm:$0xf]
        %v287 = vld [vmem:[%s240 + $0x1c] sm:$0xf]
        %v288 = vld [vmem:[%s240 + $0x20] sm:$0xf]
        %v289 = vld [vmem:[%s240 + $0x24] sm:$0xf]
        %v290 = vld [vmem:[%s240 + $0x28] sm:$0xf]
        %v291 = vld [vmem:[%s240 + $0x2c] sm:$0xf]
        %v292 = vld [vmem:[%s240 + $0x30] sm:$0xf]
        %v293 = vld [vmem:[%s240 + $0x34] sm:$0xf]
        %v294 = vld [vmem:[%s240 + $0x38] sm:$0xf]
        %v295 = vld [vmem:[%s240 + $0x3c] sm:$0xf]
        %v296 = vld [vmem:[#allocation5] sm:$0xff]
        %v297 = vld [vmem:[#allocation5 + $0x8] sm:$0xff]
        %v298 = vld [vmem:[#allocation5 + $0x10] sm:$0xff]
        %v299 = vld [vmem:[#allocation5 + $0x18] sm:$0xff]
        %v300 = vld [vmem:[#allocation5 + $0x20] sm:$0xff]
        %v301 = vld [vmem:[#allocation5 + $0x28] sm:$0xff]
        %v302 = vld [vmem:[#allocation5 + $0x30] sm:$0xff]
        %v303 = vld [vmem:[#allocation5 + $0x38] sm:$0xff]
        %v304 = vld [vmem:[#allocation5 + $0x40] sm:$0xff]
        %v305 = vld [vmem:[#allocation5 + $0x48] sm:$0xff]
        %v306 = vld [vmem:[#allocation5 + $0x50] sm:$0xff]
        %v307 = vld [vmem:[#allocation5 + $0x58] sm:$0xff]
        %v308 = vld [vmem:[#allocation5 + $0x60] sm:$0xff]
        %v309 = vld [vmem:[#allocation5 + $0x68] sm:$0xff]
        %v310 = vld [vmem:[#allocation5 + $0x70] sm:$0xff]
        %v311 = vld [vmem:[#allocation5 + $0x78] sm:$0xff]
        %v312 = vld [vmem:[#allocation5 + $0x80] sm:$0xff]
        %v313 = vld [vmem:[#allocation5 + $0x88] sm:$0xff]
        %v314 = vld [vmem:[#allocation5 + $0x90] sm:$0xff]
        %v315 = vld [vmem:[#allocation5 + $0x98] sm:$0xff]
        %v316 = vld [vmem:[#allocation5 + $0xa0] sm:$0xff]
        %v317 = vld [vmem:[#allocation5 + $0xa8] sm:$0xff]
        %v318 = vld [vmem:[#allocation5 + $0xb0] sm:$0xff]
        %v319 = vld [vmem:[#allocation5 + $0xb8] sm:$0xff]
        %v320 = vld [vmem:[#allocation5 + $0xc0] sm:$0xff]
        %v321 = vld [vmem:[#allocation5 + $0xc8] sm:$0xff]
        %v322 = vld [vmem:[#allocation5 + $0xd0] sm:$0xff]
        %v323 = vld [vmem:[#allocation5 + $0xd8] sm:$0xff]
        %v324 = vld [vmem:[#allocation5 + $0xe0] sm:$0xff]
        %v325 = vld [vmem:[#allocation5 + $0xe8] sm:$0xff]
        %v326 = vld [vmem:[#allocation5 + $0xf0] sm:$0xff]
        %v327 = vld [vmem:[#allocation5 + $0xf8] sm:$0xff]
        %v328 = vld [vmem:[%s2] sm:$0xf]
        %v329 = vunpack.c.l.bf16 %v328
        %v331 = vperm.slane %v329, 0
        %v332 = vperm.slane %v329, 2
        %v333 = vperm.slane %v329, 4
        %v334 = vperm.slane %v329, 6
        %v339 = vperm.slane %v331, 0
        %v340 = vperm.slane %v332, 0
        %v341 = vperm.slane %v333, 0
        %v342 = vperm.slane %v334, 0
        %v359 = vunpack.c.l.b16 %v280
        %v360 = vunpack.c.l.b16 %v281
        %v361 = vunpack.c.l.b16 %v282
        %v362 = vunpack.c.l.b16 %v283
        %v363 = vunpack.c.l.b16 %v284
        %v364 = vunpack.c.l.b16 %v285
        %v365 = vunpack.c.l.b16 %v286
        %v366 = vunpack.c.l.b16 %v287
        %v367 = vunpack.c.l.b16 %v288
        %v368 = vunpack.c.l.b16 %v289
        %v369 = vunpack.c.l.b16 %v290
        %v370 = vunpack.c.l.b16 %v291
        %v371 = vunpack.c.l.b16 %v292
        %v372 = vunpack.c.l.b16 %v293
        %v373 = vunpack.c.l.b16 %v294
        %v374 = vunpack.c.l.b16 %v295
        %v375 = vpack.c.b16 %v360, %v359
        %v376 = vpack.c.b16 %v362, %v361
        %v377 = vpack.c.b16 %v364, %v363
        %v378 = vpack.c.b16 %v366, %v365
        %v379 = vpack.c.b16 %v368, %v367
        %v380 = vpack.c.b16 %v370, %v369
        %v381 = vpack.c.b16 %v372, %v371
        %v382 = vpack.c.b16 %v374, %v373
        %v423 = vunpack.c.l.b16 %v296
        %v424 = vunpack.c.h.b16 %v296
        %v425 = vunpack.c.l.b16 %v297
        %v426 = vunpack.c.h.b16 %v297
        %v427 = vunpack.c.l.b16 %v298
        %v428 = vunpack.c.h.b16 %v298
        %v429 = vunpack.c.l.b16 %v299
        %v430 = vunpack.c.h.b16 %v299
        %v431 = vunpack.c.l.b16 %v300
        %v432 = vunpack.c.h.b16 %v300
        %v433 = vunpack.c.l.b16 %v301
        %v434 = vunpack.c.h.b16 %v301
        %v435 = vunpack.c.l.b16 %v302
        %v436 = vunpack.c.h.b16 %v302
        %v437 = vunpack.c.l.b16 %v303
        %v438 = vunpack.c.h.b16 %v303
        %v439 = vunpack.c.l.b16 %v304
        %v440 = vunpack.c.h.b16 %v304
        %v441 = vunpack.c.l.b16 %v305
        %v442 = vunpack.c.h.b16 %v305
        %v443 = vunpack.c.l.b16 %v306
        %v444 = vunpack.c.h.b16 %v306
        %v445 = vunpack.c.l.b16 %v307
        %v446 = vunpack.c.h.b16 %v307
        %v447 = vunpack.c.l.b16 %v308
        %v448 = vunpack.c.h.b16 %v308
        %v449 = vunpack.c.l.b16 %v309
        %v450 = vunpack.c.h.b16 %v309
        %v451 = vunpack.c.l.b16 %v310
        %v452 = vunpack.c.h.b16 %v310
        %v453 = vunpack.c.l.b16 %v311
        %v454 = vunpack.c.h.b16 %v311
        %v455 = vunpack.c.l.b16 %v312
        %v456 = vunpack.c.h.b16 %v312
        %v457 = vunpack.c.l.b16 %v313
        %v458 = vunpack.c.h.b16 %v313
        %v459 = vunpack.c.l.b16 %v314
        %v460 = vunpack.c.h.b16 %v314
        %v461 = vunpack.c.l.b16 %v315
        %v462 = vunpack.c.h.b16 %v315
        %v463 = vunpack.c.l.b16 %v316
        %v464 = vunpack.c.h.b16 %v316
        %v465 = vunpack.c.l.b16 %v317
        %v466 = vunpack.c.h.b16 %v317
        %v467 = vunpack.c.l.b16 %v318
        %v468 = vunpack.c.h.b16 %v318
        %v469 = vunpack.c.l.b16 %v319
        %v470 = vunpack.c.h.b16 %v319
        %v471 = vunpack.c.l.b16 %v320
        %v472 = vunpack.c.h.b16 %v320
        %v473 = vunpack.c.l.b16 %v321
        %v474 = vunpack.c.h.b16 %v321
        %v475 = vunpack.c.l.b16 %v322
        %v476 = vunpack.c.h.b16 %v322
        %v477 = vunpack.c.l.b16 %v323
        %v478 = vunpack.c.h.b16 %v323
        %v479 = vunpack.c.l.b16 %v324
        %v480 = vunpack.c.h.b16 %v324
        %v481 = vunpack.c.l.b16 %v325
        %v482 = vunpack.c.h.b16 %v325
        %v483 = vunpack.c.l.b16 %v326
        %v484 = vunpack.c.h.b16 %v326
        %v485 = vunpack.c.l.b16 %v327
        %v486 = vunpack.c.h.b16 %v327
        %v487 = vpack.c.b16 %v427, %v423
        %v488 = vpack.c.b16 %v428, %v424
        %v489 = vpack.c.b16 %v429, %v425
        %v490 = vpack.c.b16 %v430, %v426
        %v491 = vpack.c.b16 %v435, %v431
        %v492 = vpack.c.b16 %v436, %v432
        %v493 = vpack.c.b16 %v437, %v433
        %v494 = vpack.c.b16 %v438, %v434
        %v495 = vpack.c.b16 %v443, %v439
        %v496 = vpack.c.b16 %v444, %v440
        %v497 = vpack.c.b16 %v445, %v441
        %v498 = vpack.c.b16 %v446, %v442
        %v499 = vpack.c.b16 %v451, %v447
        %v500 = vpack.c.b16 %v452, %v448
        %v501 = vpack.c.b16 %v453, %v449
        %v502 = vpack.c.b16 %v454, %v450
        %v503 = vpack.c.b16 %v459, %v455
        %v504 = vpack.c.b16 %v460, %v456
        %v505 = vpack.c.b16 %v461, %v457
        %v506 = vpack.c.b16 %v462, %v458
        %v507 = vpack.c.b16 %v467, %v463
        %v508 = vpack.c.b16 %v468, %v464
        %v509 = vpack.c.b16 %v469, %v465
        %v510 = vpack.c.b16 %v470, %v466
        %v511 = vpack.c.b16 %v475, %v471
        %v512 = vpack.c.b16 %v476, %v472
        %v513 = vpack.c.b16 %v477, %v473
        %v514 = vpack.c.b16 %v478, %v474
        %v515 = vpack.c.b16 %v483, %v479
        %v516 = vpack.c.b16 %v484, %v480
        %v517 = vpack.c.b16 %v485, %v481
        %v518 = vpack.c.b16 %v486, %v482
        %551 = vmatpush.bf16.msra.mxu0 %v515
        %552 = vmatpush.bf16.msra.mxu0 %v511
        %553 = vmatpush.bf16.msra.mxu0 %v507
        %554 = vmatpush.bf16.msra.mxu0 %v503
        %555 = vmatpush.bf16.msra.mxu0 %v499
        %556 = vmatpush.bf16.msra.mxu0 %v495
        %557 = vmatpush.bf16.msra.mxu0 %v491
        %558 = vmatpush.bf16.msra.mxu0 %v487
        %559 = vmatmul.bf16.gmra.mxu0 %v375
        %v560 = vpop.f32.mrf.mxu0
        %v561 = vadd.f32 %v339, %v560
        %v562 = vpop.f32.mrf.mxu0
        %v563 = vadd.f32 %v339, %v562
        %564 = vmatmul.bf16.gmra.mxu0 %v376
        %v565 = vpop.f32.mrf.mxu0
        %v566 = vadd.f32 %v339, %v565
        %v567 = vpop.f32.mrf.mxu0
        %v568 = vadd.f32 %v339, %v567
        %569 = vmatmul.bf16.gmra.mxu0 %v377
        %v570 = vpop.f32.mrf.mxu0
        %v571 = vadd.f32 %v339, %v570
        %v572 = vpop.f32.mrf.mxu0
        %v573 = vadd.f32 %v339, %v572
        %574 = vmatmul.bf16.gmra.mxu0 %v378
        %v575 = vpop.f32.mrf.mxu0
        %v576 = vadd.f32 %v339, %v575
        %v577 = vpop.f32.mrf.mxu0
        %v578 = vadd.f32 %v339, %v577
        %579 = vmatmul.bf16.gmra.mxu0 %v379
        %v580 = vpop.f32.mrf.mxu0
        %v581 = vadd.f32 %v339, %v580
        %v582 = vpop.f32.mrf.mxu0
        %v583 = vadd.f32 %v339, %v582
        %584 = vmatmul.bf16.gmra.mxu0 %v380
        %v585 = vpop.f32.mrf.mxu0
        %v586 = vadd.f32 %v339, %v585
        %v587 = vpop.f32.mrf.mxu0
        %v588 = vadd.f32 %v339, %v587
        %589 = vmatmul.bf16.gmra.mxu0 %v381
        %v590 = vpop.f32.mrf.mxu0
        %v591 = vadd.f32 %v339, %v590
        %v592 = vpop.f32.mrf.mxu0
        %v593 = vadd.f32 %v339, %v592
        %594 = vmatmul.bf16.gmra.mxu0 %v382
        %v595 = vpop.f32.mrf.mxu0
        %v596 = vadd.f32 %v339, %v595
        %v597 = vpop.f32.mrf.mxu0
        %v598 = vadd.f32 %v339, %v597
        %599 = vdwg.mxu0
        %600 = vmatpush.bf16.msra.mxu0 %v516
        %601 = vmatpush.bf16.msra.mxu0 %v512
        %602 = vmatpush.bf16.msra.mxu0 %v508
        %603 = vmatpush.bf16.msra.mxu0 %v504
        %604 = vmatpush.bf16.msra.mxu0 %v500
        %605 = vmatpush.bf16.msra.mxu0 %v496
        %606 = vmatpush.bf16.msra.mxu0 %v492
        %607 = vmatpush.bf16.msra.mxu0 %v488
        %608 = vmatmul.bf16.gmra.mxu0 %v375
        %v609 = vpop.f32.mrf.mxu0
        %v610 = vadd.f32 %v340, %v609
        %v611 = vpop.f32.mrf.mxu0
        %v612 = vadd.f32 %v340, %v611
        %613 = vmatmul.bf16.gmra.mxu0 %v376
        %v614 = vpop.f32.mrf.mxu0
        %v615 = vadd.f32 %v340, %v614
        %v616 = vpop.f32.mrf.mxu0
        %v617 = vadd.f32 %v340, %v616
        %618 = vmatmul.bf16.gmra.mxu0 %v377
        %v619 = vpop.f32.mrf.mxu0
        %v620 = vadd.f32 %v340, %v619
        %v621 = vpop.f32.mrf.mxu0
        %v622 = vadd.f32 %v340, %v621
        %623 = vmatmul.bf16.gmra.mxu0 %v378
        %v624 = vpop.f32.mrf.mxu0
        %v625 = vadd.f32 %v340, %v624
        %v626 = vpop.f32.mrf.mxu0
        %v627 = vadd.f32 %v340, %v626
        %628 = vmatmul.bf16.gmra.mxu0 %v379
        %v629 = vpop.f32.mrf.mxu0
        %v630 = vadd.f32 %v340, %v629
        %v631 = vpop.f32.mrf.mxu0
        %v632 = vadd.f32 %v340, %v631
        %633 = vmatmul.bf16.gmra.mxu0 %v380
        %v634 = vpop.f32.mrf.mxu0
        %v635 = vadd.f32 %v340, %v634
        %v636 = vpop.f32.mrf.mxu0
        %v637 = vadd.f32 %v340, %v636
        %638 = vmatmul.bf16.gmra.mxu0 %v381
        %v639 = vpop.f32.mrf.mxu0
        %v640 = vadd.f32 %v340, %v639
        %v641 = vpop.f32.mrf.mxu0
        %v642 = vadd.f32 %v340, %v641
        %643 = vmatmul.bf16.gmra.mxu0 %v382
        %v644 = vpop.f32.mrf.mxu0
        %v645 = vadd.f32 %v340, %v644
        %v646 = vpop.f32.mrf.mxu0
        %v647 = vadd.f32 %v340, %v646
        %648 = vdwg.mxu0
        %649 = vmatpush.bf16.msra.mxu0 %v517
        %650 = vmatpush.bf16.msra.mxu0 %v513
        %651 = vmatpush.bf16.msra.mxu0 %v509
        %652 = vmatpush.bf16.msra.mxu0 %v505
        %653 = vmatpush.bf16.msra.mxu0 %v501
        %654 = vmatpush.bf16.msra.mxu0 %v497
        %655 = vmatpush.bf16.msra.mxu0 %v493
        %656 = vmatpush.bf16.msra.mxu0 %v489
        %657 = vmatmul.bf16.gmra.mxu0 %v375
        %v658 = vpop.f32.mrf.mxu0
        %v659 = vadd.f32 %v341, %v658
        %v660 = vpop.f32.mrf.mxu0
        %v661 = vadd.f32 %v341, %v660
        %662 = vmatmul.bf16.gmra.mxu0 %v376
        %v663 = vpop.f32.mrf.mxu0
        %v664 = vadd.f32 %v341, %v663
        %v665 = vpop.f32.mrf.mxu0
        %v666 = vadd.f32 %v341, %v665
        %667 = vmatmul.bf16.gmra.mxu0 %v377
        %v668 = vpop.f32.mrf.mxu0
        %v669 = vadd.f32 %v341, %v668
        %v670 = vpop.f32.mrf.mxu0
        %v671 = vadd.f32 %v341, %v670
        %672 = vmatmul.bf16.gmra.mxu0 %v378
        %v673 = vpop.f32.mrf.mxu0
        %v674 = vadd.f32 %v341, %v673
        %v675 = vpop.f32.mrf.mxu0
        %v676 = vadd.f32 %v341, %v675
        %677 = vmatmul.bf16.gmra.mxu0 %v379
        %v678 = vpop.f32.mrf.mxu0
        %v679 = vadd.f32 %v341, %v678
        %v680 = vpop.f32.mrf.mxu0
        %v681 = vadd.f32 %v341, %v680
        %682 = vmatmul.bf16.gmra.mxu0 %v380
        %v683 = vpop.f32.mrf.mxu0
        %v684 = vadd.f32 %v341, %v683
        %v685 = vpop.f32.mrf.mxu0
        %v686 = vadd.f32 %v341, %v685
        %687 = vmatmul.bf16.gmra.mxu0 %v381
        %v688 = vpop.f32.mrf.mxu0
        %v689 = vadd.f32 %v341, %v688
        %v690 = vpop.f32.mrf.mxu0
        %v691 = vadd.f32 %v341, %v690
        %692 = vmatmul.bf16.gmra.mxu0 %v382
        %v693 = vpop.f32.mrf.mxu0
        %v694 = vadd.f32 %v341, %v693
        %v695 = vpop.f32.mrf.mxu0
        %v696 = vadd.f32 %v341, %v695
        %697 = vdwg.mxu0
        %698 = vmatpush.bf16.msra.mxu0 %v518
        %699 = vmatpush.bf16.msra.mxu0 %v514
        %700 = vmatpush.bf16.msra.mxu0 %v510
        %701 = vmatpush.bf16.msra.mxu0 %v506
        %702 = vmatpush.bf16.msra.mxu0 %v502
        %703 = vmatpush.bf16.msra.mxu0 %v498
        %704 = vmatpush.bf16.msra.mxu0 %v494
        %705 = vmatpush.bf16.msra.mxu0 %v490
        %706 = vmatmul.bf16.gmra.mxu0 %v375
        %v707 = vpop.f32.mrf.mxu0
        %v708 = vadd.f32 %v342, %v707
        %v709 = vpop.f32.mrf.mxu0
        %v710 = vadd.f32 %v342, %v709
        %711 = vmatmul.bf16.gmra.mxu0 %v376
        %v712 = vpop.f32.mrf.mxu0
        %v713 = vadd.f32 %v342, %v712
        %v714 = vpop.f32.mrf.mxu0
        %v715 = vadd.f32 %v342, %v714
        %716 = vmatmul.bf16.gmra.mxu0 %v377
        %v717 = vpop.f32.mrf.mxu0
        %v718 = vadd.f32 %v342, %v717
        %v719 = vpop.f32.mrf.mxu0
        %v720 = vadd.f32 %v342, %v719
        %721 = vmatmul.bf16.gmra.mxu0 %v378
        %v722 = vpop.f32.mrf.mxu0
        %v723 = vadd.f32 %v342, %v722
        %v724 = vpop.f32.mrf.mxu0
        %v725 = vadd.f32 %v342, %v724
        %726 = vmatmul.bf16.gmra.mxu0 %v379
        %v727 = vpop.f32.mrf.mxu0
        %v728 = vadd.f32 %v342, %v727
        %v729 = vpop.f32.mrf.mxu0
        %v730 = vadd.f32 %v342, %v729
        %731 = vmatmul.bf16.gmra.mxu0 %v380
        %v732 = vpop.f32.mrf.mxu0
        %v733 = vadd.f32 %v342, %v732
        %v734 = vpop.f32.mrf.mxu0
        %v735 = vadd.f32 %v342, %v734
        %736 = vmatmul.bf16.gmra.mxu0 %v381
        %v737 = vpop.f32.mrf.mxu0
        %v738 = vadd.f32 %v342, %v737
        %v739 = vpop.f32.mrf.mxu0
        %v740 = vadd.f32 %v342, %v739
        %741 = vmatmul.bf16.gmra.mxu0 %v382
        %v742 = vpop.f32.mrf.mxu0
        %v743 = vadd.f32 %v342, %v742
        %v744 = vpop.f32.mrf.mxu0
        %v745 = vadd.f32 %v342, %v744
        %746 = vdwg.mxu0
        %v747 = vmul.f32 %v561, 0.5
        %v748 = vmul.f32 %v610, 0.5
        %v749 = vmul.f32 %v659, 0.5
        %v750 = vmul.f32 %v708, 0.5
        %v751 = vmul.f32 %v563, 0.5
        %v752 = vmul.f32 %v612, 0.5
        %v753 = vmul.f32 %v661, 0.5
        %v754 = vmul.f32 %v710, 0.5
        %v755 = vmul.f32 %v566, 0.5
        %v756 = vmul.f32 %v615, 0.5
        %v757 = vmul.f32 %v664, 0.5
        %v758 = vmul.f32 %v713, 0.5
        %v759 = vmul.f32 %v568, 0.5
        %v760 = vmul.f32 %v617, 0.5
        %v761 = vmul.f32 %v666, 0.5
        %v762 = vmul.f32 %v715, 0.5
        %v763 = vmul.f32 %v571, 0.5
        %v764 = vmul.f32 %v620, 0.5
        %v765 = vmul.f32 %v669, 0.5
        %v766 = vmul.f32 %v718, 0.5
        %v767 = vmul.f32 %v573, 0.5
        %v768 = vmul.f32 %v622, 0.5
        %v769 = vmul.f32 %v671, 0.5
        %v770 = vmul.f32 %v720, 0.5
        %v771 = vmul.f32 %v576, 0.5
        %v772 = vmul.f32 %v625, 0.5
        %v773 = vmul.f32 %v674, 0.5
        %v774 = vmul.f32 %v723, 0.5
        %v775 = vmul.f32 %v578, 0.5
        %v776 = vmul.f32 %v627, 0.5
        %v777 = vmul.f32 %v676, 0.5
        %v778 = vmul.f32 %v725, 0.5
        %v779 = vmul.f32 %v581, 0.5
        %v780 = vmul.f32 %v630, 0.5
        %v781 = vmul.f32 %v679, 0.5
        %v782 = vmul.f32 %v728, 0.5
        %v783 = vmul.f32 %v583, 0.5
        %v784 = vmul.f32 %v632, 0.5
        %v785 = vmul.f32 %v681, 0.5
        %v786 = vmul.f32 %v730, 0.5
        %v787 = vmul.f32 %v586, 0.5
        %v788 = vmul.f32 %v635, 0.5
        %v789 = vmul.f32 %v684, 0.5
        %v790 = vmul.f32 %v733, 0.5
        %v791 = vmul.f32 %v588, 0.5
        %v792 = vmul.f32 %v637, 0.5
        %v793 = vmul.f32 %v686, 0.5
        %v794 = vmul.f32 %v735, 0.5
        %v795 = vmul.f32 %v591, 0.5
        %v796 = vmul.f32 %v640, 0.5
        %v797 = vmul.f32 %v689, 0.5
        %v798 = vmul.f32 %v738, 0.5
        %v799 = vmul.f32 %v593, 0.5
        %v800 = vmul.f32 %v642, 0.5
        %v801 = vmul.f32 %v691, 0.5
        %v802 = vmul.f32 %v740, 0.5
        %v803 = vmul.f32 %v596, 0.5
        %v804 = vmul.f32 %v645, 0.5
        %v805 = vmul.f32 %v694, 0.5
        %v806 = vmul.f32 %v743, 0.5
        %v807 = vmul.f32 %v598, 0.5
        %v808 = vmul.f32 %v647, 0.5
        %v809 = vmul.f32 %v696, 0.5
        %v810 = vmul.f32 %v745, 0.5
        %v811 = vmul.f32 %v561, 0.70710677
        %v812 = vmul.f32 %v610, 0.70710677
        %v813 = vmul.f32 %v659, 0.70710677
        %v814 = vmul.f32 %v708, 0.70710677
        %v815 = vmul.f32 %v563, 0.70710677
        %v816 = vmul.f32 %v612, 0.70710677
        %v817 = vmul.f32 %v661, 0.70710677
        %v818 = vmul.f32 %v710, 0.70710677
        %v819 = vmul.f32 %v566, 0.70710677
        %v820 = vmul.f32 %v615, 0.70710677
        %v821 = vmul.f32 %v664, 0.70710677
        %v822 = vmul.f32 %v713, 0.70710677
        %v823 = vmul.f32 %v568, 0.70710677
        %v824 = vmul.f32 %v617, 0.70710677
        %v825 = vmul.f32 %v666, 0.70710677
        %v826 = vmul.f32 %v715, 0.70710677
        %v827 = vmul.f32 %v571, 0.70710677
        %v828 = vmul.f32 %v620, 0.70710677
        %v829 = vmul.f32 %v669, 0.70710677
        %v830 = vmul.f32 %v718, 0.70710677
        %v831 = vmul.f32 %v573, 0.70710677
        %v832 = vmul.f32 %v622, 0.70710677
        %v833 = vmul.f32 %v671, 0.70710677
        %v834 = vmul.f32 %v720, 0.70710677
        %v835 = vmul.f32 %v576, 0.70710677
        %v836 = vmul.f32 %v625, 0.70710677
        %v837 = vmul.f32 %v674, 0.70710677
        %v838 = vmul.f32 %v723, 0.70710677
        %v839 = vmul.f32 %v578, 0.70710677
        %v840 = vmul.f32 %v627, 0.70710677
        %v841 = vmul.f32 %v676, 0.70710677
        %v842 = vmul.f32 %v725, 0.70710677
        %v843 = vmul.f32 %v581, 0.70710677
        %v844 = vmul.f32 %v630, 0.70710677
        %v845 = vmul.f32 %v679, 0.70710677
        %v846 = vmul.f32 %v728, 0.70710677
        %v847 = vmul.f32 %v583, 0.70710677
        %v848 = vmul.f32 %v632, 0.70710677
        %v849 = vmul.f32 %v681, 0.70710677
        %v850 = vmul.f32 %v730, 0.70710677
        %v851 = vmul.f32 %v586, 0.70710677
        %v852 = vmul.f32 %v635, 0.70710677
        %v853 = vmul.f32 %v684, 0.70710677
        %v854 = vmul.f32 %v733, 0.70710677
        %v855 = vmul.f32 %v588, 0.70710677
        %v856 = vmul.f32 %v637, 0.70710677
        %v857 = vmul.f32 %v686, 0.70710677
        %v858 = vmul.f32 %v735, 0.70710677
        %v859 = vmul.f32 %v591, 0.70710677
        %v860 = vmul.f32 %v640, 0.70710677
        %v861 = vmul.f32 %v689, 0.70710677
        %v862 = vmul.f32 %v738, 0.70710677
        %v863 = vmul.f32 %v593, 0.70710677
        %v864 = vmul.f32 %v642, 0.70710677
        %v865 = vmul.f32 %v691, 0.70710677
        %v866 = vmul.f32 %v740, 0.70710677
        %v867 = vmul.f32 %v596, 0.70710677
        %v868 = vmul.f32 %v645, 0.70710677
        %v869 = vmul.f32 %v694, 0.70710677
        %v870 = vmul.f32 %v743, 0.70710677
        %v871 = vmul.f32 %v598, 0.70710677
        %v872 = vmul.f32 %v647, 0.70710677
        %v873 = vmul.f32 %v696, 0.70710677
        %v874 = vmul.f32 %v745, 0.70710677
        %v875 = vmul.f32 %v811, %v811
        %v876 = vmin.f32 16.0, %v875
        %v877 = vmul.f32 %v876, 2.1237322e-06
        %v878 = vadd.f32 %v877, 0.00028619796
        %v879 = vmul.f32 %v876, %v878
        %v880 = vadd.f32 %v879, 0.0036580483
        %v881 = vmul.f32 %v876, %v880
        %v882 = vadd.f32 %v881, 0.05243302
        %v883 = vmul.f32 %v876, %v882
        %v884 = vadd.f32 %v883, 0.18741608
        %v885 = vmul.f32 %v876, %v884
        %v886 = vadd.f32 %v885, 1.1283791
        %v887 = vmul.f32 %v811, %v886
        %v888 = vmul.f32 %v876, 3.8918573e-05
        %v889 = vadd.f32 %v888, 0.001143296
        %v890 = vmul.f32 %v876, %v889
        %v891 = vadd.f32 %v890, 0.014752088
        %v892 = vmul.f32 %v876, %v891
        %v893 = vadd.f32 %v892, 0.112945676
        %v894 = vmul.f32 %v876, %v893
        %v895 = vadd.f32 %v894, 0.4994258
        %v896 = vmul.f32 %v876, %v895
        %v897 = vadd.f32 %v896, 1.0
        %v898 = vrcp.pop %v897
        %v899 = vmul.f32 %v897, %v898
        %v900 = vsub.f32 1.0, %v899
        %v901 = vmul.f32 %v898, %v900
        %v902 = vadd.f32 %v898, %v901
        %vm903 = vweird.f32 %v897
        %vm904 = vweird.f32 %v898
        %vm905 = vmor %vm903, %vm904
        %v906 = vsel %vm905, %v898, %v902
        %v907 = vand.u32 2147483647, %v897
        %vm908 = vcmp.eq.f32.partialorder %v907, 8.507059e+37
        %v909 = vand.u32 %v897, 2147483648
        %v910 = vor.u32 1.1754944e-38, %v909
        %v911 = vsel %vm908, %v910, %v906
        %v912 = vmul.f32 %v887, %v911
        %v913 = vmin.f32 %v912, 1.0
        %v914 = vmax.f32 %v913, -1.0
        %v915 = vmul.f32 %v812, %v812
        %v916 = vmin.f32 16.0, %v915
        %v917 = vmul.f32 %v916, 2.1237322e-06
        %v918 = vadd.f32 %v917, 0.00028619796
        %v919 = vmul.f32 %v916, %v918
        %v920 = vadd.f32 %v919, 0.0036580483
        %v921 = vmul.f32 %v916, %v920
        %v922 = vadd.f32 %v921, 0.05243302
        %v923 = vmul.f32 %v916, %v922
        %v924 = vadd.f32 %v923, 0.18741608
        %v925 = vmul.f32 %v916, %v924
        %v926 = vadd.f32 %v925, 1.1283791
        %v927 = vmul.f32 %v812, %v926
        %v928 = vmul.f32 %v916, 3.8918573e-05
        %v929 = vadd.f32 %v928, 0.001143296
        %v930 = vmul.f32 %v916, %v929
        %v931 = vadd.f32 %v930, 0.014752088
        %v932 = vmul.f32 %v916, %v931
        %v933 = vadd.f32 %v932, 0.112945676
        %v934 = vmul.f32 %v916, %v933
        %v935 = vadd.f32 %v934, 0.4994258
        %v936 = vmul.f32 %v916, %v935
        %v937 = vadd.f32 %v936, 1.0
        %v938 = vrcp.pop %v937
        %v939 = vmul.f32 %v937, %v938
        %v940 = vsub.f32 1.0, %v939
        %v941 = vmul.f32 %v938, %v940
        %v942 = vadd.f32 %v938, %v941
        %vm943 = vweird.f32 %v937
        %vm944 = vweird.f32 %v938
        %vm945 = vmor %vm943, %vm944
        %v946 = vsel %vm945, %v938, %v942
        %v947 = vand.u32 2147483647, %v937
        %vm948 = vcmp.eq.f32.partialorder %v947, 8.507059e+37
        %v949 = vand.u32 %v937, 2147483648
        %v950 = vor.u32 1.1754944e-38, %v949
        %v951 = vsel %vm948, %v950, %v946
        %v952 = vmul.f32 %v927, %v951
        %v953 = vmin.f32 %v952, 1.0
        %v954 = vmax.f32 %v953, -1.0
        %v955 = vmul.f32 %v813, %v813
        %v956 = vmin.f32 16.0, %v955
        %v957 = vmul.f32 %v956, 2.1237322e-06
        %v958 = vadd.f32 %v957, 0.00028619796
        %v959 = vmul.f32 %v956, %v958
        %v960 = vadd.f32 %v959, 0.0036580483
        %v961 = vmul.f32 %v956, %v960
        %v962 = vadd.f32 %v961, 0.05243302
        %v963 = vmul.f32 %v956, %v962
        %v964 = vadd.f32 %v963, 0.18741608
        %v965 = vmul.f32 %v956, %v964
        %v966 = vadd.f32 %v965, 1.1283791
        %v967 = vmul.f32 %v813, %v966
        %v968 = vmul.f32 %v956, 3.8918573e-05
        %v969 = vadd.f32 %v968, 0.001143296
        %v970 = vmul.f32 %v956, %v969
        %v971 = vadd.f32 %v970, 0.014752088
        %v972 = vmul.f32 %v956, %v971
        %v973 = vadd.f32 %v972, 0.112945676
        %v974 = vmul.f32 %v956, %v973
        %v975 = vadd.f32 %v974, 0.4994258
        %v976 = vmul.f32 %v956, %v975
        %v977 = vadd.f32 %v976, 1.0
        %v978 = vrcp.pop %v977
        %v979 = vmul.f32 %v977, %v978
        %v980 = vsub.f32 1.0, %v979
        %v981 = vmul.f32 %v978, %v980
        %v982 = vadd.f32 %v978, %v981
        %vm983 = vweird.f32 %v977
        %vm984 = vweird.f32 %v978
        %vm985 = vmor %vm983, %vm984
        %v986 = vsel %vm985, %v978, %v982
        %v987 = vand.u32 2147483647, %v977
        %vm988 = vcmp.eq.f32.partialorder %v987, 8.507059e+37
        %v989 = vand.u32 %v977, 2147483648
        %v990 = vor.u32 1.1754944e-38, %v989
        %v991 = vsel %vm988, %v990, %v986
        %v992 = vmul.f32 %v967, %v991
        %v993 = vmin.f32 %v992, 1.0
        %v994 = vmax.f32 %v993, -1.0
        %v995 = vmul.f32 %v814, %v814
        %v996 = vmin.f32 16.0, %v995
        %v997 = vmul.f32 %v996, 2.1237322e-06
        %v998 = vadd.f32 %v997, 0.00028619796
        %v999 = vmul.f32 %v996, %v998
        %v1000 = vadd.f32 %v999, 0.0036580483
        %v1001 = vmul.f32 %v996, %v1000
        %v1002 = vadd.f32 %v1001, 0.05243302
        %v1003 = vmul.f32 %v996, %v1002
        %v1004 = vadd.f32 %v1003, 0.18741608
        %v1005 = vmul.f32 %v996, %v1004
        %v1006 = vadd.f32 %v1005, 1.1283791
        %v1007 = vmul.f32 %v814, %v1006
        %v1008 = vmul.f32 %v996, 3.8918573e-05
        %v1009 = vadd.f32 %v1008, 0.001143296
        %v1010 = vmul.f32 %v996, %v1009
        %v1011 = vadd.f32 %v1010, 0.014752088
        %v1012 = vmul.f32 %v996, %v1011
        %v1013 = vadd.f32 %v1012, 0.112945676
        %v1014 = vmul.f32 %v996, %v1013
        %v1015 = vadd.f32 %v1014, 0.4994258
        %v1016 = vmul.f32 %v996, %v1015
        %v1017 = vadd.f32 %v1016, 1.0
        %v1018 = vrcp.pop %v1017
        %v1019 = vmul.f32 %v1017, %v1018
        %v1020 = vsub.f32 1.0, %v1019
        %v1021 = vmul.f32 %v1018, %v1020
        %v1022 = vadd.f32 %v1018, %v1021
        %vm1023 = vweird.f32 %v1017
        %vm1024 = vweird.f32 %v1018
        %vm1025 = vmor %vm1023, %vm1024
        %v1026 = vsel %vm1025, %v1018, %v1022
        %v1027 = vand.u32 2147483647, %v1017
        %vm1028 = vcmp.eq.f32.partialorder %v1027, 8.507059e+37
        %v1029 = vand.u32 %v1017, 2147483648
        %v1030 = vor.u32 1.1754944e-38, %v1029
        %v1031 = vsel %vm1028, %v1030, %v1026
        %v1032 = vmul.f32 %v1007, %v1031
        %v1033 = vmin.f32 %v1032, 1.0
        %v1034 = vmax.f32 %v1033, -1.0
        %v1035 = vmul.f32 %v815, %v815
        %v1036 = vmin.f32 16.0, %v1035
        %v1037 = vmul.f32 %v1036, 2.1237322e-06
        %v1038 = vadd.f32 %v1037, 0.00028619796
        %v1039 = vmul.f32 %v1036, %v1038
        %v1040 = vadd.f32 %v1039, 0.0036580483
        %v1041 = vmul.f32 %v1036, %v1040
        %v1042 = vadd.f32 %v1041, 0.05243302
        %v1043 = vmul.f32 %v1036, %v1042
        %v1044 = vadd.f32 %v1043, 0.18741608
        %v1045 = vmul.f32 %v1036, %v1044
        %v1046 = vadd.f32 %v1045, 1.1283791
        %v1047 = vmul.f32 %v815, %v1046
        %v1048 = vmul.f32 %v1036, 3.8918573e-05
        %v1049 = vadd.f32 %v1048, 0.001143296
        %v1050 = vmul.f32 %v1036, %v1049
        %v1051 = vadd.f32 %v1050, 0.014752088
        %v1052 = vmul.f32 %v1036, %v1051
        %v1053 = vadd.f32 %v1052, 0.112945676
        %v1054 = vmul.f32 %v1036, %v1053
        %v1055 = vadd.f32 %v1054, 0.4994258
        %v1056 = vmul.f32 %v1036, %v1055
        %v1057 = vadd.f32 %v1056, 1.0
        %v1058 = vrcp.pop %v1057
        %v1059 = vmul.f32 %v1057, %v1058
        %v1060 = vsub.f32 1.0, %v1059
        %v1061 = vmul.f32 %v1058, %v1060
        %v1062 = vadd.f32 %v1058, %v1061
        %vm1063 = vweird.f32 %v1057
        %vm1064 = vweird.f32 %v1058
        %vm1065 = vmor %vm1063, %vm1064
        %v1066 = vsel %vm1065, %v1058, %v1062
        %v1067 = vand.u32 2147483647, %v1057
        %vm1068 = vcmp.eq.f32.partialorder %v1067, 8.507059e+37
        %v1069 = vand.u32 %v1057, 2147483648
        %v1070 = vor.u32 1.1754944e-38, %v1069
        %v1071 = vsel %vm1068, %v1070, %v1066
        %v1072 = vmul.f32 %v1047, %v1071
        %v1073 = vmin.f32 %v1072, 1.0
        %v1074 = vmax.f32 %v1073, -1.0
        %v1075 = vmul.f32 %v816, %v816
        %v1076 = vmin.f32 16.0, %v1075
        %v1077 = vmul.f32 %v1076, 2.1237322e-06
        %v1078 = vadd.f32 %v1077, 0.00028619796
        %v1079 = vmul.f32 %v1076, %v1078
        %v1080 = vadd.f32 %v1079, 0.0036580483
        %v1081 = vmul.f32 %v1076, %v1080
        %v1082 = vadd.f32 %v1081, 0.05243302
        %v1083 = vmul.f32 %v1076, %v1082
        %v1084 = vadd.f32 %v1083, 0.18741608
        %v1085 = vmul.f32 %v1076, %v1084
        %v1086 = vadd.f32 %v1085, 1.1283791
        %v1087 = vmul.f32 %v816, %v1086
        %v1088 = vmul.f32 %v1076, 3.8918573e-05
        %v1089 = vadd.f32 %v1088, 0.001143296
        %v1090 = vmul.f32 %v1076, %v1089
        %v1091 = vadd.f32 %v1090, 0.014752088
        %v1092 = vmul.f32 %v1076, %v1091
        %v1093 = vadd.f32 %v1092, 0.112945676
        %v1094 = vmul.f32 %v1076, %v1093
        %v1095 = vadd.f32 %v1094, 0.4994258
        %v1096 = vmul.f32 %v1076, %v1095
        %v1097 = vadd.f32 %v1096, 1.0
        %v1098 = vrcp.pop %v1097
        %v1099 = vmul.f32 %v1097, %v1098
        %v1100 = vsub.f32 1.0, %v1099
        %v1101 = vmul.f32 %v1098, %v1100
        %v1102 = vadd.f32 %v1098, %v1101
        %vm1103 = vweird.f32 %v1097
        %vm1104 = vweird.f32 %v1098
        %vm1105 = vmor %vm1103, %vm1104
        %v1106 = vsel %vm1105, %v1098, %v1102
        %v1107 = vand.u32 2147483647, %v1097
        %vm1108 = vcmp.eq.f32.partialorder %v1107, 8.507059e+37
        %v1109 = vand.u32 %v1097, 2147483648
        %v1110 = vor.u32 1.1754944e-38, %v1109
        %v1111 = vsel %vm1108, %v1110, %v1106
        %v1112 = vmul.f32 %v1087, %v1111
        %v1113 = vmin.f32 %v1112, 1.0
        %v1114 = vmax.f32 %v1113, -1.0
        %v1115 = vmul.f32 %v817, %v817
        %v1116 = vmin.f32 16.0, %v1115
        %v1117 = vmul.f32 %v1116, 2.1237322e-06
        %v1118 = vadd.f32 %v1117, 0.00028619796
        %v1119 = vmul.f32 %v1116, %v1118
        %v1120 = vadd.f32 %v1119, 0.0036580483
        %v1121 = vmul.f32 %v1116, %v1120
        %v1122 = vadd.f32 %v1121, 0.05243302
        %v1123 = vmul.f32 %v1116, %v1122
        %v1124 = vadd.f32 %v1123, 0.18741608
        %v1125 = vmul.f32 %v1116, %v1124
        %v1126 = vadd.f32 %v1125, 1.1283791
        %v1127 = vmul.f32 %v817, %v1126
        %v1128 = vmul.f32 %v1116, 3.8918573e-05
        %v1129 = vadd.f32 %v1128, 0.001143296
        %v1130 = vmul.f32 %v1116, %v1129
        %v1131 = vadd.f32 %v1130, 0.014752088
        %v1132 = vmul.f32 %v1116, %v1131
        %v1133 = vadd.f32 %v1132, 0.112945676
        %v1134 = vmul.f32 %v1116, %v1133
        %v1135 = vadd.f32 %v1134, 0.4994258
        %v1136 = vmul.f32 %v1116, %v1135
        %v1137 = vadd.f32 %v1136, 1.0
        %v1138 = vrcp.pop %v1137
        %v1139 = vmul.f32 %v1137, %v1138
        %v1140 = vsub.f32 1.0, %v1139
        %v1141 = vmul.f32 %v1138, %v1140
        %v1142 = vadd.f32 %v1138, %v1141
        %vm1143 = vweird.f32 %v1137
        %vm1144 = vweird.f32 %v1138
        %vm1145 = vmor %vm1143, %vm1144
        %v1146 = vsel %vm1145, %v1138, %v1142
        %v1147 = vand.u32 2147483647, %v1137
        %vm1148 = vcmp.eq.f32.partialorder %v1147, 8.507059e+37
        %v1149 = vand.u32 %v1137, 2147483648
        %v1150 = vor.u32 1.1754944e-38, %v1149
        %v1151 = vsel %vm1148, %v1150, %v1146
        %v1152 = vmul.f32 %v1127, %v1151
        %v1153 = vmin.f32 %v1152, 1.0
        %v1154 = vmax.f32 %v1153, -1.0
        %v1155 = vmul.f32 %v818, %v818
        %v1156 = vmin.f32 16.0, %v1155
        %v1157 = vmul.f32 %v1156, 2.1237322e-06
        %v1158 = vadd.f32 %v1157, 0.00028619796
        %v1159 = vmul.f32 %v1156, %v1158
        %v1160 = vadd.f32 %v1159, 0.0036580483
        %v1161 = vmul.f32 %v1156, %v1160
        %v1162 = vadd.f32 %v1161, 0.05243302
        %v1163 = vmul.f32 %v1156, %v1162
        %v1164 = vadd.f32 %v1163, 0.18741608
        %v1165 = vmul.f32 %v1156, %v1164
        %v1166 = vadd.f32 %v1165, 1.1283791
        %v1167 = vmul.f32 %v818, %v1166
        %v1168 = vmul.f32 %v1156, 3.8918573e-05
        %v1169 = vadd.f32 %v1168, 0.001143296
        %v1170 = vmul.f32 %v1156, %v1169
        %v1171 = vadd.f32 %v1170, 0.014752088
        %v1172 = vmul.f32 %v1156, %v1171
        %v1173 = vadd.f32 %v1172, 0.112945676
        %v1174 = vmul.f32 %v1156, %v1173
        %v1175 = vadd.f32 %v1174, 0.4994258
        %v1176 = vmul.f32 %v1156, %v1175
        %v1177 = vadd.f32 %v1176, 1.0
        %v1178 = vrcp.pop %v1177
        %v1179 = vmul.f32 %v1177, %v1178
        %v1180 = vsub.f32 1.0, %v1179
        %v1181 = vmul.f32 %v1178, %v1180
        %v1182 = vadd.f32 %v1178, %v1181
        %vm1183 = vweird.f32 %v1177
        %vm1184 = vweird.f32 %v1178
        %vm1185 = vmor %vm1183, %vm1184
        %v1186 = vsel %vm1185, %v1178, %v1182
        %v1187 = vand.u32 2147483647, %v1177
        %vm1188 = vcmp.eq.f32.partialorder %v1187, 8.507059e+37
        %v1189 = vand.u32 %v1177, 2147483648
        %v1190 = vor.u32 1.1754944e-38, %v1189
        %v1191 = vsel %vm1188, %v1190, %v1186
        %v1192 = vmul.f32 %v1167, %v1191
        %v1193 = vmin.f32 %v1192, 1.0
        %v1194 = vmax.f32 %v1193, -1.0
        %v1195 = vmul.f32 %v819, %v819
        %v1196 = vmin.f32 16.0, %v1195
        %v1197 = vmul.f32 %v1196, 2.1237322e-06
        %v1198 = vadd.f32 %v1197, 0.00028619796
        %v1199 = vmul.f32 %v1196, %v1198
        %v1200 = vadd.f32 %v1199, 0.0036580483
        %v1201 = vmul.f32 %v1196, %v1200
        %v1202 = vadd.f32 %v1201, 0.05243302
        %v1203 = vmul.f32 %v1196, %v1202
        %v1204 = vadd.f32 %v1203, 0.18741608
        %v1205 = vmul.f32 %v1196, %v1204
        %v1206 = vadd.f32 %v1205, 1.1283791
        %v1207 = vmul.f32 %v819, %v1206
        %v1208 = vmul.f32 %v1196, 3.8918573e-05
        %v1209 = vadd.f32 %v1208, 0.001143296
        %v1210 = vmul.f32 %v1196, %v1209
        %v1211 = vadd.f32 %v1210, 0.014752088
        %v1212 = vmul.f32 %v1196, %v1211
        %v1213 = vadd.f32 %v1212, 0.112945676
        %v1214 = vmul.f32 %v1196, %v1213
        %v1215 = vadd.f32 %v1214, 0.4994258
        %v1216 = vmul.f32 %v1196, %v1215
        %v1217 = vadd.f32 %v1216, 1.0
        %v1218 = vrcp.pop %v1217
        %v1219 = vmul.f32 %v1217, %v1218
        %v1220 = vsub.f32 1.0, %v1219
        %v1221 = vmul.f32 %v1218, %v1220
        %v1222 = vadd.f32 %v1218, %v1221
        %vm1223 = vweird.f32 %v1217
        %vm1224 = vweird.f32 %v1218
        %vm1225 = vmor %vm1223, %vm1224
        %v1226 = vsel %vm1225, %v1218, %v1222
        %v1227 = vand.u32 2147483647, %v1217
        %vm1228 = vcmp.eq.f32.partialorder %v1227, 8.507059e+37
        %v1229 = vand.u32 %v1217, 2147483648
        %v1230 = vor.u32 1.1754944e-38, %v1229
        %v1231 = vsel %vm1228, %v1230, %v1226
        %v1232 = vmul.f32 %v1207, %v1231
        %v1233 = vmin.f32 %v1232, 1.0
        %v1234 = vmax.f32 %v1233, -1.0
        %v1235 = vmul.f32 %v820, %v820
        %v1236 = vmin.f32 16.0, %v1235
        %v1237 = vmul.f32 %v1236, 2.1237322e-06
        %v1238 = vadd.f32 %v1237, 0.00028619796
        %v1239 = vmul.f32 %v1236, %v1238
        %v1240 = vadd.f32 %v1239, 0.0036580483
        %v1241 = vmul.f32 %v1236, %v1240
        %v1242 = vadd.f32 %v1241, 0.05243302
        %v1243 = vmul.f32 %v1236, %v1242
        %v1244 = vadd.f32 %v1243, 0.18741608
        %v1245 = vmul.f32 %v1236, %v1244
        %v1246 = vadd.f32 %v1245, 1.1283791
        %v1247 = vmul.f32 %v820, %v1246
        %v1248 = vmul.f32 %v1236, 3.8918573e-05
        %v1249 = vadd.f32 %v1248, 0.001143296
        %v1250 = vmul.f32 %v1236, %v1249
        %v1251 = vadd.f32 %v1250, 0.014752088
        %v1252 = vmul.f32 %v1236, %v1251
        %v1253 = vadd.f32 %v1252, 0.112945676
        %v1254 = vmul.f32 %v1236, %v1253
        %v1255 = vadd.f32 %v1254, 0.4994258
        %v1256 = vmul.f32 %v1236, %v1255
        %v1257 = vadd.f32 %v1256, 1.0
        %v1258 = vrcp.pop %v1257
        %v1259 = vmul.f32 %v1257, %v1258
        %v1260 = vsub.f32 1.0, %v1259
        %v1261 = vmul.f32 %v1258, %v1260
        %v1262 = vadd.f32 %v1258, %v1261
        %vm1263 = vweird.f32 %v1257
        %vm1264 = vweird.f32 %v1258
        %vm1265 = vmor %vm1263, %vm1264
        %v1266 = vsel %vm1265, %v1258, %v1262
        %v1267 = vand.u32 2147483647, %v1257
        %vm1268 = vcmp.eq.f32.partialorder %v1267, 8.507059e+37
        %v1269 = vand.u32 %v1257, 2147483648
        %v1270 = vor.u32 1.1754944e-38, %v1269
        %v1271 = vsel %vm1268, %v1270, %v1266
        %v1272 = vmul.f32 %v1247, %v1271
        %v1273 = vmin.f32 %v1272, 1.0
        %v1274 = vmax.f32 %v1273, -1.0
        %v1275 = vmul.f32 %v821, %v821
        %v1276 = vmin.f32 16.0, %v1275
        %v1277 = vmul.f32 %v1276, 2.1237322e-06
        %v1278 = vadd.f32 %v1277, 0.00028619796
        %v1279 = vmul.f32 %v1276, %v1278
        %v1280 = vadd.f32 %v1279, 0.0036580483
        %v1281 = vmul.f32 %v1276, %v1280
        %v1282 = vadd.f32 %v1281, 0.05243302
        %v1283 = vmul.f32 %v1276, %v1282
        %v1284 = vadd.f32 %v1283, 0.18741608
        %v1285 = vmul.f32 %v1276, %v1284
        %v1286 = vadd.f32 %v1285, 1.1283791
        %v1287 = vmul.f32 %v821, %v1286
        %v1288 = vmul.f32 %v1276, 3.8918573e-05
        %v1289 = vadd.f32 %v1288, 0.001143296
        %v1290 = vmul.f32 %v1276, %v1289
        %v1291 = vadd.f32 %v1290, 0.014752088
        %v1292 = vmul.f32 %v1276, %v1291
        %v1293 = vadd.f32 %v1292, 0.112945676
        %v1294 = vmul.f32 %v1276, %v1293
        %v1295 = vadd.f32 %v1294, 0.4994258
        %v1296 = vmul.f32 %v1276, %v1295
        %v1297 = vadd.f32 %v1296, 1.0
        %v1298 = vrcp.pop %v1297
        %v1299 = vmul.f32 %v1297, %v1298
        %v1300 = vsub.f32 1.0, %v1299
        %v1301 = vmul.f32 %v1298, %v1300
        %v1302 = vadd.f32 %v1298, %v1301
        %vm1303 = vweird.f32 %v1297
        %vm1304 = vweird.f32 %v1298
        %vm1305 = vmor %vm1303, %vm1304
        %v1306 = vsel %vm1305, %v1298, %v1302
        %v1307 = vand.u32 2147483647, %v1297
        %vm1308 = vcmp.eq.f32.partialorder %v1307, 8.507059e+37
        %v1309 = vand.u32 %v1297, 2147483648
        %v1310 = vor.u32 1.1754944e-38, %v1309
        %v1311 = vsel %vm1308, %v1310, %v1306
        %v1312 = vmul.f32 %v1287, %v1311
        %v1313 = vmin.f32 %v1312, 1.0
        %v1314 = vmax.f32 %v1313, -1.0
        %v1315 = vmul.f32 %v822, %v822
        %v1316 = vmin.f32 16.0, %v1315
        %v1317 = vmul.f32 %v1316, 2.1237322e-06
        %v1318 = vadd.f32 %v1317, 0.00028619796
        %v1319 = vmul.f32 %v1316, %v1318
        %v1320 = vadd.f32 %v1319, 0.0036580483
        %v1321 = vmul.f32 %v1316, %v1320
        %v1322 = vadd.f32 %v1321, 0.05243302
        %v1323 = vmul.f32 %v1316, %v1322
        %v1324 = vadd.f32 %v1323, 0.18741608
        %v1325 = vmul.f32 %v1316, %v1324
        %v1326 = vadd.f32 %v1325, 1.1283791
        %v1327 = vmul.f32 %v822, %v1326
        %v1328 = vmul.f32 %v1316, 3.8918573e-05
        %v1329 = vadd.f32 %v1328, 0.001143296
        %v1330 = vmul.f32 %v1316, %v1329
        %v1331 = vadd.f32 %v1330, 0.014752088
        %v1332 = vmul.f32 %v1316, %v1331
        %v1333 = vadd.f32 %v1332, 0.112945676
        %v1334 = vmul.f32 %v1316, %v1333
        %v1335 = vadd.f32 %v1334, 0.4994258
        %v1336 = vmul.f32 %v1316, %v1335
        %v1337 = vadd.f32 %v1336, 1.0
        %v1338 = vrcp.pop %v1337
        %v1339 = vmul.f32 %v1337, %v1338
        %v1340 = vsub.f32 1.0, %v1339
        %v1341 = vmul.f32 %v1338, %v1340
        %v1342 = vadd.f32 %v1338, %v1341
        %vm1343 = vweird.f32 %v1337
        %vm1344 = vweird.f32 %v1338
        %vm1345 = vmor %vm1343, %vm1344
        %v1346 = vsel %vm1345, %v1338, %v1342
        %v1347 = vand.u32 2147483647, %v1337
        %vm1348 = vcmp.eq.f32.partialorder %v1347, 8.507059e+37
        %v1349 = vand.u32 %v1337, 2147483648
        %v1350 = vor.u32 1.1754944e-38, %v1349
        %v1351 = vsel %vm1348, %v1350, %v1346
        %v1352 = vmul.f32 %v1327, %v1351
        %v1353 = vmin.f32 %v1352, 1.0
        %v1354 = vmax.f32 %v1353, -1.0
        %v1355 = vmul.f32 %v823, %v823
        %v1356 = vmin.f32 16.0, %v1355
        %v1357 = vmul.f32 %v1356, 2.1237322e-06
        %v1358 = vadd.f32 %v1357, 0.00028619796
        %v1359 = vmul.f32 %v1356, %v1358
        %v1360 = vadd.f32 %v1359, 0.0036580483
        %v1361 = vmul.f32 %v1356, %v1360
        %v1362 = vadd.f32 %v1361, 0.05243302
        %v1363 = vmul.f32 %v1356, %v1362
        %v1364 = vadd.f32 %v1363, 0.18741608
        %v1365 = vmul.f32 %v1356, %v1364
        %v1366 = vadd.f32 %v1365, 1.1283791
        %v1367 = vmul.f32 %v823, %v1366
        %v1368 = vmul.f32 %v1356, 3.8918573e-05
        %v1369 = vadd.f32 %v1368, 0.001143296
        %v1370 = vmul.f32 %v1356, %v1369
        %v1371 = vadd.f32 %v1370, 0.014752088
        %v1372 = vmul.f32 %v1356, %v1371
        %v1373 = vadd.f32 %v1372, 0.112945676
        %v1374 = vmul.f32 %v1356, %v1373
        %v1375 = vadd.f32 %v1374, 0.4994258
        %v1376 = vmul.f32 %v1356, %v1375
        %v1377 = vadd.f32 %v1376, 1.0
        %v1378 = vrcp.pop %v1377
        %v1379 = vmul.f32 %v1377, %v1378
        %v1380 = vsub.f32 1.0, %v1379
        %v1381 = vmul.f32 %v1378, %v1380
        %v1382 = vadd.f32 %v1378, %v1381
        %vm1383 = vweird.f32 %v1377
        %vm1384 = vweird.f32 %v1378
        %vm1385 = vmor %vm1383, %vm1384
        %v1386 = vsel %vm1385, %v1378, %v1382
        %v1387 = vand.u32 2147483647, %v1377
        %vm1388 = vcmp.eq.f32.partialorder %v1387, 8.507059e+37
        %v1389 = vand.u32 %v1377, 2147483648
        %v1390 = vor.u32 1.1754944e-38, %v1389
        %v1391 = vsel %vm1388, %v1390, %v1386
        %v1392 = vmul.f32 %v1367, %v1391
        %v1393 = vmin.f32 %v1392, 1.0
        %v1394 = vmax.f32 %v1393, -1.0
        %v1395 = vmul.f32 %v824, %v824
        %v1396 = vmin.f32 16.0, %v1395
        %v1397 = vmul.f32 %v1396, 2.1237322e-06
        %v1398 = vadd.f32 %v1397, 0.00028619796
        %v1399 = vmul.f32 %v1396, %v1398
        %v1400 = vadd.f32 %v1399, 0.0036580483
        %v1401 = vmul.f32 %v1396, %v1400
        %v1402 = vadd.f32 %v1401, 0.05243302
        %v1403 = vmul.f32 %v1396, %v1402
        %v1404 = vadd.f32 %v1403, 0.18741608
        %v1405 = vmul.f32 %v1396, %v1404
        %v1406 = vadd.f32 %v1405, 1.1283791
        %v1407 = vmul.f32 %v824, %v1406
        %v1408 = vmul.f32 %v1396, 3.8918573e-05
        %v1409 = vadd.f32 %v1408, 0.001143296
        %v1410 = vmul.f32 %v1396, %v1409
        %v1411 = vadd.f32 %v1410, 0.014752088
        %v1412 = vmul.f32 %v1396, %v1411
        %v1413 = vadd.f32 %v1412, 0.112945676
        %v1414 = vmul.f32 %v1396, %v1413
        %v1415 = vadd.f32 %v1414, 0.4994258
        %v1416 = vmul.f32 %v1396, %v1415
        %v1417 = vadd.f32 %v1416, 1.0
        %v1418 = vrcp.pop %v1417
        %v1419 = vmul.f32 %v1417, %v1418
        %v1420 = vsub.f32 1.0, %v1419
        %v1421 = vmul.f32 %v1418, %v1420
        %v1422 = vadd.f32 %v1418, %v1421
        %vm1423 = vweird.f32 %v1417
        %vm1424 = vweird.f32 %v1418
        %vm1425 = vmor %vm1423, %vm1424
        %v1426 = vsel %vm1425, %v1418, %v1422
        %v1427 = vand.u32 2147483647, %v1417
        %vm1428 = vcmp.eq.f32.partialorder %v1427, 8.507059e+37
        %v1429 = vand.u32 %v1417, 2147483648
        %v1430 = vor.u32 1.1754944e-38, %v1429
        %v1431 = vsel %vm1428, %v1430, %v1426
        %v1432 = vmul.f32 %v1407, %v1431
        %v1433 = vmin.f32 %v1432, 1.0
        %v1434 = vmax.f32 %v1433, -1.0
        %v1435 = vmul.f32 %v825, %v825
        %v1436 = vmin.f32 16.0, %v1435
        %v1437 = vmul.f32 %v1436, 2.1237322e-06
        %v1438 = vadd.f32 %v1437, 0.00028619796
        %v1439 = vmul.f32 %v1436, %v1438
        %v1440 = vadd.f32 %v1439, 0.0036580483
        %v1441 = vmul.f32 %v1436, %v1440
        %v1442 = vadd.f32 %v1441, 0.05243302
        %v1443 = vmul.f32 %v1436, %v1442
        %v1444 = vadd.f32 %v1443, 0.18741608
        %v1445 = vmul.f32 %v1436, %v1444
        %v1446 = vadd.f32 %v1445, 1.1283791
        %v1447 = vmul.f32 %v825, %v1446
        %v1448 = vmul.f32 %v1436, 3.8918573e-05
        %v1449 = vadd.f32 %v1448, 0.001143296
        %v1450 = vmul.f32 %v1436, %v1449
        %v1451 = vadd.f32 %v1450, 0.014752088
        %v1452 = vmul.f32 %v1436, %v1451
        %v1453 = vadd.f32 %v1452, 0.112945676
        %v1454 = vmul.f32 %v1436, %v1453
        %v1455 = vadd.f32 %v1454, 0.4994258
        %v1456 = vmul.f32 %v1436, %v1455
        %v1457 = vadd.f32 %v1456, 1.0
        %v1458 = vrcp.pop %v1457
        %v1459 = vmul.f32 %v1457, %v1458
        %v1460 = vsub.f32 1.0, %v1459
        %v1461 = vmul.f32 %v1458, %v1460
        %v1462 = vadd.f32 %v1458, %v1461
        %vm1463 = vweird.f32 %v1457
        %vm1464 = vweird.f32 %v1458
        %vm1465 = vmor %vm1463, %vm1464
        %v1466 = vsel %vm1465, %v1458, %v1462
        %v1467 = vand.u32 2147483647, %v1457
        %vm1468 = vcmp.eq.f32.partialorder %v1467, 8.507059e+37
        %v1469 = vand.u32 %v1457, 2147483648
        %v1470 = vor.u32 1.1754944e-38, %v1469
        %v1471 = vsel %vm1468, %v1470, %v1466
        %v1472 = vmul.f32 %v1447, %v1471
        %v1473 = vmin.f32 %v1472, 1.0
        %v1474 = vmax.f32 %v1473, -1.0
        %v1475 = vmul.f32 %v826, %v826
        %v1476 = vmin.f32 16.0, %v1475
        %v1477 = vmul.f32 %v1476, 2.1237322e-06
        %v1478 = vadd.f32 %v1477, 0.00028619796
        %v1479 = vmul.f32 %v1476, %v1478
        %v1480 = vadd.f32 %v1479, 0.0036580483
        %v1481 = vmul.f32 %v1476, %v1480
        %v1482 = vadd.f32 %v1481, 0.05243302
        %v1483 = vmul.f32 %v1476, %v1482
        %v1484 = vadd.f32 %v1483, 0.18741608
        %v1485 = vmul.f32 %v1476, %v1484
        %v1486 = vadd.f32 %v1485, 1.1283791
        %v1487 = vmul.f32 %v826, %v1486
        %v1488 = vmul.f32 %v1476, 3.8918573e-05
        %v1489 = vadd.f32 %v1488, 0.001143296
        %v1490 = vmul.f32 %v1476, %v1489
        %v1491 = vadd.f32 %v1490, 0.014752088
        %v1492 = vmul.f32 %v1476, %v1491
        %v1493 = vadd.f32 %v1492, 0.112945676
        %v1494 = vmul.f32 %v1476, %v1493
        %v1495 = vadd.f32 %v1494, 0.4994258
        %v1496 = vmul.f32 %v1476, %v1495
        %v1497 = vadd.f32 %v1496, 1.0
        %v1498 = vrcp.pop %v1497
        %v1499 = vmul.f32 %v1497, %v1498
        %v1500 = vsub.f32 1.0, %v1499
        %v1501 = vmul.f32 %v1498, %v1500
        %v1502 = vadd.f32 %v1498, %v1501
        %vm1503 = vweird.f32 %v1497
        %vm1504 = vweird.f32 %v1498
        %vm1505 = vmor %vm1503, %vm1504
        %v1506 = vsel %vm1505, %v1498, %v1502
        %v1507 = vand.u32 2147483647, %v1497
        %vm1508 = vcmp.eq.f32.partialorder %v1507, 8.507059e+37
        %v1509 = vand.u32 %v1497, 2147483648
        %v1510 = vor.u32 1.1754944e-38, %v1509
        %v1511 = vsel %vm1508, %v1510, %v1506
        %v1512 = vmul.f32 %v1487, %v1511
        %v1513 = vmin.f32 %v1512, 1.0
        %v1514 = vmax.f32 %v1513, -1.0
        %v1515 = vmul.f32 %v827, %v827
        %v1516 = vmin.f32 16.0, %v1515
        %v1517 = vmul.f32 %v1516, 2.1237322e-06
        %v1518 = vadd.f32 %v1517, 0.00028619796
        %v1519 = vmul.f32 %v1516, %v1518
        %v1520 = vadd.f32 %v1519, 0.0036580483
        %v1521 = vmul.f32 %v1516, %v1520
        %v1522 = vadd.f32 %v1521, 0.05243302
        %v1523 = vmul.f32 %v1516, %v1522
        %v1524 = vadd.f32 %v1523, 0.18741608
        %v1525 = vmul.f32 %v1516, %v1524
        %v1526 = vadd.f32 %v1525, 1.1283791
        %v1527 = vmul.f32 %v827, %v1526
        %v1528 = vmul.f32 %v1516, 3.8918573e-05
        %v1529 = vadd.f32 %v1528, 0.001143296
        %v1530 = vmul.f32 %v1516, %v1529
        %v1531 = vadd.f32 %v1530, 0.014752088
        %v1532 = vmul.f32 %v1516, %v1531
        %v1533 = vadd.f32 %v1532, 0.112945676
        %v1534 = vmul.f32 %v1516, %v1533
        %v1535 = vadd.f32 %v1534, 0.4994258
        %v1536 = vmul.f32 %v1516, %v1535
        %v1537 = vadd.f32 %v1536, 1.0
        %v1538 = vrcp.pop %v1537
        %v1539 = vmul.f32 %v1537, %v1538
        %v1540 = vsub.f32 1.0, %v1539
        %v1541 = vmul.f32 %v1538, %v1540
        %v1542 = vadd.f32 %v1538, %v1541
        %vm1543 = vweird.f32 %v1537
        %vm1544 = vweird.f32 %v1538
        %vm1545 = vmor %vm1543, %vm1544
        %v1546 = vsel %vm1545, %v1538, %v1542
        %v1547 = vand.u32 2147483647, %v1537
        %vm1548 = vcmp.eq.f32.partialorder %v1547, 8.507059e+37
        %v1549 = vand.u32 %v1537, 2147483648
        %v1550 = vor.u32 1.1754944e-38, %v1549
        %v1551 = vsel %vm1548, %v1550, %v1546
        %v1552 = vmul.f32 %v1527, %v1551
        %v1553 = vmin.f32 %v1552, 1.0
        %v1554 = vmax.f32 %v1553, -1.0
        %v1555 = vmul.f32 %v828, %v828
        %v1556 = vmin.f32 16.0, %v1555
        %v1557 = vmul.f32 %v1556, 2.1237322e-06
        %v1558 = vadd.f32 %v1557, 0.00028619796
        %v1559 = vmul.f32 %v1556, %v1558
        %v1560 = vadd.f32 %v1559, 0.0036580483
        %v1561 = vmul.f32 %v1556, %v1560
        %v1562 = vadd.f32 %v1561, 0.05243302
        %v1563 = vmul.f32 %v1556, %v1562
        %v1564 = vadd.f32 %v1563, 0.18741608
        %v1565 = vmul.f32 %v1556, %v1564
        %v1566 = vadd.f32 %v1565, 1.1283791
        %v1567 = vmul.f32 %v828, %v1566
        %v1568 = vmul.f32 %v1556, 3.8918573e-05
        %v1569 = vadd.f32 %v1568, 0.001143296
        %v1570 = vmul.f32 %v1556, %v1569
        %v1571 = vadd.f32 %v1570, 0.014752088
        %v1572 = vmul.f32 %v1556, %v1571
        %v1573 = vadd.f32 %v1572, 0.112945676
        %v1574 = vmul.f32 %v1556, %v1573
        %v1575 = vadd.f32 %v1574, 0.4994258
        %v1576 = vmul.f32 %v1556, %v1575
        %v1577 = vadd.f32 %v1576, 1.0
        %v1578 = vrcp.pop %v1577
        %v1579 = vmul.f32 %v1577, %v1578
        %v1580 = vsub.f32 1.0, %v1579
        %v1581 = vmul.f32 %v1578, %v1580
        %v1582 = vadd.f32 %v1578, %v1581
        %vm1583 = vweird.f32 %v1577
        %vm1584 = vweird.f32 %v1578
        %vm1585 = vmor %vm1583, %vm1584
        %v1586 = vsel %vm1585, %v1578, %v1582
        %v1587 = vand.u32 2147483647, %v1577
        %vm1588 = vcmp.eq.f32.partialorder %v1587, 8.507059e+37
        %v1589 = vand.u32 %v1577, 2147483648
        %v1590 = vor.u32 1.1754944e-38, %v1589
        %v1591 = vsel %vm1588, %v1590, %v1586
        %v1592 = vmul.f32 %v1567, %v1591
        %v1593 = vmin.f32 %v1592, 1.0
        %v1594 = vmax.f32 %v1593, -1.0
        %v1595 = vmul.f32 %v829, %v829
        %v1596 = vmin.f32 16.0, %v1595
        %v1597 = vmul.f32 %v1596, 2.1237322e-06
        %v1598 = vadd.f32 %v1597, 0.00028619796
        %v1599 = vmul.f32 %v1596, %v1598
        %v1600 = vadd.f32 %v1599, 0.0036580483
        %v1601 = vmul.f32 %v1596, %v1600
        %v1602 = vadd.f32 %v1601, 0.05243302
        %v1603 = vmul.f32 %v1596, %v1602
        %v1604 = vadd.f32 %v1603, 0.18741608
        %v1605 = vmul.f32 %v1596, %v1604
        %v1606 = vadd.f32 %v1605, 1.1283791
        %v1607 = vmul.f32 %v829, %v1606
        %v1608 = vmul.f32 %v1596, 3.8918573e-05
        %v1609 = vadd.f32 %v1608, 0.001143296
        %v1610 = vmul.f32 %v1596, %v1609
        %v1611 = vadd.f32 %v1610, 0.014752088
        %v1612 = vmul.f32 %v1596, %v1611
        %v1613 = vadd.f32 %v1612, 0.112945676
        %v1614 = vmul.f32 %v1596, %v1613
        %v1615 = vadd.f32 %v1614, 0.4994258
        %v1616 = vmul.f32 %v1596, %v1615
        %v1617 = vadd.f32 %v1616, 1.0
        %v1618 = vrcp.pop %v1617
        %v1619 = vmul.f32 %v1617, %v1618
        %v1620 = vsub.f32 1.0, %v1619
        %v1621 = vmul.f32 %v1618, %v1620
        %v1622 = vadd.f32 %v1618, %v1621
        %vm1623 = vweird.f32 %v1617
        %vm1624 = vweird.f32 %v1618
        %vm1625 = vmor %vm1623, %vm1624
        %v1626 = vsel %vm1625, %v1618, %v1622
        %v1627 = vand.u32 2147483647, %v1617
        %vm1628 = vcmp.eq.f32.partialorder %v1627, 8.507059e+37
        %v1629 = vand.u32 %v1617, 2147483648
        %v1630 = vor.u32 1.1754944e-38, %v1629
        %v1631 = vsel %vm1628, %v1630, %v1626
        %v1632 = vmul.f32 %v1607, %v1631
        %v1633 = vmin.f32 %v1632, 1.0
        %v1634 = vmax.f32 %v1633, -1.0
        %v1635 = vmul.f32 %v830, %v830
        %v1636 = vmin.f32 16.0, %v1635
        %v1637 = vmul.f32 %v1636, 2.1237322e-06
        %v1638 = vadd.f32 %v1637, 0.00028619796
        %v1639 = vmul.f32 %v1636, %v1638
        %v1640 = vadd.f32 %v1639, 0.0036580483
        %v1641 = vmul.f32 %v1636, %v1640
        %v1642 = vadd.f32 %v1641, 0.05243302
        %v1643 = vmul.f32 %v1636, %v1642
        %v1644 = vadd.f32 %v1643, 0.18741608
        %v1645 = vmul.f32 %v1636, %v1644
        %v1646 = vadd.f32 %v1645, 1.1283791
        %v1647 = vmul.f32 %v830, %v1646
        %v1648 = vmul.f32 %v1636, 3.8918573e-05
        %v1649 = vadd.f32 %v1648, 0.001143296
        %v1650 = vmul.f32 %v1636, %v1649
        %v1651 = vadd.f32 %v1650, 0.014752088
        %v1652 = vmul.f32 %v1636, %v1651
        %v1653 = vadd.f32 %v1652, 0.112945676
        %v1654 = vmul.f32 %v1636, %v1653
        %v1655 = vadd.f32 %v1654, 0.4994258
        %v1656 = vmul.f32 %v1636, %v1655
        %v1657 = vadd.f32 %v1656, 1.0
        %v1658 = vrcp.pop %v1657
        %v1659 = vmul.f32 %v1657, %v1658
        %v1660 = vsub.f32 1.0, %v1659
        %v1661 = vmul.f32 %v1658, %v1660
        %v1662 = vadd.f32 %v1658, %v1661
        %vm1663 = vweird.f32 %v1657
        %vm1664 = vweird.f32 %v1658
        %vm1665 = vmor %vm1663, %vm1664
        %v1666 = vsel %vm1665, %v1658, %v1662
        %v1667 = vand.u32 2147483647, %v1657
        %vm1668 = vcmp.eq.f32.partialorder %v1667, 8.507059e+37
        %v1669 = vand.u32 %v1657, 2147483648
        %v1670 = vor.u32 1.1754944e-38, %v1669
        %v1671 = vsel %vm1668, %v1670, %v1666
        %v1672 = vmul.f32 %v1647, %v1671
        %v1673 = vmin.f32 %v1672, 1.0
        %v1674 = vmax.f32 %v1673, -1.0
        %v1675 = vmul.f32 %v831, %v831
        %v1676 = vmin.f32 16.0, %v1675
        %v1677 = vmul.f32 %v1676, 2.1237322e-06
        %v1678 = vadd.f32 %v1677, 0.00028619796
        %v1679 = vmul.f32 %v1676, %v1678
        %v1680 = vadd.f32 %v1679, 0.0036580483
        %v1681 = vmul.f32 %v1676, %v1680
        %v1682 = vadd.f32 %v1681, 0.05243302
        %v1683 = vmul.f32 %v1676, %v1682
        %v1684 = vadd.f32 %v1683, 0.18741608
        %v1685 = vmul.f32 %v1676, %v1684
        %v1686 = vadd.f32 %v1685, 1.1283791
        %v1687 = vmul.f32 %v831, %v1686
        %v1688 = vmul.f32 %v1676, 3.8918573e-05
        %v1689 = vadd.f32 %v1688, 0.001143296
        %v1690 = vmul.f32 %v1676, %v1689
        %v1691 = vadd.f32 %v1690, 0.014752088
        %v1692 = vmul.f32 %v1676, %v1691
        %v1693 = vadd.f32 %v1692, 0.112945676
        %v1694 = vmul.f32 %v1676, %v1693
        %v1695 = vadd.f32 %v1694, 0.4994258
        %v1696 = vmul.f32 %v1676, %v1695
        %v1697 = vadd.f32 %v1696, 1.0
        %v1698 = vrcp.pop %v1697
        %v1699 = vmul.f32 %v1697, %v1698
        %v1700 = vsub.f32 1.0, %v1699
        %v1701 = vmul.f32 %v1698, %v1700
        %v1702 = vadd.f32 %v1698, %v1701
        %vm1703 = vweird.f32 %v1697
        %vm1704 = vweird.f32 %v1698
        %vm1705 = vmor %vm1703, %vm1704
        %v1706 = vsel %vm1705, %v1698, %v1702
        %v1707 = vand.u32 2147483647, %v1697
        %vm1708 = vcmp.eq.f32.partialorder %v1707, 8.507059e+37
        %v1709 = vand.u32 %v1697, 2147483648
        %v1710 = vor.u32 1.1754944e-38, %v1709
        %v1711 = vsel %vm1708, %v1710, %v1706
        %v1712 = vmul.f32 %v1687, %v1711
        %v1713 = vmin.f32 %v1712, 1.0
        %v1714 = vmax.f32 %v1713, -1.0
        %v1715 = vmul.f32 %v832, %v832
        %v1716 = vmin.f32 16.0, %v1715
        %v1717 = vmul.f32 %v1716, 2.1237322e-06
        %v1718 = vadd.f32 %v1717, 0.00028619796
        %v1719 = vmul.f32 %v1716, %v1718
        %v1720 = vadd.f32 %v1719, 0.0036580483
        %v1721 = vmul.f32 %v1716, %v1720
        %v1722 = vadd.f32 %v1721, 0.05243302
        %v1723 = vmul.f32 %v1716, %v1722
        %v1724 = vadd.f32 %v1723, 0.18741608
        %v1725 = vmul.f32 %v1716, %v1724
        %v1726 = vadd.f32 %v1725, 1.1283791
        %v1727 = vmul.f32 %v832, %v1726
        %v1728 = vmul.f32 %v1716, 3.8918573e-05
        %v1729 = vadd.f32 %v1728, 0.001143296
        %v1730 = vmul.f32 %v1716, %v1729
        %v1731 = vadd.f32 %v1730, 0.014752088
        %v1732 = vmul.f32 %v1716, %v1731
        %v1733 = vadd.f32 %v1732, 0.112945676
        %v1734 = vmul.f32 %v1716, %v1733
        %v1735 = vadd.f32 %v1734, 0.4994258
        %v1736 = vmul.f32 %v1716, %v1735
        %v1737 = vadd.f32 %v1736, 1.0
        %v1738 = vrcp.pop %v1737
        %v1739 = vmul.f32 %v1737, %v1738
        %v1740 = vsub.f32 1.0, %v1739
        %v1741 = vmul.f32 %v1738, %v1740
        %v1742 = vadd.f32 %v1738, %v1741
        %vm1743 = vweird.f32 %v1737
        %vm1744 = vweird.f32 %v1738
        %vm1745 = vmor %vm1743, %vm1744
        %v1746 = vsel %vm1745, %v1738, %v1742
        %v1747 = vand.u32 2147483647, %v1737
        %vm1748 = vcmp.eq.f32.partialorder %v1747, 8.507059e+37
        %v1749 = vand.u32 %v1737, 2147483648
        %v1750 = vor.u32 1.1754944e-38, %v1749
        %v1751 = vsel %vm1748, %v1750, %v1746
        %v1752 = vmul.f32 %v1727, %v1751
        %v1753 = vmin.f32 %v1752, 1.0
        %v1754 = vmax.f32 %v1753, -1.0
        %v1755 = vmul.f32 %v833, %v833
        %v1756 = vmin.f32 16.0, %v1755
        %v1757 = vmul.f32 %v1756, 2.1237322e-06
        %v1758 = vadd.f32 %v1757, 0.00028619796
        %v1759 = vmul.f32 %v1756, %v1758
        %v1760 = vadd.f32 %v1759, 0.0036580483
        %v1761 = vmul.f32 %v1756, %v1760
        %v1762 = vadd.f32 %v1761, 0.05243302
        %v1763 = vmul.f32 %v1756, %v1762
        %v1764 = vadd.f32 %v1763, 0.18741608
        %v1765 = vmul.f32 %v1756, %v1764
        %v1766 = vadd.f32 %v1765, 1.1283791
        %v1767 = vmul.f32 %v833, %v1766
        %v1768 = vmul.f32 %v1756, 3.8918573e-05
        %v1769 = vadd.f32 %v1768, 0.001143296
        %v1770 = vmul.f32 %v1756, %v1769
        %v1771 = vadd.f32 %v1770, 0.014752088
        %v1772 = vmul.f32 %v1756, %v1771
        %v1773 = vadd.f32 %v1772, 0.112945676
        %v1774 = vmul.f32 %v1756, %v1773
        %v1775 = vadd.f32 %v1774, 0.4994258
        %v1776 = vmul.f32 %v1756, %v1775
        %v1777 = vadd.f32 %v1776, 1.0
        %v1778 = vrcp.pop %v1777
        %v1779 = vmul.f32 %v1777, %v1778
        %v1780 = vsub.f32 1.0, %v1779
        %v1781 = vmul.f32 %v1778, %v1780
        %v1782 = vadd.f32 %v1778, %v1781
        %vm1783 = vweird.f32 %v1777
        %vm1784 = vweird.f32 %v1778
        %vm1785 = vmor %vm1783, %vm1784
        %v1786 = vsel %vm1785, %v1778, %v1782
        %v1787 = vand.u32 2147483647, %v1777
        %vm1788 = vcmp.eq.f32.partialorder %v1787, 8.507059e+37
        %v1789 = vand.u32 %v1777, 2147483648
        %v1790 = vor.u32 1.1754944e-38, %v1789
        %v1791 = vsel %vm1788, %v1790, %v1786
        %v1792 = vmul.f32 %v1767, %v1791
        %v1793 = vmin.f32 %v1792, 1.0
        %v1794 = vmax.f32 %v1793, -1.0
        %v1795 = vmul.f32 %v834, %v834
        %v1796 = vmin.f32 16.0, %v1795
        %v1797 = vmul.f32 %v1796, 2.1237322e-06
        %v1798 = vadd.f32 %v1797, 0.00028619796
        %v1799 = vmul.f32 %v1796, %v1798
        %v1800 = vadd.f32 %v1799, 0.0036580483
        %v1801 = vmul.f32 %v1796, %v1800
        %v1802 = vadd.f32 %v1801, 0.05243302
        %v1803 = vmul.f32 %v1796, %v1802
        %v1804 = vadd.f32 %v1803, 0.18741608
        %v1805 = vmul.f32 %v1796, %v1804
        %v1806 = vadd.f32 %v1805, 1.1283791
        %v1807 = vmul.f32 %v834, %v1806
        %v1808 = vmul.f32 %v1796, 3.8918573e-05
        %v1809 = vadd.f32 %v1808, 0.001143296
        %v1810 = vmul.f32 %v1796, %v1809
        %v1811 = vadd.f32 %v1810, 0.014752088
        %v1812 = vmul.f32 %v1796, %v1811
        %v1813 = vadd.f32 %v1812, 0.112945676
        %v1814 = vmul.f32 %v1796, %v1813
        %v1815 = vadd.f32 %v1814, 0.4994258
        %v1816 = vmul.f32 %v1796, %v1815
        %v1817 = vadd.f32 %v1816, 1.0
        %v1818 = vrcp.pop %v1817
        %v1819 = vmul.f32 %v1817, %v1818
        %v1820 = vsub.f32 1.0, %v1819
        %v1821 = vmul.f32 %v1818, %v1820
        %v1822 = vadd.f32 %v1818, %v1821
        %vm1823 = vweird.f32 %v1817
        %vm1824 = vweird.f32 %v1818
        %vm1825 = vmor %vm1823, %vm1824
        %v1826 = vsel %vm1825, %v1818, %v1822
        %v1827 = vand.u32 2147483647, %v1817
        %vm1828 = vcmp.eq.f32.partialorder %v1827, 8.507059e+37
        %v1829 = vand.u32 %v1817, 2147483648
        %v1830 = vor.u32 1.1754944e-38, %v1829
        %v1831 = vsel %vm1828, %v1830, %v1826
        %v1832 = vmul.f32 %v1807, %v1831
        %v1833 = vmin.f32 %v1832, 1.0
        %v1834 = vmax.f32 %v1833, -1.0
        %v1835 = vmul.f32 %v835, %v835
        %v1836 = vmin.f32 16.0, %v1835
        %v1837 = vmul.f32 %v1836, 2.1237322e-06
        %v1838 = vadd.f32 %v1837, 0.00028619796
        %v1839 = vmul.f32 %v1836, %v1838
        %v1840 = vadd.f32 %v1839, 0.0036580483
        %v1841 = vmul.f32 %v1836, %v1840
        %v1842 = vadd.f32 %v1841, 0.05243302
        %v1843 = vmul.f32 %v1836, %v1842
        %v1844 = vadd.f32 %v1843, 0.18741608
        %v1845 = vmul.f32 %v1836, %v1844
        %v1846 = vadd.f32 %v1845, 1.1283791
        %v1847 = vmul.f32 %v835, %v1846
        %v1848 = vmul.f32 %v1836, 3.8918573e-05
        %v1849 = vadd.f32 %v1848, 0.001143296
        %v1850 = vmul.f32 %v1836, %v1849
        %v1851 = vadd.f32 %v1850, 0.014752088
        %v1852 = vmul.f32 %v1836, %v1851
        %v1853 = vadd.f32 %v1852, 0.112945676
        %v1854 = vmul.f32 %v1836, %v1853
        %v1855 = vadd.f32 %v1854, 0.4994258
        %v1856 = vmul.f32 %v1836, %v1855
        %v1857 = vadd.f32 %v1856, 1.0
        %v1858 = vrcp.pop %v1857
        %v1859 = vmul.f32 %v1857, %v1858
        %v1860 = vsub.f32 1.0, %v1859
        %v1861 = vmul.f32 %v1858, %v1860
        %v1862 = vadd.f32 %v1858, %v1861
        %vm1863 = vweird.f32 %v1857
        %vm1864 = vweird.f32 %v1858
        %vm1865 = vmor %vm1863, %vm1864
        %v1866 = vsel %vm1865, %v1858, %v1862
        %v1867 = vand.u32 2147483647, %v1857
        %vm1868 = vcmp.eq.f32.partialorder %v1867, 8.507059e+37
        %v1869 = vand.u32 %v1857, 2147483648
        %v1870 = vor.u32 1.1754944e-38, %v1869
        %v1871 = vsel %vm1868, %v1870, %v1866
        %v1872 = vmul.f32 %v1847, %v1871
        %v1873 = vmin.f32 %v1872, 1.0
        %v1874 = vmax.f32 %v1873, -1.0
        %v1875 = vmul.f32 %v836, %v836
        %v1876 = vmin.f32 16.0, %v1875
        %v1877 = vmul.f32 %v1876, 2.1237322e-06
        %v1878 = vadd.f32 %v1877, 0.00028619796
        %v1879 = vmul.f32 %v1876, %v1878
        %v1880 = vadd.f32 %v1879, 0.0036580483
        %v1881 = vmul.f32 %v1876, %v1880
        %v1882 = vadd.f32 %v1881, 0.05243302
        %v1883 = vmul.f32 %v1876, %v1882
        %v1884 = vadd.f32 %v1883, 0.18741608
        %v1885 = vmul.f32 %v1876, %v1884
        %v1886 = vadd.f32 %v1885, 1.1283791
        %v1887 = vmul.f32 %v836, %v1886
        %v1888 = vmul.f32 %v1876, 3.8918573e-05
        %v1889 = vadd.f32 %v1888, 0.001143296
        %v1890 = vmul.f32 %v1876, %v1889
        %v1891 = vadd.f32 %v1890, 0.014752088
        %v1892 = vmul.f32 %v1876, %v1891
        %v1893 = vadd.f32 %v1892, 0.112945676
        %v1894 = vmul.f32 %v1876, %v1893
        %v1895 = vadd.f32 %v1894, 0.4994258
        %v1896 = vmul.f32 %v1876, %v1895
        %v1897 = vadd.f32 %v1896, 1.0
        %v1898 = vrcp.pop %v1897
        %v1899 = vmul.f32 %v1897, %v1898
        %v1900 = vsub.f32 1.0, %v1899
        %v1901 = vmul.f32 %v1898, %v1900
        %v1902 = vadd.f32 %v1898, %v1901
        %vm1903 = vweird.f32 %v1897
        %vm1904 = vweird.f32 %v1898
        %vm1905 = vmor %vm1903, %vm1904
        %v1906 = vsel %vm1905, %v1898, %v1902
        %v1907 = vand.u32 2147483647, %v1897
        %vm1908 = vcmp.eq.f32.partialorder %v1907, 8.507059e+37
        %v1909 = vand.u32 %v1897, 2147483648
        %v1910 = vor.u32 1.1754944e-38, %v1909
        %v1911 = vsel %vm1908, %v1910, %v1906
        %v1912 = vmul.f32 %v1887, %v1911
        %v1913 = vmin.f32 %v1912, 1.0
        %v1914 = vmax.f32 %v1913, -1.0
        %v1915 = vmul.f32 %v837, %v837
        %v1916 = vmin.f32 16.0, %v1915
        %v1917 = vmul.f32 %v1916, 2.1237322e-06
        %v1918 = vadd.f32 %v1917, 0.00028619796
        %v1919 = vmul.f32 %v1916, %v1918
        %v1920 = vadd.f32 %v1919, 0.0036580483
        %v1921 = vmul.f32 %v1916, %v1920
        %v1922 = vadd.f32 %v1921, 0.05243302
        %v1923 = vmul.f32 %v1916, %v1922
        %v1924 = vadd.f32 %v1923, 0.18741608
        %v1925 = vmul.f32 %v1916, %v1924
        %v1926 = vadd.f32 %v1925, 1.1283791
        %v1927 = vmul.f32 %v837, %v1926
        %v1928 = vmul.f32 %v1916, 3.8918573e-05
        %v1929 = vadd.f32 %v1928, 0.001143296
        %v1930 = vmul.f32 %v1916, %v1929
        %v1931 = vadd.f32 %v1930, 0.014752088
        %v1932 = vmul.f32 %v1916, %v1931
        %v1933 = vadd.f32 %v1932, 0.112945676
        %v1934 = vmul.f32 %v1916, %v1933
        %v1935 = vadd.f32 %v1934, 0.4994258
        %v1936 = vmul.f32 %v1916, %v1935
        %v1937 = vadd.f32 %v1936, 1.0
        %v1938 = vrcp.pop %v1937
        %v1939 = vmul.f32 %v1937, %v1938
        %v1940 = vsub.f32 1.0, %v1939
        %v1941 = vmul.f32 %v1938, %v1940
        %v1942 = vadd.f32 %v1938, %v1941
        %vm1943 = vweird.f32 %v1937
        %vm1944 = vweird.f32 %v1938
        %vm1945 = vmor %vm1943, %vm1944
        %v1946 = vsel %vm1945, %v1938, %v1942
        %v1947 = vand.u32 2147483647, %v1937
        %vm1948 = vcmp.eq.f32.partialorder %v1947, 8.507059e+37
        %v1949 = vand.u32 %v1937, 2147483648
        %v1950 = vor.u32 1.1754944e-38, %v1949
        %v1951 = vsel %vm1948, %v1950, %v1946
        %v1952 = vmul.f32 %v1927, %v1951
        %v1953 = vmin.f32 %v1952, 1.0
        %v1954 = vmax.f32 %v1953, -1.0
        %v1955 = vmul.f32 %v838, %v838
        %v1956 = vmin.f32 16.0, %v1955
        %v1957 = vmul.f32 %v1956, 2.1237322e-06
        %v1958 = vadd.f32 %v1957, 0.00028619796
        %v1959 = vmul.f32 %v1956, %v1958
        %v1960 = vadd.f32 %v1959, 0.0036580483
        %v1961 = vmul.f32 %v1956, %v1960
        %v1962 = vadd.f32 %v1961, 0.05243302
        %v1963 = vmul.f32 %v1956, %v1962
        %v1964 = vadd.f32 %v1963, 0.18741608
        %v1965 = vmul.f32 %v1956, %v1964
        %v1966 = vadd.f32 %v1965, 1.1283791
        %v1967 = vmul.f32 %v838, %v1966
        %v1968 = vmul.f32 %v1956, 3.8918573e-05
        %v1969 = vadd.f32 %v1968, 0.001143296
        %v1970 = vmul.f32 %v1956, %v1969
        %v1971 = vadd.f32 %v1970, 0.014752088
        %v1972 = vmul.f32 %v1956, %v1971
        %v1973 = vadd.f32 %v1972, 0.112945676
        %v1974 = vmul.f32 %v1956, %v1973
        %v1975 = vadd.f32 %v1974, 0.4994258
        %v1976 = vmul.f32 %v1956, %v1975
        %v1977 = vadd.f32 %v1976, 1.0
        %v1978 = vrcp.pop %v1977
        %v1979 = vmul.f32 %v1977, %v1978
        %v1980 = vsub.f32 1.0, %v1979
        %v1981 = vmul.f32 %v1978, %v1980
        %v1982 = vadd.f32 %v1978, %v1981
        %vm1983 = vweird.f32 %v1977
        %vm1984 = vweird.f32 %v1978
        %vm1985 = vmor %vm1983, %vm1984
        %v1986 = vsel %vm1985, %v1978, %v1982
        %v1987 = vand.u32 2147483647, %v1977
        %vm1988 = vcmp.eq.f32.partialorder %v1987, 8.507059e+37
        %v1989 = vand.u32 %v1977, 2147483648
        %v1990 = vor.u32 1.1754944e-38, %v1989
        %v1991 = vsel %vm1988, %v1990, %v1986
        %v1992 = vmul.f32 %v1967, %v1991
        %v1993 = vmin.f32 %v1992, 1.0
        %v1994 = vmax.f32 %v1993, -1.0
        %v1995 = vmul.f32 %v839, %v839
        %v1996 = vmin.f32 16.0, %v1995
        %v1997 = vmul.f32 %v1996, 2.1237322e-06
        %v1998 = vadd.f32 %v1997, 0.00028619796
        %v1999 = vmul.f32 %v1996, %v1998
        %v2000 = vadd.f32 %v1999, 0.0036580483
        %v2001 = vmul.f32 %v1996, %v2000
        %v2002 = vadd.f32 %v2001, 0.05243302
        %v2003 = vmul.f32 %v1996, %v2002
        %v2004 = vadd.f32 %v2003, 0.18741608
        %v2005 = vmul.f32 %v1996, %v2004
        %v2006 = vadd.f32 %v2005, 1.1283791
        %v2007 = vmul.f32 %v839, %v2006
        %v2008 = vmul.f32 %v1996, 3.8918573e-05
        %v2009 = vadd.f32 %v2008, 0.001143296
        %v2010 = vmul.f32 %v1996, %v2009
        %v2011 = vadd.f32 %v2010, 0.014752088
        %v2012 = vmul.f32 %v1996, %v2011
        %v2013 = vadd.f32 %v2012, 0.112945676
        %v2014 = vmul.f32 %v1996, %v2013
        %v2015 = vadd.f32 %v2014, 0.4994258
        %v2016 = vmul.f32 %v1996, %v2015
        %v2017 = vadd.f32 %v2016, 1.0
        %v2018 = vrcp.pop %v2017
        %v2019 = vmul.f32 %v2017, %v2018
        %v2020 = vsub.f32 1.0, %v2019
        %v2021 = vmul.f32 %v2018, %v2020
        %v2022 = vadd.f32 %v2018, %v2021
        %vm2023 = vweird.f32 %v2017
        %vm2024 = vweird.f32 %v2018
        %vm2025 = vmor %vm2023, %vm2024
        %v2026 = vsel %vm2025, %v2018, %v2022
        %v2027 = vand.u32 2147483647, %v2017
        %vm2028 = vcmp.eq.f32.partialorder %v2027, 8.507059e+37
        %v2029 = vand.u32 %v2017, 2147483648
        %v2030 = vor.u32 1.1754944e-38, %v2029
        %v2031 = vsel %vm2028, %v2030, %v2026
        %v2032 = vmul.f32 %v2007, %v2031
        %v2033 = vmin.f32 %v2032, 1.0
        %v2034 = vmax.f32 %v2033, -1.0
        %v2035 = vmul.f32 %v840, %v840
        %v2036 = vmin.f32 16.0, %v2035
        %v2037 = vmul.f32 %v2036, 2.1237322e-06
        %v2038 = vadd.f32 %v2037, 0.00028619796
        %v2039 = vmul.f32 %v2036, %v2038
        %v2040 = vadd.f32 %v2039, 0.0036580483
        %v2041 = vmul.f32 %v2036, %v2040
        %v2042 = vadd.f32 %v2041, 0.05243302
        %v2043 = vmul.f32 %v2036, %v2042
        %v2044 = vadd.f32 %v2043, 0.18741608
        %v2045 = vmul.f32 %v2036, %v2044
        %v2046 = vadd.f32 %v2045, 1.1283791
        %v2047 = vmul.f32 %v840, %v2046
        %v2048 = vmul.f32 %v2036, 3.8918573e-05
        %v2049 = vadd.f32 %v2048, 0.001143296
        %v2050 = vmul.f32 %v2036, %v2049
        %v2051 = vadd.f32 %v2050, 0.014752088
        %v2052 = vmul.f32 %v2036, %v2051
        %v2053 = vadd.f32 %v2052, 0.112945676
        %v2054 = vmul.f32 %v2036, %v2053
        %v2055 = vadd.f32 %v2054, 0.4994258
        %v2056 = vmul.f32 %v2036, %v2055
        %v2057 = vadd.f32 %v2056, 1.0
        %v2058 = vrcp.pop %v2057
        %v2059 = vmul.f32 %v2057, %v2058
        %v2060 = vsub.f32 1.0, %v2059
        %v2061 = vmul.f32 %v2058, %v2060
        %v2062 = vadd.f32 %v2058, %v2061
        %vm2063 = vweird.f32 %v2057
        %vm2064 = vweird.f32 %v2058
        %vm2065 = vmor %vm2063, %vm2064
        %v2066 = vsel %vm2065, %v2058, %v2062
        %v2067 = vand.u32 2147483647, %v2057
        %vm2068 = vcmp.eq.f32.partialorder %v2067, 8.507059e+37
        %v2069 = vand.u32 %v2057, 2147483648
        %v2070 = vor.u32 1.1754944e-38, %v2069
        %v2071 = vsel %vm2068, %v2070, %v2066
        %v2072 = vmul.f32 %v2047, %v2071
        %v2073 = vmin.f32 %v2072, 1.0
        %v2074 = vmax.f32 %v2073, -1.0
        %v2075 = vmul.f32 %v841, %v841
        %v2076 = vmin.f32 16.0, %v2075
        %v2077 = vmul.f32 %v2076, 2.1237322e-06
        %v2078 = vadd.f32 %v2077, 0.00028619796
        %v2079 = vmul.f32 %v2076, %v2078
        %v2080 = vadd.f32 %v2079, 0.0036580483
        %v2081 = vmul.f32 %v2076, %v2080
        %v2082 = vadd.f32 %v2081, 0.05243302
        %v2083 = vmul.f32 %v2076, %v2082
        %v2084 = vadd.f32 %v2083, 0.18741608
        %v2085 = vmul.f32 %v2076, %v2084
        %v2086 = vadd.f32 %v2085, 1.1283791
        %v2087 = vmul.f32 %v841, %v2086
        %v2088 = vmul.f32 %v2076, 3.8918573e-05
        %v2089 = vadd.f32 %v2088, 0.001143296
        %v2090 = vmul.f32 %v2076, %v2089
        %v2091 = vadd.f32 %v2090, 0.014752088
        %v2092 = vmul.f32 %v2076, %v2091
        %v2093 = vadd.f32 %v2092, 0.112945676
        %v2094 = vmul.f32 %v2076, %v2093
        %v2095 = vadd.f32 %v2094, 0.4994258
        %v2096 = vmul.f32 %v2076, %v2095
        %v2097 = vadd.f32 %v2096, 1.0
        %v2098 = vrcp.pop %v2097
        %v2099 = vmul.f32 %v2097, %v2098
        %v2100 = vsub.f32 1.0, %v2099
        %v2101 = vmul.f32 %v2098, %v2100
        %v2102 = vadd.f32 %v2098, %v2101
        %vm2103 = vweird.f32 %v2097
        %vm2104 = vweird.f32 %v2098
        %vm2105 = vmor %vm2103, %vm2104
        %v2106 = vsel %vm2105, %v2098, %v2102
        %v2107 = vand.u32 2147483647, %v2097
        %vm2108 = vcmp.eq.f32.partialorder %v2107, 8.507059e+37
        %v2109 = vand.u32 %v2097, 2147483648
        %v2110 = vor.u32 1.1754944e-38, %v2109
        %v2111 = vsel %vm2108, %v2110, %v2106
        %v2112 = vmul.f32 %v2087, %v2111
        %v2113 = vmin.f32 %v2112, 1.0
        %v2114 = vmax.f32 %v2113, -1.0
        %v2115 = vmul.f32 %v842, %v842
        %v2116 = vmin.f32 16.0, %v2115
        %v2117 = vmul.f32 %v2116, 2.1237322e-06
        %v2118 = vadd.f32 %v2117, 0.00028619796
        %v2119 = vmul.f32 %v2116, %v2118
        %v2120 = vadd.f32 %v2119, 0.0036580483
        %v2121 = vmul.f32 %v2116, %v2120
        %v2122 = vadd.f32 %v2121, 0.05243302
        %v2123 = vmul.f32 %v2116, %v2122
        %v2124 = vadd.f32 %v2123, 0.18741608
        %v2125 = vmul.f32 %v2116, %v2124
        %v2126 = vadd.f32 %v2125, 1.1283791
        %v2127 = vmul.f32 %v842, %v2126
        %v2128 = vmul.f32 %v2116, 3.8918573e-05
        %v2129 = vadd.f32 %v2128, 0.001143296
        %v2130 = vmul.f32 %v2116, %v2129
        %v2131 = vadd.f32 %v2130, 0.014752088
        %v2132 = vmul.f32 %v2116, %v2131
        %v2133 = vadd.f32 %v2132, 0.112945676
        %v2134 = vmul.f32 %v2116, %v2133
        %v2135 = vadd.f32 %v2134, 0.4994258
        %v2136 = vmul.f32 %v2116, %v2135
        %v2137 = vadd.f32 %v2136, 1.0
        %v2138 = vrcp.pop %v2137
        %v2139 = vmul.f32 %v2137, %v2138
        %v2140 = vsub.f32 1.0, %v2139
        %v2141 = vmul.f32 %v2138, %v2140
        %v2142 = vadd.f32 %v2138, %v2141
        %vm2143 = vweird.f32 %v2137
        %vm2144 = vweird.f32 %v2138
        %vm2145 = vmor %vm2143, %vm2144
        %v2146 = vsel %vm2145, %v2138, %v2142
        %v2147 = vand.u32 2147483647, %v2137
        %vm2148 = vcmp.eq.f32.partialorder %v2147, 8.507059e+37
        %v2149 = vand.u32 %v2137, 2147483648
        %v2150 = vor.u32 1.1754944e-38, %v2149
        %v2151 = vsel %vm2148, %v2150, %v2146
        %v2152 = vmul.f32 %v2127, %v2151
        %v2153 = vmin.f32 %v2152, 1.0
        %v2154 = vmax.f32 %v2153, -1.0
        %v2155 = vmul.f32 %v843, %v843
        %v2156 = vmin.f32 16.0, %v2155
        %v2157 = vmul.f32 %v2156, 2.1237322e-06
        %v2158 = vadd.f32 %v2157, 0.00028619796
        %v2159 = vmul.f32 %v2156, %v2158
        %v2160 = vadd.f32 %v2159, 0.0036580483
        %v2161 = vmul.f32 %v2156, %v2160
        %v2162 = vadd.f32 %v2161, 0.05243302
        %v2163 = vmul.f32 %v2156, %v2162
        %v2164 = vadd.f32 %v2163, 0.18741608
        %v2165 = vmul.f32 %v2156, %v2164
        %v2166 = vadd.f32 %v2165, 1.1283791
        %v2167 = vmul.f32 %v843, %v2166
        %v2168 = vmul.f32 %v2156, 3.8918573e-05
        %v2169 = vadd.f32 %v2168, 0.001143296
        %v2170 = vmul.f32 %v2156, %v2169
        %v2171 = vadd.f32 %v2170, 0.014752088
        %v2172 = vmul.f32 %v2156, %v2171
        %v2173 = vadd.f32 %v2172, 0.112945676
        %v2174 = vmul.f32 %v2156, %v2173
        %v2175 = vadd.f32 %v2174, 0.4994258
        %v2176 = vmul.f32 %v2156, %v2175
        %v2177 = vadd.f32 %v2176, 1.0
        %v2178 = vrcp.pop %v2177
        %v2179 = vmul.f32 %v2177, %v2178
        %v2180 = vsub.f32 1.0, %v2179
        %v2181 = vmul.f32 %v2178, %v2180
        %v2182 = vadd.f32 %v2178, %v2181
        %vm2183 = vweird.f32 %v2177
        %vm2184 = vweird.f32 %v2178
        %vm2185 = vmor %vm2183, %vm2184
        %v2186 = vsel %vm2185, %v2178, %v2182
        %v2187 = vand.u32 2147483647, %v2177
        %vm2188 = vcmp.eq.f32.partialorder %v2187, 8.507059e+37
        %v2189 = vand.u32 %v2177, 2147483648
        %v2190 = vor.u32 1.1754944e-38, %v2189
        %v2191 = vsel %vm2188, %v2190, %v2186
        %v2192 = vmul.f32 %v2167, %v2191
        %v2193 = vmin.f32 %v2192, 1.0
        %v2194 = vmax.f32 %v2193, -1.0
        %v2195 = vmul.f32 %v844, %v844
        %v2196 = vmin.f32 16.0, %v2195
        %v2197 = vmul.f32 %v2196, 2.1237322e-06
        %v2198 = vadd.f32 %v2197, 0.00028619796
        %v2199 = vmul.f32 %v2196, %v2198
        %v2200 = vadd.f32 %v2199, 0.0036580483
        %v2201 = vmul.f32 %v2196, %v2200
        %v2202 = vadd.f32 %v2201, 0.05243302
        %v2203 = vmul.f32 %v2196, %v2202
        %v2204 = vadd.f32 %v2203, 0.18741608
        %v2205 = vmul.f32 %v2196, %v2204
        %v2206 = vadd.f32 %v2205, 1.1283791
        %v2207 = vmul.f32 %v844, %v2206
        %v2208 = vmul.f32 %v2196, 3.8918573e-05
        %v2209 = vadd.f32 %v2208, 0.001143296
        %v2210 = vmul.f32 %v2196, %v2209
        %v2211 = vadd.f32 %v2210, 0.014752088
        %v2212 = vmul.f32 %v2196, %v2211
        %v2213 = vadd.f32 %v2212, 0.112945676
        %v2214 = vmul.f32 %v2196, %v2213
        %v2215 = vadd.f32 %v2214, 0.4994258
        %v2216 = vmul.f32 %v2196, %v2215
        %v2217 = vadd.f32 %v2216, 1.0
        %v2218 = vrcp.pop %v2217
        %v2219 = vmul.f32 %v2217, %v2218
        %v2220 = vsub.f32 1.0, %v2219
        %v2221 = vmul.f32 %v2218, %v2220
        %v2222 = vadd.f32 %v2218, %v2221
        %vm2223 = vweird.f32 %v2217
        %vm2224 = vweird.f32 %v2218
        %vm2225 = vmor %vm2223, %vm2224
        %v2226 = vsel %vm2225, %v2218, %v2222
        %v2227 = vand.u32 2147483647, %v2217
        %vm2228 = vcmp.eq.f32.partialorder %v2227, 8.507059e+37
        %v2229 = vand.u32 %v2217, 2147483648
        %v2230 = vor.u32 1.1754944e-38, %v2229
        %v2231 = vsel %vm2228, %v2230, %v2226
        %v2232 = vmul.f32 %v2207, %v2231
        %v2233 = vmin.f32 %v2232, 1.0
        %v2234 = vmax.f32 %v2233, -1.0
        %v2235 = vmul.f32 %v845, %v845
        %v2236 = vmin.f32 16.0, %v2235
        %v2237 = vmul.f32 %v2236, 2.1237322e-06
        %v2238 = vadd.f32 %v2237, 0.00028619796
        %v2239 = vmul.f32 %v2236, %v2238
        %v2240 = vadd.f32 %v2239, 0.0036580483
        %v2241 = vmul.f32 %v2236, %v2240
        %v2242 = vadd.f32 %v2241, 0.05243302
        %v2243 = vmul.f32 %v2236, %v2242
        %v2244 = vadd.f32 %v2243, 0.18741608
        %v2245 = vmul.f32 %v2236, %v2244
        %v2246 = vadd.f32 %v2245, 1.1283791
        %v2247 = vmul.f32 %v845, %v2246
        %v2248 = vmul.f32 %v2236, 3.8918573e-05
        %v2249 = vadd.f32 %v2248, 0.001143296
        %v2250 = vmul.f32 %v2236, %v2249
        %v2251 = vadd.f32 %v2250, 0.014752088
        %v2252 = vmul.f32 %v2236, %v2251
        %v2253 = vadd.f32 %v2252, 0.112945676
        %v2254 = vmul.f32 %v2236, %v2253
        %v2255 = vadd.f32 %v2254, 0.4994258
        %v2256 = vmul.f32 %v2236, %v2255
        %v2257 = vadd.f32 %v2256, 1.0
        %v2258 = vrcp.pop %v2257
        %v2259 = vmul.f32 %v2257, %v2258
        %v2260 = vsub.f32 1.0, %v2259
        %v2261 = vmul.f32 %v2258, %v2260
        %v2262 = vadd.f32 %v2258, %v2261
        %vm2263 = vweird.f32 %v2257
        %vm2264 = vweird.f32 %v2258
        %vm2265 = vmor %vm2263, %vm2264
        %v2266 = vsel %vm2265, %v2258, %v2262
        %v2267 = vand.u32 2147483647, %v2257
        %vm2268 = vcmp.eq.f32.partialorder %v2267, 8.507059e+37
        %v2269 = vand.u32 %v2257, 2147483648
        %v2270 = vor.u32 1.1754944e-38, %v2269
        %v2271 = vsel %vm2268, %v2270, %v2266
        %v2272 = vmul.f32 %v2247, %v2271
        %v2273 = vmin.f32 %v2272, 1.0
        %v2274 = vmax.f32 %v2273, -1.0
        %v2275 = vmul.f32 %v846, %v846
        %v2276 = vmin.f32 16.0, %v2275
        %v2277 = vmul.f32 %v2276, 2.1237322e-06
        %v2278 = vadd.f32 %v2277, 0.00028619796
        %v2279 = vmul.f32 %v2276, %v2278
        %v2280 = vadd.f32 %v2279, 0.0036580483
        %v2281 = vmul.f32 %v2276, %v2280
        %v2282 = vadd.f32 %v2281, 0.05243302
        %v2283 = vmul.f32 %v2276, %v2282
        %v2284 = vadd.f32 %v2283, 0.18741608
        %v2285 = vmul.f32 %v2276, %v2284
        %v2286 = vadd.f32 %v2285, 1.1283791
        %v2287 = vmul.f32 %v846, %v2286
        %v2288 = vmul.f32 %v2276, 3.8918573e-05
        %v2289 = vadd.f32 %v2288, 0.001143296
        %v2290 = vmul.f32 %v2276, %v2289
        %v2291 = vadd.f32 %v2290, 0.014752088
        %v2292 = vmul.f32 %v2276, %v2291
        %v2293 = vadd.f32 %v2292, 0.112945676
        %v2294 = vmul.f32 %v2276, %v2293
        %v2295 = vadd.f32 %v2294, 0.4994258
        %v2296 = vmul.f32 %v2276, %v2295
        %v2297 = vadd.f32 %v2296, 1.0
        %v2298 = vrcp.pop %v2297
        %v2299 = vmul.f32 %v2297, %v2298
        %v2300 = vsub.f32 1.0, %v2299
        %v2301 = vmul.f32 %v2298, %v2300
        %v2302 = vadd.f32 %v2298, %v2301
        %vm2303 = vweird.f32 %v2297
        %vm2304 = vweird.f32 %v2298
        %vm2305 = vmor %vm2303, %vm2304
        %v2306 = vsel %vm2305, %v2298, %v2302
        %v2307 = vand.u32 2147483647, %v2297
        %vm2308 = vcmp.eq.f32.partialorder %v2307, 8.507059e+37
        %v2309 = vand.u32 %v2297, 2147483648
        %v2310 = vor.u32 1.1754944e-38, %v2309
        %v2311 = vsel %vm2308, %v2310, %v2306
        %v2312 = vmul.f32 %v2287, %v2311
        %v2313 = vmin.f32 %v2312, 1.0
        %v2314 = vmax.f32 %v2313, -1.0
        %v2315 = vmul.f32 %v847, %v847
        %v2316 = vmin.f32 16.0, %v2315
        %v2317 = vmul.f32 %v2316, 2.1237322e-06
        %v2318 = vadd.f32 %v2317, 0.00028619796
        %v2319 = vmul.f32 %v2316, %v2318
        %v2320 = vadd.f32 %v2319, 0.0036580483
        %v2321 = vmul.f32 %v2316, %v2320
        %v2322 = vadd.f32 %v2321, 0.05243302
        %v2323 = vmul.f32 %v2316, %v2322
        %v2324 = vadd.f32 %v2323, 0.18741608
        %v2325 = vmul.f32 %v2316, %v2324
        %v2326 = vadd.f32 %v2325, 1.1283791
        %v2327 = vmul.f32 %v847, %v2326
        %v2328 = vmul.f32 %v2316, 3.8918573e-05
        %v2329 = vadd.f32 %v2328, 0.001143296
        %v2330 = vmul.f32 %v2316, %v2329
        %v2331 = vadd.f32 %v2330, 0.014752088
        %v2332 = vmul.f32 %v2316, %v2331
        %v2333 = vadd.f32 %v2332, 0.112945676
        %v2334 = vmul.f32 %v2316, %v2333
        %v2335 = vadd.f32 %v2334, 0.4994258
        %v2336 = vmul.f32 %v2316, %v2335
        %v2337 = vadd.f32 %v2336, 1.0
        %v2338 = vrcp.pop %v2337
        %v2339 = vmul.f32 %v2337, %v2338
        %v2340 = vsub.f32 1.0, %v2339
        %v2341 = vmul.f32 %v2338, %v2340
        %v2342 = vadd.f32 %v2338, %v2341
        %vm2343 = vweird.f32 %v2337
        %vm2344 = vweird.f32 %v2338
        %vm2345 = vmor %vm2343, %vm2344
        %v2346 = vsel %vm2345, %v2338, %v2342
        %v2347 = vand.u32 2147483647, %v2337
        %vm2348 = vcmp.eq.f32.partialorder %v2347, 8.507059e+37
        %v2349 = vand.u32 %v2337, 2147483648
        %v2350 = vor.u32 1.1754944e-38, %v2349
        %v2351 = vsel %vm2348, %v2350, %v2346
        %v2352 = vmul.f32 %v2327, %v2351
        %v2353 = vmin.f32 %v2352, 1.0
        %v2354 = vmax.f32 %v2353, -1.0
        %v2355 = vmul.f32 %v848, %v848
        %v2356 = vmin.f32 16.0, %v2355
        %v2357 = vmul.f32 %v2356, 2.1237322e-06
        %v2358 = vadd.f32 %v2357, 0.00028619796
        %v2359 = vmul.f32 %v2356, %v2358
        %v2360 = vadd.f32 %v2359, 0.0036580483
        %v2361 = vmul.f32 %v2356, %v2360
        %v2362 = vadd.f32 %v2361, 0.05243302
        %v2363 = vmul.f32 %v2356, %v2362
        %v2364 = vadd.f32 %v2363, 0.18741608
        %v2365 = vmul.f32 %v2356, %v2364
        %v2366 = vadd.f32 %v2365, 1.1283791
        %v2367 = vmul.f32 %v848, %v2366
        %v2368 = vmul.f32 %v2356, 3.8918573e-05
        %v2369 = vadd.f32 %v2368, 0.001143296
        %v2370 = vmul.f32 %v2356, %v2369
        %v2371 = vadd.f32 %v2370, 0.014752088
        %v2372 = vmul.f32 %v2356, %v2371
        %v2373 = vadd.f32 %v2372, 0.112945676
        %v2374 = vmul.f32 %v2356, %v2373
        %v2375 = vadd.f32 %v2374, 0.4994258
        %v2376 = vmul.f32 %v2356, %v2375
        %v2377 = vadd.f32 %v2376, 1.0
        %v2378 = vrcp.pop %v2377
        %v2379 = vmul.f32 %v2377, %v2378
        %v2380 = vsub.f32 1.0, %v2379
        %v2381 = vmul.f32 %v2378, %v2380
        %v2382 = vadd.f32 %v2378, %v2381
        %vm2383 = vweird.f32 %v2377
        %vm2384 = vweird.f32 %v2378
        %vm2385 = vmor %vm2383, %vm2384
        %v2386 = vsel %vm2385, %v2378, %v2382
        %v2387 = vand.u32 2147483647, %v2377
        %vm2388 = vcmp.eq.f32.partialorder %v2387, 8.507059e+37
        %v2389 = vand.u32 %v2377, 2147483648
        %v2390 = vor.u32 1.1754944e-38, %v2389
        %v2391 = vsel %vm2388, %v2390, %v2386
        %v2392 = vmul.f32 %v2367, %v2391
        %v2393 = vmin.f32 %v2392, 1.0
        %v2394 = vmax.f32 %v2393, -1.0
        %v2395 = vmul.f32 %v849, %v849
        %v2396 = vmin.f32 16.0, %v2395
        %v2397 = vmul.f32 %v2396, 2.1237322e-06
        %v2398 = vadd.f32 %v2397, 0.00028619796
        %v2399 = vmul.f32 %v2396, %v2398
        %v2400 = vadd.f32 %v2399, 0.0036580483
        %v2401 = vmul.f32 %v2396, %v2400
        %v2402 = vadd.f32 %v2401, 0.05243302
        %v2403 = vmul.f32 %v2396, %v2402
        %v2404 = vadd.f32 %v2403, 0.18741608
        %v2405 = vmul.f32 %v2396, %v2404
        %v2406 = vadd.f32 %v2405, 1.1283791
        %v2407 = vmul.f32 %v849, %v2406
        %v2408 = vmul.f32 %v2396, 3.8918573e-05
        %v2409 = vadd.f32 %v2408, 0.001143296
        %v2410 = vmul.f32 %v2396, %v2409
        %v2411 = vadd.f32 %v2410, 0.014752088
        %v2412 = vmul.f32 %v2396, %v2411
        %v2413 = vadd.f32 %v2412, 0.112945676
        %v2414 = vmul.f32 %v2396, %v2413
        %v2415 = vadd.f32 %v2414, 0.4994258
        %v2416 = vmul.f32 %v2396, %v2415
        %v2417 = vadd.f32 %v2416, 1.0
        %v2418 = vrcp.pop %v2417
        %v2419 = vmul.f32 %v2417, %v2418
        %v2420 = vsub.f32 1.0, %v2419
        %v2421 = vmul.f32 %v2418, %v2420
        %v2422 = vadd.f32 %v2418, %v2421
        %vm2423 = vweird.f32 %v2417
        %vm2424 = vweird.f32 %v2418
        %vm2425 = vmor %vm2423, %vm2424
        %v2426 = vsel %vm2425, %v2418, %v2422
        %v2427 = vand.u32 2147483647, %v2417
        %vm2428 = vcmp.eq.f32.partialorder %v2427, 8.507059e+37
        %v2429 = vand.u32 %v2417, 2147483648
        %v2430 = vor.u32 1.1754944e-38, %v2429
        %v2431 = vsel %vm2428, %v2430, %v2426
        %v2432 = vmul.f32 %v2407, %v2431
        %v2433 = vmin.f32 %v2432, 1.0
        %v2434 = vmax.f32 %v2433, -1.0
        %v2435 = vmul.f32 %v850, %v850
        %v2436 = vmin.f32 16.0, %v2435
        %v2437 = vmul.f32 %v2436, 2.1237322e-06
        %v2438 = vadd.f32 %v2437, 0.00028619796
        %v2439 = vmul.f32 %v2436, %v2438
        %v2440 = vadd.f32 %v2439, 0.0036580483
        %v2441 = vmul.f32 %v2436, %v2440
        %v2442 = vadd.f32 %v2441, 0.05243302
        %v2443 = vmul.f32 %v2436, %v2442
        %v2444 = vadd.f32 %v2443, 0.18741608
        %v2445 = vmul.f32 %v2436, %v2444
        %v2446 = vadd.f32 %v2445, 1.1283791
        %v2447 = vmul.f32 %v850, %v2446
        %v2448 = vmul.f32 %v2436, 3.8918573e-05
        %v2449 = vadd.f32 %v2448, 0.001143296
        %v2450 = vmul.f32 %v2436, %v2449
        %v2451 = vadd.f32 %v2450, 0.014752088
        %v2452 = vmul.f32 %v2436, %v2451
        %v2453 = vadd.f32 %v2452, 0.112945676
        %v2454 = vmul.f32 %v2436, %v2453
        %v2455 = vadd.f32 %v2454, 0.4994258
        %v2456 = vmul.f32 %v2436, %v2455
        %v2457 = vadd.f32 %v2456, 1.0
        %v2458 = vrcp.pop %v2457
        %v2459 = vmul.f32 %v2457, %v2458
        %v2460 = vsub.f32 1.0, %v2459
        %v2461 = vmul.f32 %v2458, %v2460
        %v2462 = vadd.f32 %v2458, %v2461
        %vm2463 = vweird.f32 %v2457
        %vm2464 = vweird.f32 %v2458
        %vm2465 = vmor %vm2463, %vm2464
        %v2466 = vsel %vm2465, %v2458, %v2462
        %v2467 = vand.u32 2147483647, %v2457
        %vm2468 = vcmp.eq.f32.partialorder %v2467, 8.507059e+37
        %v2469 = vand.u32 %v2457, 2147483648
        %v2470 = vor.u32 1.1754944e-38, %v2469
        %v2471 = vsel %vm2468, %v2470, %v2466
        %v2472 = vmul.f32 %v2447, %v2471
        %v2473 = vmin.f32 %v2472, 1.0
        %v2474 = vmax.f32 %v2473, -1.0
        %v2475 = vmul.f32 %v851, %v851
        %v2476 = vmin.f32 16.0, %v2475
        %v2477 = vmul.f32 %v2476, 2.1237322e-06
        %v2478 = vadd.f32 %v2477, 0.00028619796
        %v2479 = vmul.f32 %v2476, %v2478
        %v2480 = vadd.f32 %v2479, 0.0036580483
        %v2481 = vmul.f32 %v2476, %v2480
        %v2482 = vadd.f32 %v2481, 0.05243302
        %v2483 = vmul.f32 %v2476, %v2482
        %v2484 = vadd.f32 %v2483, 0.18741608
        %v2485 = vmul.f32 %v2476, %v2484
        %v2486 = vadd.f32 %v2485, 1.1283791
        %v2487 = vmul.f32 %v851, %v2486
        %v2488 = vmul.f32 %v2476, 3.8918573e-05
        %v2489 = vadd.f32 %v2488, 0.001143296
        %v2490 = vmul.f32 %v2476, %v2489
        %v2491 = vadd.f32 %v2490, 0.014752088
        %v2492 = vmul.f32 %v2476, %v2491
        %v2493 = vadd.f32 %v2492, 0.112945676
        %v2494 = vmul.f32 %v2476, %v2493
        %v2495 = vadd.f32 %v2494, 0.4994258
        %v2496 = vmul.f32 %v2476, %v2495
        %v2497 = vadd.f32 %v2496, 1.0
        %v2498 = vrcp.pop %v2497
        %v2499 = vmul.f32 %v2497, %v2498
        %v2500 = vsub.f32 1.0, %v2499
        %v2501 = vmul.f32 %v2498, %v2500
        %v2502 = vadd.f32 %v2498, %v2501
        %vm2503 = vweird.f32 %v2497
        %vm2504 = vweird.f32 %v2498
        %vm2505 = vmor %vm2503, %vm2504
        %v2506 = vsel %vm2505, %v2498, %v2502
        %v2507 = vand.u32 2147483647, %v2497
        %vm2508 = vcmp.eq.f32.partialorder %v2507, 8.507059e+37
        %v2509 = vand.u32 %v2497, 2147483648
        %v2510 = vor.u32 1.1754944e-38, %v2509
        %v2511 = vsel %vm2508, %v2510, %v2506
        %v2512 = vmul.f32 %v2487, %v2511
        %v2513 = vmin.f32 %v2512, 1.0
        %v2514 = vmax.f32 %v2513, -1.0
        %v2515 = vmul.f32 %v852, %v852
        %v2516 = vmin.f32 16.0, %v2515
        %v2517 = vmul.f32 %v2516, 2.1237322e-06
        %v2518 = vadd.f32 %v2517, 0.00028619796
        %v2519 = vmul.f32 %v2516, %v2518
        %v2520 = vadd.f32 %v2519, 0.0036580483
        %v2521 = vmul.f32 %v2516, %v2520
        %v2522 = vadd.f32 %v2521, 0.05243302
        %v2523 = vmul.f32 %v2516, %v2522
        %v2524 = vadd.f32 %v2523, 0.18741608
        %v2525 = vmul.f32 %v2516, %v2524
        %v2526 = vadd.f32 %v2525, 1.1283791
        %v2527 = vmul.f32 %v852, %v2526
        %v2528 = vmul.f32 %v2516, 3.8918573e-05
        %v2529 = vadd.f32 %v2528, 0.001143296
        %v2530 = vmul.f32 %v2516, %v2529
        %v2531 = vadd.f32 %v2530, 0.014752088
        %v2532 = vmul.f32 %v2516, %v2531
        %v2533 = vadd.f32 %v2532, 0.112945676
        %v2534 = vmul.f32 %v2516, %v2533
        %v2535 = vadd.f32 %v2534, 0.4994258
        %v2536 = vmul.f32 %v2516, %v2535
        %v2537 = vadd.f32 %v2536, 1.0
        %v2538 = vrcp.pop %v2537
        %v2539 = vmul.f32 %v2537, %v2538
        %v2540 = vsub.f32 1.0, %v2539
        %v2541 = vmul.f32 %v2538, %v2540
        %v2542 = vadd.f32 %v2538, %v2541
        %vm2543 = vweird.f32 %v2537
        %vm2544 = vweird.f32 %v2538
        %vm2545 = vmor %vm2543, %vm2544
        %v2546 = vsel %vm2545, %v2538, %v2542
        %v2547 = vand.u32 2147483647, %v2537
        %vm2548 = vcmp.eq.f32.partialorder %v2547, 8.507059e+37
        %v2549 = vand.u32 %v2537, 2147483648
        %v2550 = vor.u32 1.1754944e-38, %v2549
        %v2551 = vsel %vm2548, %v2550, %v2546
        %v2552 = vmul.f32 %v2527, %v2551
        %v2553 = vmin.f32 %v2552, 1.0
        %v2554 = vmax.f32 %v2553, -1.0
        %v2555 = vmul.f32 %v853, %v853
        %v2556 = vmin.f32 16.0, %v2555
        %v2557 = vmul.f32 %v2556, 2.1237322e-06
        %v2558 = vadd.f32 %v2557, 0.00028619796
        %v2559 = vmul.f32 %v2556, %v2558
        %v2560 = vadd.f32 %v2559, 0.0036580483
        %v2561 = vmul.f32 %v2556, %v2560
        %v2562 = vadd.f32 %v2561, 0.05243302
        %v2563 = vmul.f32 %v2556, %v2562
        %v2564 = vadd.f32 %v2563, 0.18741608
        %v2565 = vmul.f32 %v2556, %v2564
        %v2566 = vadd.f32 %v2565, 1.1283791
        %v2567 = vmul.f32 %v853, %v2566
        %v2568 = vmul.f32 %v2556, 3.8918573e-05
        %v2569 = vadd.f32 %v2568, 0.001143296
        %v2570 = vmul.f32 %v2556, %v2569
        %v2571 = vadd.f32 %v2570, 0.014752088
        %v2572 = vmul.f32 %v2556, %v2571
        %v2573 = vadd.f32 %v2572, 0.112945676
        %v2574 = vmul.f32 %v2556, %v2573
        %v2575 = vadd.f32 %v2574, 0.4994258
        %v2576 = vmul.f32 %v2556, %v2575
        %v2577 = vadd.f32 %v2576, 1.0
        %v2578 = vrcp.pop %v2577
        %v2579 = vmul.f32 %v2577, %v2578
        %v2580 = vsub.f32 1.0, %v2579
        %v2581 = vmul.f32 %v2578, %v2580
        %v2582 = vadd.f32 %v2578, %v2581
        %vm2583 = vweird.f32 %v2577
        %vm2584 = vweird.f32 %v2578
        %vm2585 = vmor %vm2583, %vm2584
        %v2586 = vsel %vm2585, %v2578, %v2582
        %v2587 = vand.u32 2147483647, %v2577
        %vm2588 = vcmp.eq.f32.partialorder %v2587, 8.507059e+37
        %v2589 = vand.u32 %v2577, 2147483648
        %v2590 = vor.u32 1.1754944e-38, %v2589
        %v2591 = vsel %vm2588, %v2590, %v2586
        %v2592 = vmul.f32 %v2567, %v2591
        %v2593 = vmin.f32 %v2592, 1.0
        %v2594 = vmax.f32 %v2593, -1.0
        %v2595 = vmul.f32 %v854, %v854
        %v2596 = vmin.f32 16.0, %v2595
        %v2597 = vmul.f32 %v2596, 2.1237322e-06
        %v2598 = vadd.f32 %v2597, 0.00028619796
        %v2599 = vmul.f32 %v2596, %v2598
        %v2600 = vadd.f32 %v2599, 0.0036580483
        %v2601 = vmul.f32 %v2596, %v2600
        %v2602 = vadd.f32 %v2601, 0.05243302
        %v2603 = vmul.f32 %v2596, %v2602
        %v2604 = vadd.f32 %v2603, 0.18741608
        %v2605 = vmul.f32 %v2596, %v2604
        %v2606 = vadd.f32 %v2605, 1.1283791
        %v2607 = vmul.f32 %v854, %v2606
        %v2608 = vmul.f32 %v2596, 3.8918573e-05
        %v2609 = vadd.f32 %v2608, 0.001143296
        %v2610 = vmul.f32 %v2596, %v2609
        %v2611 = vadd.f32 %v2610, 0.014752088
        %v2612 = vmul.f32 %v2596, %v2611
        %v2613 = vadd.f32 %v2612, 0.112945676
        %v2614 = vmul.f32 %v2596, %v2613
        %v2615 = vadd.f32 %v2614, 0.4994258
        %v2616 = vmul.f32 %v2596, %v2615
        %v2617 = vadd.f32 %v2616, 1.0
        %v2618 = vrcp.pop %v2617
        %v2619 = vmul.f32 %v2617, %v2618
        %v2620 = vsub.f32 1.0, %v2619
        %v2621 = vmul.f32 %v2618, %v2620
        %v2622 = vadd.f32 %v2618, %v2621
        %vm2623 = vweird.f32 %v2617
        %vm2624 = vweird.f32 %v2618
        %vm2625 = vmor %vm2623, %vm2624
        %v2626 = vsel %vm2625, %v2618, %v2622
        %v2627 = vand.u32 2147483647, %v2617
        %vm2628 = vcmp.eq.f32.partialorder %v2627, 8.507059e+37
        %v2629 = vand.u32 %v2617, 2147483648
        %v2630 = vor.u32 1.1754944e-38, %v2629
        %v2631 = vsel %vm2628, %v2630, %v2626
        %v2632 = vmul.f32 %v2607, %v2631
        %v2633 = vmin.f32 %v2632, 1.0
        %v2634 = vmax.f32 %v2633, -1.0
        %v2635 = vmul.f32 %v855, %v855
        %v2636 = vmin.f32 16.0, %v2635
        %v2637 = vmul.f32 %v2636, 2.1237322e-06
        %v2638 = vadd.f32 %v2637, 0.00028619796
        %v2639 = vmul.f32 %v2636, %v2638
        %v2640 = vadd.f32 %v2639, 0.0036580483
        %v2641 = vmul.f32 %v2636, %v2640
        %v2642 = vadd.f32 %v2641, 0.05243302
        %v2643 = vmul.f32 %v2636, %v2642
        %v2644 = vadd.f32 %v2643, 0.18741608
        %v2645 = vmul.f32 %v2636, %v2644
        %v2646 = vadd.f32 %v2645, 1.1283791
        %v2647 = vmul.f32 %v855, %v2646
        %v2648 = vmul.f32 %v2636, 3.8918573e-05
        %v2649 = vadd.f32 %v2648, 0.001143296
        %v2650 = vmul.f32 %v2636, %v2649
        %v2651 = vadd.f32 %v2650, 0.014752088
        %v2652 = vmul.f32 %v2636, %v2651
        %v2653 = vadd.f32 %v2652, 0.112945676
        %v2654 = vmul.f32 %v2636, %v2653
        %v2655 = vadd.f32 %v2654, 0.4994258
        %v2656 = vmul.f32 %v2636, %v2655
        %v2657 = vadd.f32 %v2656, 1.0
        %v2658 = vrcp.pop %v2657
        %v2659 = vmul.f32 %v2657, %v2658
        %v2660 = vsub.f32 1.0, %v2659
        %v2661 = vmul.f32 %v2658, %v2660
        %v2662 = vadd.f32 %v2658, %v2661
        %vm2663 = vweird.f32 %v2657
        %vm2664 = vweird.f32 %v2658
        %vm2665 = vmor %vm2663, %vm2664
        %v2666 = vsel %vm2665, %v2658, %v2662
        %v2667 = vand.u32 2147483647, %v2657
        %vm2668 = vcmp.eq.f32.partialorder %v2667, 8.507059e+37
        %v2669 = vand.u32 %v2657, 2147483648
        %v2670 = vor.u32 1.1754944e-38, %v2669
        %v2671 = vsel %vm2668, %v2670, %v2666
        %v2672 = vmul.f32 %v2647, %v2671
        %v2673 = vmin.f32 %v2672, 1.0
        %v2674 = vmax.f32 %v2673, -1.0
        %v2675 = vmul.f32 %v856, %v856
        %v2676 = vmin.f32 16.0, %v2675
        %v2677 = vmul.f32 %v2676, 2.1237322e-06
        %v2678 = vadd.f32 %v2677, 0.00028619796
        %v2679 = vmul.f32 %v2676, %v2678
        %v2680 = vadd.f32 %v2679, 0.0036580483
        %v2681 = vmul.f32 %v2676, %v2680
        %v2682 = vadd.f32 %v2681, 0.05243302
        %v2683 = vmul.f32 %v2676, %v2682
        %v2684 = vadd.f32 %v2683, 0.18741608
        %v2685 = vmul.f32 %v2676, %v2684
        %v2686 = vadd.f32 %v2685, 1.1283791
        %v2687 = vmul.f32 %v856, %v2686
        %v2688 = vmul.f32 %v2676, 3.8918573e-05
        %v2689 = vadd.f32 %v2688, 0.001143296
        %v2690 = vmul.f32 %v2676, %v2689
        %v2691 = vadd.f32 %v2690, 0.014752088
        %v2692 = vmul.f32 %v2676, %v2691
        %v2693 = vadd.f32 %v2692, 0.112945676
        %v2694 = vmul.f32 %v2676, %v2693
        %v2695 = vadd.f32 %v2694, 0.4994258
        %v2696 = vmul.f32 %v2676, %v2695
        %v2697 = vadd.f32 %v2696, 1.0
        %v2698 = vrcp.pop %v2697
        %v2699 = vmul.f32 %v2697, %v2698
        %v2700 = vsub.f32 1.0, %v2699
        %v2701 = vmul.f32 %v2698, %v2700
        %v2702 = vadd.f32 %v2698, %v2701
        %vm2703 = vweird.f32 %v2697
        %vm2704 = vweird.f32 %v2698
        %vm2705 = vmor %vm2703, %vm2704
        %v2706 = vsel %vm2705, %v2698, %v2702
        %v2707 = vand.u32 2147483647, %v2697
        %vm2708 = vcmp.eq.f32.partialorder %v2707, 8.507059e+37
        %v2709 = vand.u32 %v2697, 2147483648
        %v2710 = vor.u32 1.1754944e-38, %v2709
        %v2711 = vsel %vm2708, %v2710, %v2706
        %v2712 = vmul.f32 %v2687, %v2711
        %v2713 = vmin.f32 %v2712, 1.0
        %v2714 = vmax.f32 %v2713, -1.0
        %v2715 = vmul.f32 %v857, %v857
        %v2716 = vmin.f32 16.0, %v2715
        %v2717 = vmul.f32 %v2716, 2.1237322e-06
        %v2718 = vadd.f32 %v2717, 0.00028619796
        %v2719 = vmul.f32 %v2716, %v2718
        %v2720 = vadd.f32 %v2719, 0.0036580483
        %v2721 = vmul.f32 %v2716, %v2720
        %v2722 = vadd.f32 %v2721, 0.05243302
        %v2723 = vmul.f32 %v2716, %v2722
        %v2724 = vadd.f32 %v2723, 0.18741608
        %v2725 = vmul.f32 %v2716, %v2724
        %v2726 = vadd.f32 %v2725, 1.1283791
        %v2727 = vmul.f32 %v857, %v2726
        %v2728 = vmul.f32 %v2716, 3.8918573e-05
        %v2729 = vadd.f32 %v2728, 0.001143296
        %v2730 = vmul.f32 %v2716, %v2729
        %v2731 = vadd.f32 %v2730, 0.014752088
        %v2732 = vmul.f32 %v2716, %v2731
        %v2733 = vadd.f32 %v2732, 0.112945676
        %v2734 = vmul.f32 %v2716, %v2733
        %v2735 = vadd.f32 %v2734, 0.4994258
        %v2736 = vmul.f32 %v2716, %v2735
        %v2737 = vadd.f32 %v2736, 1.0
        %v2738 = vrcp.pop %v2737
        %v2739 = vmul.f32 %v2737, %v2738
        %v2740 = vsub.f32 1.0, %v2739
        %v2741 = vmul.f32 %v2738, %v2740
        %v2742 = vadd.f32 %v2738, %v2741
        %vm2743 = vweird.f32 %v2737
        %vm2744 = vweird.f32 %v2738
        %vm2745 = vmor %vm2743, %vm2744
        %v2746 = vsel %vm2745, %v2738, %v2742
        %v2747 = vand.u32 2147483647, %v2737
        %vm2748 = vcmp.eq.f32.partialorder %v2747, 8.507059e+37
        %v2749 = vand.u32 %v2737, 2147483648
        %v2750 = vor.u32 1.1754944e-38, %v2749
        %v2751 = vsel %vm2748, %v2750, %v2746
        %v2752 = vmul.f32 %v2727, %v2751
        %v2753 = vmin.f32 %v2752, 1.0
        %v2754 = vmax.f32 %v2753, -1.0
        %v2755 = vmul.f32 %v858, %v858
        %v2756 = vmin.f32 16.0, %v2755
        %v2757 = vmul.f32 %v2756, 2.1237322e-06
        %v2758 = vadd.f32 %v2757, 0.00028619796
        %v2759 = vmul.f32 %v2756, %v2758
        %v2760 = vadd.f32 %v2759, 0.0036580483
        %v2761 = vmul.f32 %v2756, %v2760
        %v2762 = vadd.f32 %v2761, 0.05243302
        %v2763 = vmul.f32 %v2756, %v2762
        %v2764 = vadd.f32 %v2763, 0.18741608
        %v2765 = vmul.f32 %v2756, %v2764
        %v2766 = vadd.f32 %v2765, 1.1283791
        %v2767 = vmul.f32 %v858, %v2766
        %v2768 = vmul.f32 %v2756, 3.8918573e-05
        %v2769 = vadd.f32 %v2768, 0.001143296
        %v2770 = vmul.f32 %v2756, %v2769
        %v2771 = vadd.f32 %v2770, 0.014752088
        %v2772 = vmul.f32 %v2756, %v2771
        %v2773 = vadd.f32 %v2772, 0.112945676
        %v2774 = vmul.f32 %v2756, %v2773
        %v2775 = vadd.f32 %v2774, 0.4994258
        %v2776 = vmul.f32 %v2756, %v2775
        %v2777 = vadd.f32 %v2776, 1.0
        %v2778 = vrcp.pop %v2777
        %v2779 = vmul.f32 %v2777, %v2778
        %v2780 = vsub.f32 1.0, %v2779
        %v2781 = vmul.f32 %v2778, %v2780
        %v2782 = vadd.f32 %v2778, %v2781
        %vm2783 = vweird.f32 %v2777
        %vm2784 = vweird.f32 %v2778
        %vm2785 = vmor %vm2783, %vm2784
        %v2786 = vsel %vm2785, %v2778, %v2782
        %v2787 = vand.u32 2147483647, %v2777
        %vm2788 = vcmp.eq.f32.partialorder %v2787, 8.507059e+37
        %v2789 = vand.u32 %v2777, 2147483648
        %v2790 = vor.u32 1.1754944e-38, %v2789
        %v2791 = vsel %vm2788, %v2790, %v2786
        %v2792 = vmul.f32 %v2767, %v2791
        %v2793 = vmin.f32 %v2792, 1.0
        %v2794 = vmax.f32 %v2793, -1.0
        %v2795 = vmul.f32 %v859, %v859
        %v2796 = vmin.f32 16.0, %v2795
        %v2797 = vmul.f32 %v2796, 2.1237322e-06
        %v2798 = vadd.f32 %v2797, 0.00028619796
        %v2799 = vmul.f32 %v2796, %v2798
        %v2800 = vadd.f32 %v2799, 0.0036580483
        %v2801 = vmul.f32 %v2796, %v2800
        %v2802 = vadd.f32 %v2801, 0.05243302
        %v2803 = vmul.f32 %v2796, %v2802
        %v2804 = vadd.f32 %v2803, 0.18741608
        %v2805 = vmul.f32 %v2796, %v2804
        %v2806 = vadd.f32 %v2805, 1.1283791
        %v2807 = vmul.f32 %v859, %v2806
        %v2808 = vmul.f32 %v2796, 3.8918573e-05
        %v2809 = vadd.f32 %v2808, 0.001143296
        %v2810 = vmul.f32 %v2796, %v2809
        %v2811 = vadd.f32 %v2810, 0.014752088
        %v2812 = vmul.f32 %v2796, %v2811
        %v2813 = vadd.f32 %v2812, 0.112945676
        %v2814 = vmul.f32 %v2796, %v2813
        %v2815 = vadd.f32 %v2814, 0.4994258
        %v2816 = vmul.f32 %v2796, %v2815
        %v2817 = vadd.f32 %v2816, 1.0
        %v2818 = vrcp.pop %v2817
        %v2819 = vmul.f32 %v2817, %v2818
        %v2820 = vsub.f32 1.0, %v2819
        %v2821 = vmul.f32 %v2818, %v2820
        %v2822 = vadd.f32 %v2818, %v2821
        %vm2823 = vweird.f32 %v2817
        %vm2824 = vweird.f32 %v2818
        %vm2825 = vmor %vm2823, %vm2824
        %v2826 = vsel %vm2825, %v2818, %v2822
        %v2827 = vand.u32 2147483647, %v2817
        %vm2828 = vcmp.eq.f32.partialorder %v2827, 8.507059e+37
        %v2829 = vand.u32 %v2817, 2147483648
        %v2830 = vor.u32 1.1754944e-38, %v2829
        %v2831 = vsel %vm2828, %v2830, %v2826
        %v2832 = vmul.f32 %v2807, %v2831
        %v2833 = vmin.f32 %v2832, 1.0
        %v2834 = vmax.f32 %v2833, -1.0
        %v2835 = vmul.f32 %v860, %v860
        %v2836 = vmin.f32 16.0, %v2835
        %v2837 = vmul.f32 %v2836, 2.1237322e-06
        %v2838 = vadd.f32 %v2837, 0.00028619796
        %v2839 = vmul.f32 %v2836, %v2838
        %v2840 = vadd.f32 %v2839, 0.0036580483
        %v2841 = vmul.f32 %v2836, %v2840
        %v2842 = vadd.f32 %v2841, 0.05243302
        %v2843 = vmul.f32 %v2836, %v2842
        %v2844 = vadd.f32 %v2843, 0.18741608
        %v2845 = vmul.f32 %v2836, %v2844
        %v2846 = vadd.f32 %v2845, 1.1283791
        %v2847 = vmul.f32 %v860, %v2846
        %v2848 = vmul.f32 %v2836, 3.8918573e-05
        %v2849 = vadd.f32 %v2848, 0.001143296
        %v2850 = vmul.f32 %v2836, %v2849
        %v2851 = vadd.f32 %v2850, 0.014752088
        %v2852 = vmul.f32 %v2836, %v2851
        %v2853 = vadd.f32 %v2852, 0.112945676
        %v2854 = vmul.f32 %v2836, %v2853
        %v2855 = vadd.f32 %v2854, 0.4994258
        %v2856 = vmul.f32 %v2836, %v2855
        %v2857 = vadd.f32 %v2856, 1.0
        %v2858 = vrcp.pop %v2857
        %v2859 = vmul.f32 %v2857, %v2858
        %v2860 = vsub.f32 1.0, %v2859
        %v2861 = vmul.f32 %v2858, %v2860
        %v2862 = vadd.f32 %v2858, %v2861
        %vm2863 = vweird.f32 %v2857
        %vm2864 = vweird.f32 %v2858
        %vm2865 = vmor %vm2863, %vm2864
        %v2866 = vsel %vm2865, %v2858, %v2862
        %v2867 = vand.u32 2147483647, %v2857
        %vm2868 = vcmp.eq.f32.partialorder %v2867, 8.507059e+37
        %v2869 = vand.u32 %v2857, 2147483648
        %v2870 = vor.u32 1.1754944e-38, %v2869
        %v2871 = vsel %vm2868, %v2870, %v2866
        %v2872 = vmul.f32 %v2847, %v2871
        %v2873 = vmin.f32 %v2872, 1.0
        %v2874 = vmax.f32 %v2873, -1.0
        %v2875 = vmul.f32 %v861, %v861
        %v2876 = vmin.f32 16.0, %v2875
        %v2877 = vmul.f32 %v2876, 2.1237322e-06
        %v2878 = vadd.f32 %v2877, 0.00028619796
        %v2879 = vmul.f32 %v2876, %v2878
        %v2880 = vadd.f32 %v2879, 0.0036580483
        %v2881 = vmul.f32 %v2876, %v2880
        %v2882 = vadd.f32 %v2881, 0.05243302
        %v2883 = vmul.f32 %v2876, %v2882
        %v2884 = vadd.f32 %v2883, 0.18741608
        %v2885 = vmul.f32 %v2876, %v2884
        %v2886 = vadd.f32 %v2885, 1.1283791
        %v2887 = vmul.f32 %v861, %v2886
        %v2888 = vmul.f32 %v2876, 3.8918573e-05
        %v2889 = vadd.f32 %v2888, 0.001143296
        %v2890 = vmul.f32 %v2876, %v2889
        %v2891 = vadd.f32 %v2890, 0.014752088
        %v2892 = vmul.f32 %v2876, %v2891
        %v2893 = vadd.f32 %v2892, 0.112945676
        %v2894 = vmul.f32 %v2876, %v2893
        %v2895 = vadd.f32 %v2894, 0.4994258
        %v2896 = vmul.f32 %v2876, %v2895
        %v2897 = vadd.f32 %v2896, 1.0
        %v2898 = vrcp.pop %v2897
        %v2899 = vmul.f32 %v2897, %v2898
        %v2900 = vsub.f32 1.0, %v2899
        %v2901 = vmul.f32 %v2898, %v2900
        %v2902 = vadd.f32 %v2898, %v2901
        %vm2903 = vweird.f32 %v2897
        %vm2904 = vweird.f32 %v2898
        %vm2905 = vmor %vm2903, %vm2904
        %v2906 = vsel %vm2905, %v2898, %v2902
        %v2907 = vand.u32 2147483647, %v2897
        %vm2908 = vcmp.eq.f32.partialorder %v2907, 8.507059e+37
        %v2909 = vand.u32 %v2897, 2147483648
        %v2910 = vor.u32 1.1754944e-38, %v2909
        %v2911 = vsel %vm2908, %v2910, %v2906
        %v2912 = vmul.f32 %v2887, %v2911
        %v2913 = vmin.f32 %v2912, 1.0
        %v2914 = vmax.f32 %v2913, -1.0
        %v2915 = vmul.f32 %v862, %v862
        %v2916 = vmin.f32 16.0, %v2915
        %v2917 = vmul.f32 %v2916, 2.1237322e-06
        %v2918 = vadd.f32 %v2917, 0.00028619796
        %v2919 = vmul.f32 %v2916, %v2918
        %v2920 = vadd.f32 %v2919, 0.0036580483
        %v2921 = vmul.f32 %v2916, %v2920
        %v2922 = vadd.f32 %v2921, 0.05243302
        %v2923 = vmul.f32 %v2916, %v2922
        %v2924 = vadd.f32 %v2923, 0.18741608
        %v2925 = vmul.f32 %v2916, %v2924
        %v2926 = vadd.f32 %v2925, 1.1283791
        %v2927 = vmul.f32 %v862, %v2926
        %v2928 = vmul.f32 %v2916, 3.8918573e-05
        %v2929 = vadd.f32 %v2928, 0.001143296
        %v2930 = vmul.f32 %v2916, %v2929
        %v2931 = vadd.f32 %v2930, 0.014752088
        %v2932 = vmul.f32 %v2916, %v2931
        %v2933 = vadd.f32 %v2932, 0.112945676
        %v2934 = vmul.f32 %v2916, %v2933
        %v2935 = vadd.f32 %v2934, 0.4994258
        %v2936 = vmul.f32 %v2916, %v2935
        %v2937 = vadd.f32 %v2936, 1.0
        %v2938 = vrcp.pop %v2937
        %v2939 = vmul.f32 %v2937, %v2938
        %v2940 = vsub.f32 1.0, %v2939
        %v2941 = vmul.f32 %v2938, %v2940
        %v2942 = vadd.f32 %v2938, %v2941
        %vm2943 = vweird.f32 %v2937
        %vm2944 = vweird.f32 %v2938
        %vm2945 = vmor %vm2943, %vm2944
        %v2946 = vsel %vm2945, %v2938, %v2942
        %v2947 = vand.u32 2147483647, %v2937
        %vm2948 = vcmp.eq.f32.partialorder %v2947, 8.507059e+37
        %v2949 = vand.u32 %v2937, 2147483648
        %v2950 = vor.u32 1.1754944e-38, %v2949
        %v2951 = vsel %vm2948, %v2950, %v2946
        %v2952 = vmul.f32 %v2927, %v2951
        %v2953 = vmin.f32 %v2952, 1.0
        %v2954 = vmax.f32 %v2953, -1.0
        %v2955 = vmul.f32 %v863, %v863
        %v2956 = vmin.f32 16.0, %v2955
        %v2957 = vmul.f32 %v2956, 2.1237322e-06
        %v2958 = vadd.f32 %v2957, 0.00028619796
        %v2959 = vmul.f32 %v2956, %v2958
        %v2960 = vadd.f32 %v2959, 0.0036580483
        %v2961 = vmul.f32 %v2956, %v2960
        %v2962 = vadd.f32 %v2961, 0.05243302
        %v2963 = vmul.f32 %v2956, %v2962
        %v2964 = vadd.f32 %v2963, 0.18741608
        %v2965 = vmul.f32 %v2956, %v2964
        %v2966 = vadd.f32 %v2965, 1.1283791
        %v2967 = vmul.f32 %v863, %v2966
        %v2968 = vmul.f32 %v2956, 3.8918573e-05
        %v2969 = vadd.f32 %v2968, 0.001143296
        %v2970 = vmul.f32 %v2956, %v2969
        %v2971 = vadd.f32 %v2970, 0.014752088
        %v2972 = vmul.f32 %v2956, %v2971
        %v2973 = vadd.f32 %v2972, 0.112945676
        %v2974 = vmul.f32 %v2956, %v2973
        %v2975 = vadd.f32 %v2974, 0.4994258
        %v2976 = vmul.f32 %v2956, %v2975
        %v2977 = vadd.f32 %v2976, 1.0
        %v2978 = vrcp.pop %v2977
        %v2979 = vmul.f32 %v2977, %v2978
        %v2980 = vsub.f32 1.0, %v2979
        %v2981 = vmul.f32 %v2978, %v2980
        %v2982 = vadd.f32 %v2978, %v2981
        %vm2983 = vweird.f32 %v2977
        %vm2984 = vweird.f32 %v2978
        %vm2985 = vmor %vm2983, %vm2984
        %v2986 = vsel %vm2985, %v2978, %v2982
        %v2987 = vand.u32 2147483647, %v2977
        %vm2988 = vcmp.eq.f32.partialorder %v2987, 8.507059e+37
        %v2989 = vand.u32 %v2977, 2147483648
        %v2990 = vor.u32 1.1754944e-38, %v2989
        %v2991 = vsel %vm2988, %v2990, %v2986
        %v2992 = vmul.f32 %v2967, %v2991
        %v2993 = vmin.f32 %v2992, 1.0
        %v2994 = vmax.f32 %v2993, -1.0
        %v2995 = vmul.f32 %v864, %v864
        %v2996 = vmin.f32 16.0, %v2995
        %v2997 = vmul.f32 %v2996, 2.1237322e-06
        %v2998 = vadd.f32 %v2997, 0.00028619796
        %v2999 = vmul.f32 %v2996, %v2998
        %v3000 = vadd.f32 %v2999, 0.0036580483
        %v3001 = vmul.f32 %v2996, %v3000
        %v3002 = vadd.f32 %v3001, 0.05243302
        %v3003 = vmul.f32 %v2996, %v3002
        %v3004 = vadd.f32 %v3003, 0.18741608
        %v3005 = vmul.f32 %v2996, %v3004
        %v3006 = vadd.f32 %v3005, 1.1283791
        %v3007 = vmul.f32 %v864, %v3006
        %v3008 = vmul.f32 %v2996, 3.8918573e-05
        %v3009 = vadd.f32 %v3008, 0.001143296
        %v3010 = vmul.f32 %v2996, %v3009
        %v3011 = vadd.f32 %v3010, 0.014752088
        %v3012 = vmul.f32 %v2996, %v3011
        %v3013 = vadd.f32 %v3012, 0.112945676
        %v3014 = vmul.f32 %v2996, %v3013
        %v3015 = vadd.f32 %v3014, 0.4994258
        %v3016 = vmul.f32 %v2996, %v3015
        %v3017 = vadd.f32 %v3016, 1.0
        %v3018 = vrcp.pop %v3017
        %v3019 = vmul.f32 %v3017, %v3018
        %v3020 = vsub.f32 1.0, %v3019
        %v3021 = vmul.f32 %v3018, %v3020
        %v3022 = vadd.f32 %v3018, %v3021
        %vm3023 = vweird.f32 %v3017
        %vm3024 = vweird.f32 %v3018
        %vm3025 = vmor %vm3023, %vm3024
        %v3026 = vsel %vm3025, %v3018, %v3022
        %v3027 = vand.u32 2147483647, %v3017
        %vm3028 = vcmp.eq.f32.partialorder %v3027, 8.507059e+37
        %v3029 = vand.u32 %v3017, 2147483648
        %v3030 = vor.u32 1.1754944e-38, %v3029
        %v3031 = vsel %vm3028, %v3030, %v3026
        %v3032 = vmul.f32 %v3007, %v3031
        %v3033 = vmin.f32 %v3032, 1.0
        %v3034 = vmax.f32 %v3033, -1.0
        %v3035 = vmul.f32 %v865, %v865
        %v3036 = vmin.f32 16.0, %v3035
        %v3037 = vmul.f32 %v3036, 2.1237322e-06
        %v3038 = vadd.f32 %v3037, 0.00028619796
        %v3039 = vmul.f32 %v3036, %v3038
        %v3040 = vadd.f32 %v3039, 0.0036580483
        %v3041 = vmul.f32 %v3036, %v3040
        %v3042 = vadd.f32 %v3041, 0.05243302
        %v3043 = vmul.f32 %v3036, %v3042
        %v3044 = vadd.f32 %v3043, 0.18741608
        %v3045 = vmul.f32 %v3036, %v3044
        %v3046 = vadd.f32 %v3045, 1.1283791
        %v3047 = vmul.f32 %v865, %v3046
        %v3048 = vmul.f32 %v3036, 3.8918573e-05
        %v3049 = vadd.f32 %v3048, 0.001143296
        %v3050 = vmul.f32 %v3036, %v3049
        %v3051 = vadd.f32 %v3050, 0.014752088
        %v3052 = vmul.f32 %v3036, %v3051
        %v3053 = vadd.f32 %v3052, 0.112945676
        %v3054 = vmul.f32 %v3036, %v3053
        %v3055 = vadd.f32 %v3054, 0.4994258
        %v3056 = vmul.f32 %v3036, %v3055
        %v3057 = vadd.f32 %v3056, 1.0
        %v3058 = vrcp.pop %v3057
        %v3059 = vmul.f32 %v3057, %v3058
        %v3060 = vsub.f32 1.0, %v3059
        %v3061 = vmul.f32 %v3058, %v3060
        %v3062 = vadd.f32 %v3058, %v3061
        %vm3063 = vweird.f32 %v3057
        %vm3064 = vweird.f32 %v3058
        %vm3065 = vmor %vm3063, %vm3064
        %v3066 = vsel %vm3065, %v3058, %v3062
        %v3067 = vand.u32 2147483647, %v3057
        %vm3068 = vcmp.eq.f32.partialorder %v3067, 8.507059e+37
        %v3069 = vand.u32 %v3057, 2147483648
        %v3070 = vor.u32 1.1754944e-38, %v3069
        %v3071 = vsel %vm3068, %v3070, %v3066
        %v3072 = vmul.f32 %v3047, %v3071
        %v3073 = vmin.f32 %v3072, 1.0
        %v3074 = vmax.f32 %v3073, -1.0
        %v3075 = vmul.f32 %v866, %v866
        %v3076 = vmin.f32 16.0, %v3075
        %v3077 = vmul.f32 %v3076, 2.1237322e-06
        %v3078 = vadd.f32 %v3077, 0.00028619796
        %v3079 = vmul.f32 %v3076, %v3078
        %v3080 = vadd.f32 %v3079, 0.0036580483
        %v3081 = vmul.f32 %v3076, %v3080
        %v3082 = vadd.f32 %v3081, 0.05243302
        %v3083 = vmul.f32 %v3076, %v3082
        %v3084 = vadd.f32 %v3083, 0.18741608
        %v3085 = vmul.f32 %v3076, %v3084
        %v3086 = vadd.f32 %v3085, 1.1283791
        %v3087 = vmul.f32 %v866, %v3086
        %v3088 = vmul.f32 %v3076, 3.8918573e-05
        %v3089 = vadd.f32 %v3088, 0.001143296
        %v3090 = vmul.f32 %v3076, %v3089
        %v3091 = vadd.f32 %v3090, 0.014752088
        %v3092 = vmul.f32 %v3076, %v3091
        %v3093 = vadd.f32 %v3092, 0.112945676
        %v3094 = vmul.f32 %v3076, %v3093
        %v3095 = vadd.f32 %v3094, 0.4994258
        %v3096 = vmul.f32 %v3076, %v3095
        %v3097 = vadd.f32 %v3096, 1.0
        %v3098 = vrcp.pop %v3097
        %v3099 = vmul.f32 %v3097, %v3098
        %v3100 = vsub.f32 1.0, %v3099
        %v3101 = vmul.f32 %v3098, %v3100
        %v3102 = vadd.f32 %v3098, %v3101
        %vm3103 = vweird.f32 %v3097
        %vm3104 = vweird.f32 %v3098
        %vm3105 = vmor %vm3103, %vm3104
        %v3106 = vsel %vm3105, %v3098, %v3102
        %v3107 = vand.u32 2147483647, %v3097
        %vm3108 = vcmp.eq.f32.partialorder %v3107, 8.507059e+37
        %v3109 = vand.u32 %v3097, 2147483648
        %v3110 = vor.u32 1.1754944e-38, %v3109
        %v3111 = vsel %vm3108, %v3110, %v3106
        %v3112 = vmul.f32 %v3087, %v3111
        %v3113 = vmin.f32 %v3112, 1.0
        %v3114 = vmax.f32 %v3113, -1.0
        %v3115 = vmul.f32 %v867, %v867
        %v3116 = vmin.f32 16.0, %v3115
        %v3117 = vmul.f32 %v3116, 2.1237322e-06
        %v3118 = vadd.f32 %v3117, 0.00028619796
        %v3119 = vmul.f32 %v3116, %v3118
        %v3120 = vadd.f32 %v3119, 0.0036580483
        %v3121 = vmul.f32 %v3116, %v3120
        %v3122 = vadd.f32 %v3121, 0.05243302
        %v3123 = vmul.f32 %v3116, %v3122
        %v3124 = vadd.f32 %v3123, 0.18741608
        %v3125 = vmul.f32 %v3116, %v3124
        %v3126 = vadd.f32 %v3125, 1.1283791
        %v3127 = vmul.f32 %v867, %v3126
        %v3128 = vmul.f32 %v3116, 3.8918573e-05
        %v3129 = vadd.f32 %v3128, 0.001143296
        %v3130 = vmul.f32 %v3116, %v3129
        %v3131 = vadd.f32 %v3130, 0.014752088
        %v3132 = vmul.f32 %v3116, %v3131
        %v3133 = vadd.f32 %v3132, 0.112945676
        %v3134 = vmul.f32 %v3116, %v3133
        %v3135 = vadd.f32 %v3134, 0.4994258
        %v3136 = vmul.f32 %v3116, %v3135
        %v3137 = vadd.f32 %v3136, 1.0
        %v3138 = vrcp.pop %v3137
        %v3139 = vmul.f32 %v3137, %v3138
        %v3140 = vsub.f32 1.0, %v3139
        %v3141 = vmul.f32 %v3138, %v3140
        %v3142 = vadd.f32 %v3138, %v3141
        %vm3143 = vweird.f32 %v3137
        %vm3144 = vweird.f32 %v3138
        %vm3145 = vmor %vm3143, %vm3144
        %v3146 = vsel %vm3145, %v3138, %v3142
        %v3147 = vand.u32 2147483647, %v3137
        %vm3148 = vcmp.eq.f32.partialorder %v3147, 8.507059e+37
        %v3149 = vand.u32 %v3137, 2147483648
        %v3150 = vor.u32 1.1754944e-38, %v3149
        %v3151 = vsel %vm3148, %v3150, %v3146
        %v3152 = vmul.f32 %v3127, %v3151
        %v3153 = vmin.f32 %v3152, 1.0
        %v3154 = vmax.f32 %v3153, -1.0
        %v3155 = vmul.f32 %v868, %v868
        %v3156 = vmin.f32 16.0, %v3155
        %v3157 = vmul.f32 %v3156, 2.1237322e-06
        %v3158 = vadd.f32 %v3157, 0.00028619796
        %v3159 = vmul.f32 %v3156, %v3158
        %v3160 = vadd.f32 %v3159, 0.0036580483
        %v3161 = vmul.f32 %v3156, %v3160
        %v3162 = vadd.f32 %v3161, 0.05243302
        %v3163 = vmul.f32 %v3156, %v3162
        %v3164 = vadd.f32 %v3163, 0.18741608
        %v3165 = vmul.f32 %v3156, %v3164
        %v3166 = vadd.f32 %v3165, 1.1283791
        %v3167 = vmul.f32 %v868, %v3166
        %v3168 = vmul.f32 %v3156, 3.8918573e-05
        %v3169 = vadd.f32 %v3168, 0.001143296
        %v3170 = vmul.f32 %v3156, %v3169
        %v3171 = vadd.f32 %v3170, 0.014752088
        %v3172 = vmul.f32 %v3156, %v3171
        %v3173 = vadd.f32 %v3172, 0.112945676
        %v3174 = vmul.f32 %v3156, %v3173
        %v3175 = vadd.f32 %v3174, 0.4994258
        %v3176 = vmul.f32 %v3156, %v3175
        %v3177 = vadd.f32 %v3176, 1.0
        %v3178 = vrcp.pop %v3177
        %v3179 = vmul.f32 %v3177, %v3178
        %v3180 = vsub.f32 1.0, %v3179
        %v3181 = vmul.f32 %v3178, %v3180
        %v3182 = vadd.f32 %v3178, %v3181
        %vm3183 = vweird.f32 %v3177
        %vm3184 = vweird.f32 %v3178
        %vm3185 = vmor %vm3183, %vm3184
        %v3186 = vsel %vm3185, %v3178, %v3182
        %v3187 = vand.u32 2147483647, %v3177
        %vm3188 = vcmp.eq.f32.partialorder %v3187, 8.507059e+37
        %v3189 = vand.u32 %v3177, 2147483648
        %v3190 = vor.u32 1.1754944e-38, %v3189
        %v3191 = vsel %vm3188, %v3190, %v3186
        %v3192 = vmul.f32 %v3167, %v3191
        %v3193 = vmin.f32 %v3192, 1.0
        %v3194 = vmax.f32 %v3193, -1.0
        %v3195 = vmul.f32 %v869, %v869
        %v3196 = vmin.f32 16.0, %v3195
        %v3197 = vmul.f32 %v3196, 2.1237322e-06
        %v3198 = vadd.f32 %v3197, 0.00028619796
        %v3199 = vmul.f32 %v3196, %v3198
        %v3200 = vadd.f32 %v3199, 0.0036580483
        %v3201 = vmul.f32 %v3196, %v3200
        %v3202 = vadd.f32 %v3201, 0.05243302
        %v3203 = vmul.f32 %v3196, %v3202
        %v3204 = vadd.f32 %v3203, 0.18741608
        %v3205 = vmul.f32 %v3196, %v3204
        %v3206 = vadd.f32 %v3205, 1.1283791
        %v3207 = vmul.f32 %v869, %v3206
        %v3208 = vmul.f32 %v3196, 3.8918573e-05
        %v3209 = vadd.f32 %v3208, 0.001143296
        %v3210 = vmul.f32 %v3196, %v3209
        %v3211 = vadd.f32 %v3210, 0.014752088
        %v3212 = vmul.f32 %v3196, %v3211
        %v3213 = vadd.f32 %v3212, 0.112945676
        %v3214 = vmul.f32 %v3196, %v3213
        %v3215 = vadd.f32 %v3214, 0.4994258
        %v3216 = vmul.f32 %v3196, %v3215
        %v3217 = vadd.f32 %v3216, 1.0
        %v3218 = vrcp.pop %v3217
        %v3219 = vmul.f32 %v3217, %v3218
        %v3220 = vsub.f32 1.0, %v3219
        %v3221 = vmul.f32 %v3218, %v3220
        %v3222 = vadd.f32 %v3218, %v3221
        %vm3223 = vweird.f32 %v3217
        %vm3224 = vweird.f32 %v3218
        %vm3225 = vmor %vm3223, %vm3224
        %v3226 = vsel %vm3225, %v3218, %v3222
        %v3227 = vand.u32 2147483647, %v3217
        %vm3228 = vcmp.eq.f32.partialorder %v3227, 8.507059e+37
        %v3229 = vand.u32 %v3217, 2147483648
        %v3230 = vor.u32 1.1754944e-38, %v3229
        %v3231 = vsel %vm3228, %v3230, %v3226
        %v3232 = vmul.f32 %v3207, %v3231
        %v3233 = vmin.f32 %v3232, 1.0
        %v3234 = vmax.f32 %v3233, -1.0
        %v3235 = vmul.f32 %v870, %v870
        %v3236 = vmin.f32 16.0, %v3235
        %v3237 = vmul.f32 %v3236, 2.1237322e-06
        %v3238 = vadd.f32 %v3237, 0.00028619796
        %v3239 = vmul.f32 %v3236, %v3238
        %v3240 = vadd.f32 %v3239, 0.0036580483
        %v3241 = vmul.f32 %v3236, %v3240
        %v3242 = vadd.f32 %v3241, 0.05243302
        %v3243 = vmul.f32 %v3236, %v3242
        %v3244 = vadd.f32 %v3243, 0.18741608
        %v3245 = vmul.f32 %v3236, %v3244
        %v3246 = vadd.f32 %v3245, 1.1283791
        %v3247 = vmul.f32 %v870, %v3246
        %v3248 = vmul.f32 %v3236, 3.8918573e-05
        %v3249 = vadd.f32 %v3248, 0.001143296
        %v3250 = vmul.f32 %v3236, %v3249
        %v3251 = vadd.f32 %v3250, 0.014752088
        %v3252 = vmul.f32 %v3236, %v3251
        %v3253 = vadd.f32 %v3252, 0.112945676
        %v3254 = vmul.f32 %v3236, %v3253
        %v3255 = vadd.f32 %v3254, 0.4994258
        %v3256 = vmul.f32 %v3236, %v3255
        %v3257 = vadd.f32 %v3256, 1.0
        %v3258 = vrcp.pop %v3257
        %v3259 = vmul.f32 %v3257, %v3258
        %v3260 = vsub.f32 1.0, %v3259
        %v3261 = vmul.f32 %v3258, %v3260
        %v3262 = vadd.f32 %v3258, %v3261
        %vm3263 = vweird.f32 %v3257
        %vm3264 = vweird.f32 %v3258
        %vm3265 = vmor %vm3263, %vm3264
        %v3266 = vsel %vm3265, %v3258, %v3262
        %v3267 = vand.u32 2147483647, %v3257
        %vm3268 = vcmp.eq.f32.partialorder %v3267, 8.507059e+37
        %v3269 = vand.u32 %v3257, 2147483648
        %v3270 = vor.u32 1.1754944e-38, %v3269
        %v3271 = vsel %vm3268, %v3270, %v3266
        %v3272 = vmul.f32 %v3247, %v3271
        %v3273 = vmin.f32 %v3272, 1.0
        %v3274 = vmax.f32 %v3273, -1.0
        %v3275 = vmul.f32 %v871, %v871
        %v3276 = vmin.f32 16.0, %v3275
        %v3277 = vmul.f32 %v3276, 2.1237322e-06
        %v3278 = vadd.f32 %v3277, 0.00028619796
        %v3279 = vmul.f32 %v3276, %v3278
        %v3280 = vadd.f32 %v3279, 0.0036580483
        %v3281 = vmul.f32 %v3276, %v3280
        %v3282 = vadd.f32 %v3281, 0.05243302
        %v3283 = vmul.f32 %v3276, %v3282
        %v3284 = vadd.f32 %v3283, 0.18741608
        %v3285 = vmul.f32 %v3276, %v3284
        %v3286 = vadd.f32 %v3285, 1.1283791
        %v3287 = vmul.f32 %v871, %v3286
        %v3288 = vmul.f32 %v3276, 3.8918573e-05
        %v3289 = vadd.f32 %v3288, 0.001143296
        %v3290 = vmul.f32 %v3276, %v3289
        %v3291 = vadd.f32 %v3290, 0.014752088
        %v3292 = vmul.f32 %v3276, %v3291
        %v3293 = vadd.f32 %v3292, 0.112945676
        %v3294 = vmul.f32 %v3276, %v3293
        %v3295 = vadd.f32 %v3294, 0.4994258
        %v3296 = vmul.f32 %v3276, %v3295
        %v3297 = vadd.f32 %v3296, 1.0
        %v3298 = vrcp.pop %v3297
        %v3299 = vmul.f32 %v3297, %v3298
        %v3300 = vsub.f32 1.0, %v3299
        %v3301 = vmul.f32 %v3298, %v3300
        %v3302 = vadd.f32 %v3298, %v3301
        %vm3303 = vweird.f32 %v3297
        %vm3304 = vweird.f32 %v3298
        %vm3305 = vmor %vm3303, %vm3304
        %v3306 = vsel %vm3305, %v3298, %v3302
        %v3307 = vand.u32 2147483647, %v3297
        %vm3308 = vcmp.eq.f32.partialorder %v3307, 8.507059e+37
        %v3309 = vand.u32 %v3297, 2147483648
        %v3310 = vor.u32 1.1754944e-38, %v3309
        %v3311 = vsel %vm3308, %v3310, %v3306
        %v3312 = vmul.f32 %v3287, %v3311
        %v3313 = vmin.f32 %v3312, 1.0
        %v3314 = vmax.f32 %v3313, -1.0
        %v3315 = vmul.f32 %v872, %v872
        %v3316 = vmin.f32 16.0, %v3315
        %v3317 = vmul.f32 %v3316, 2.1237322e-06
        %v3318 = vadd.f32 %v3317, 0.00028619796
        %v3319 = vmul.f32 %v3316, %v3318
        %v3320 = vadd.f32 %v3319, 0.0036580483
        %v3321 = vmul.f32 %v3316, %v3320
        %v3322 = vadd.f32 %v3321, 0.05243302
        %v3323 = vmul.f32 %v3316, %v3322
        %v3324 = vadd.f32 %v3323, 0.18741608
        %v3325 = vmul.f32 %v3316, %v3324
        %v3326 = vadd.f32 %v3325, 1.1283791
        %v3327 = vmul.f32 %v872, %v3326
        %v3328 = vmul.f32 %v3316, 3.8918573e-05
        %v3329 = vadd.f32 %v3328, 0.001143296
        %v3330 = vmul.f32 %v3316, %v3329
        %v3331 = vadd.f32 %v3330, 0.014752088
        %v3332 = vmul.f32 %v3316, %v3331
        %v3333 = vadd.f32 %v3332, 0.112945676
        %v3334 = vmul.f32 %v3316, %v3333
        %v3335 = vadd.f32 %v3334, 0.4994258
        %v3336 = vmul.f32 %v3316, %v3335
        %v3337 = vadd.f32 %v3336, 1.0
        %v3338 = vrcp.pop %v3337
        %v3339 = vmul.f32 %v3337, %v3338
        %v3340 = vsub.f32 1.0, %v3339
        %v3341 = vmul.f32 %v3338, %v3340
        %v3342 = vadd.f32 %v3338, %v3341
        %vm3343 = vweird.f32 %v3337
        %vm3344 = vweird.f32 %v3338
        %vm3345 = vmor %vm3343, %vm3344
        %v3346 = vsel %vm3345, %v3338, %v3342
        %v3347 = vand.u32 2147483647, %v3337
        %vm3348 = vcmp.eq.f32.partialorder %v3347, 8.507059e+37
        %v3349 = vand.u32 %v3337, 2147483648
        %v3350 = vor.u32 1.1754944e-38, %v3349
        %v3351 = vsel %vm3348, %v3350, %v3346
        %v3352 = vmul.f32 %v3327, %v3351
        %v3353 = vmin.f32 %v3352, 1.0
        %v3354 = vmax.f32 %v3353, -1.0
        %v3355 = vmul.f32 %v873, %v873
        %v3356 = vmin.f32 16.0, %v3355
        %v3357 = vmul.f32 %v3356, 2.1237322e-06
        %v3358 = vadd.f32 %v3357, 0.00028619796
        %v3359 = vmul.f32 %v3356, %v3358
        %v3360 = vadd.f32 %v3359, 0.0036580483
        %v3361 = vmul.f32 %v3356, %v3360
        %v3362 = vadd.f32 %v3361, 0.05243302
        %v3363 = vmul.f32 %v3356, %v3362
        %v3364 = vadd.f32 %v3363, 0.18741608
        %v3365 = vmul.f32 %v3356, %v3364
        %v3366 = vadd.f32 %v3365, 1.1283791
        %v3367 = vmul.f32 %v873, %v3366
        %v3368 = vmul.f32 %v3356, 3.8918573e-05
        %v3369 = vadd.f32 %v3368, 0.001143296
        %v3370 = vmul.f32 %v3356, %v3369
        %v3371 = vadd.f32 %v3370, 0.014752088
        %v3372 = vmul.f32 %v3356, %v3371
        %v3373 = vadd.f32 %v3372, 0.112945676
        %v3374 = vmul.f32 %v3356, %v3373
        %v3375 = vadd.f32 %v3374, 0.4994258
        %v3376 = vmul.f32 %v3356, %v3375
        %v3377 = vadd.f32 %v3376, 1.0
        %v3378 = vrcp.pop %v3377
        %v3379 = vmul.f32 %v3377, %v3378
        %v3380 = vsub.f32 1.0, %v3379
        %v3381 = vmul.f32 %v3378, %v3380
        %v3382 = vadd.f32 %v3378, %v3381
        %vm3383 = vweird.f32 %v3377
        %vm3384 = vweird.f32 %v3378
        %vm3385 = vmor %vm3383, %vm3384
        %v3386 = vsel %vm3385, %v3378, %v3382
        %v3387 = vand.u32 2147483647, %v3377
        %vm3388 = vcmp.eq.f32.partialorder %v3387, 8.507059e+37
        %v3389 = vand.u32 %v3377, 2147483648
        %v3390 = vor.u32 1.1754944e-38, %v3389
        %v3391 = vsel %vm3388, %v3390, %v3386
        %v3392 = vmul.f32 %v3367, %v3391
        %v3393 = vmin.f32 %v3392, 1.0
        %v3394 = vmax.f32 %v3393, -1.0
        %v3395 = vmul.f32 %v874, %v874
        %v3396 = vmin.f32 16.0, %v3395
        %v3397 = vmul.f32 %v3396, 2.1237322e-06
        %v3398 = vadd.f32 %v3397, 0.00028619796
        %v3399 = vmul.f32 %v3396, %v3398
        %v3400 = vadd.f32 %v3399, 0.0036580483
        %v3401 = vmul.f32 %v3396, %v3400
        %v3402 = vadd.f32 %v3401, 0.05243302
        %v3403 = vmul.f32 %v3396, %v3402
        %v3404 = vadd.f32 %v3403, 0.18741608
        %v3405 = vmul.f32 %v3396, %v3404
        %v3406 = vadd.f32 %v3405, 1.1283791
        %v3407 = vmul.f32 %v874, %v3406
        %v3408 = vmul.f32 %v3396, 3.8918573e-05
        %v3409 = vadd.f32 %v3408, 0.001143296
        %v3410 = vmul.f32 %v3396, %v3409
        %v3411 = vadd.f32 %v3410, 0.014752088
        %v3412 = vmul.f32 %v3396, %v3411
        %v3413 = vadd.f32 %v3412, 0.112945676
        %v3414 = vmul.f32 %v3396, %v3413
        %v3415 = vadd.f32 %v3414, 0.4994258
        %v3416 = vmul.f32 %v3396, %v3415
        %v3417 = vadd.f32 %v3416, 1.0
        %v3418 = vrcp.pop %v3417
        %v3419 = vmul.f32 %v3417, %v3418
        %v3420 = vsub.f32 1.0, %v3419
        %v3421 = vmul.f32 %v3418, %v3420
        %v3422 = vadd.f32 %v3418, %v3421
        %vm3423 = vweird.f32 %v3417
        %vm3424 = vweird.f32 %v3418
        %vm3425 = vmor %vm3423, %vm3424
        %v3426 = vsel %vm3425, %v3418, %v3422
        %v3427 = vand.u32 2147483647, %v3417
        %vm3428 = vcmp.eq.f32.partialorder %v3427, 8.507059e+37
        %v3429 = vand.u32 %v3417, 2147483648
        %v3430 = vor.u32 1.1754944e-38, %v3429
        %v3431 = vsel %vm3428, %v3430, %v3426
        %v3432 = vmul.f32 %v3407, %v3431
        %v3433 = vmin.f32 %v3432, 1.0
        %v3434 = vmax.f32 %v3433, -1.0
        %v3435 = vadd.f32 %v914, 1.0
        %v3436 = vadd.f32 %v954, 1.0
        %v3437 = vadd.f32 %v994, 1.0
        %v3438 = vadd.f32 %v1034, 1.0
        %v3439 = vadd.f32 %v1074, 1.0
        %v3440 = vadd.f32 %v1114, 1.0
        %v3441 = vadd.f32 %v1154, 1.0
        %v3442 = vadd.f32 %v1194, 1.0
        %v3443 = vadd.f32 %v1234, 1.0
        %v3444 = vadd.f32 %v1274, 1.0
        %v3445 = vadd.f32 %v1314, 1.0
        %v3446 = vadd.f32 %v1354, 1.0
        %v3447 = vadd.f32 %v1394, 1.0
        %v3448 = vadd.f32 %v1434, 1.0
        %v3449 = vadd.f32 %v1474, 1.0
        %v3450 = vadd.f32 %v1514, 1.0
        %v3451 = vadd.f32 %v1554, 1.0
        %v3452 = vadd.f32 %v1594, 1.0
        %v3453 = vadd.f32 %v1634, 1.0
        %v3454 = vadd.f32 %v1674, 1.0
        %v3455 = vadd.f32 %v1714, 1.0
        %v3456 = vadd.f32 %v1754, 1.0
        %v3457 = vadd.f32 %v1794, 1.0
        %v3458 = vadd.f32 %v1834, 1.0
        %v3459 = vadd.f32 %v1874, 1.0
        %v3460 = vadd.f32 %v1914, 1.0
        %v3461 = vadd.f32 %v1954, 1.0
        %v3462 = vadd.f32 %v1994, 1.0
        %v3463 = vadd.f32 %v2034, 1.0
        %v3464 = vadd.f32 %v2074, 1.0
        %v3465 = vadd.f32 %v2114, 1.0
        %v3466 = vadd.f32 %v2154, 1.0
        %v3467 = vadd.f32 %v2194, 1.0
        %v3468 = vadd.f32 %v2234, 1.0
        %v3469 = vadd.f32 %v2274, 1.0
        %v3470 = vadd.f32 %v2314, 1.0
        %v3471 = vadd.f32 %v2354, 1.0
        %v3472 = vadd.f32 %v2394, 1.0
        %v3473 = vadd.f32 %v2434, 1.0
        %v3474 = vadd.f32 %v2474, 1.0
        %v3475 = vadd.f32 %v2514, 1.0
        %v3476 = vadd.f32 %v2554, 1.0
        %v3477 = vadd.f32 %v2594, 1.0
        %v3478 = vadd.f32 %v2634, 1.0
        %v3479 = vadd.f32 %v2674, 1.0
        %v3480 = vadd.f32 %v2714, 1.0
        %v3481 = vadd.f32 %v2754, 1.0
        %v3482 = vadd.f32 %v2794, 1.0
        %v3483 = vadd.f32 %v2834, 1.0
        %v3484 = vadd.f32 %v2874, 1.0
        %v3485 = vadd.f32 %v2914, 1.0
        %v3486 = vadd.f32 %v2954, 1.0
        %v3487 = vadd.f32 %v2994, 1.0
        %v3488 = vadd.f32 %v3034, 1.0
        %v3489 = vadd.f32 %v3074, 1.0
        %v3490 = vadd.f32 %v3114, 1.0
        %v3491 = vadd.f32 %v3154, 1.0
        %v3492 = vadd.f32 %v3194, 1.0
        %v3493 = vadd.f32 %v3234, 1.0
        %v3494 = vadd.f32 %v3274, 1.0
        %v3495 = vadd.f32 %v3314, 1.0
        %v3496 = vadd.f32 %v3354, 1.0
        %v3497 = vadd.f32 %v3394, 1.0
        %v3498 = vadd.f32 %v3434, 1.0
        %v3499 = vmul.f32 %v747, %v3435
        %v3500 = vmul.f32 %v748, %v3436
        %v3501 = vmul.f32 %v749, %v3437
        %v3502 = vmul.f32 %v750, %v3438
        %v3503 = vmul.f32 %v751, %v3439
        %v3504 = vmul.f32 %v752, %v3440
        %v3505 = vmul.f32 %v753, %v3441
        %v3506 = vmul.f32 %v754, %v3442
        %v3507 = vmul.f32 %v755, %v3443
        %v3508 = vmul.f32 %v756, %v3444
        %v3509 = vmul.f32 %v757, %v3445
        %v3510 = vmul.f32 %v758, %v3446
        %v3511 = vmul.f32 %v759, %v3447
        %v3512 = vmul.f32 %v760, %v3448
        %v3513 = vmul.f32 %v761, %v3449
        %v3514 = vmul.f32 %v762, %v3450
        %v3515 = vmul.f32 %v763, %v3451
        %v3516 = vmul.f32 %v764, %v3452
        %v3517 = vmul.f32 %v765, %v3453
        %v3518 = vmul.f32 %v766, %v3454
        %v3519 = vmul.f32 %v767, %v3455
        %v3520 = vmul.f32 %v768, %v3456
        %v3521 = vmul.f32 %v769, %v3457
        %v3522 = vmul.f32 %v770, %v3458
        %v3523 = vmul.f32 %v771, %v3459
        %v3524 = vmul.f32 %v772, %v3460
        %v3525 = vmul.f32 %v773, %v3461
        %v3526 = vmul.f32 %v774, %v3462
        %v3527 = vmul.f32 %v775, %v3463
        %v3528 = vmul.f32 %v776, %v3464
        %v3529 = vmul.f32 %v777, %v3465
        %v3530 = vmul.f32 %v778, %v3466
        %v3531 = vmul.f32 %v779, %v3467
        %v3532 = vmul.f32 %v780, %v3468
        %v3533 = vmul.f32 %v781, %v3469
        %v3534 = vmul.f32 %v782, %v3470
        %v3535 = vmul.f32 %v783, %v3471
        %v3536 = vmul.f32 %v784, %v3472
        %v3537 = vmul.f32 %v785, %v3473
        %v3538 = vmul.f32 %v786, %v3474
        %v3539 = vmul.f32 %v787, %v3475
        %v3540 = vmul.f32 %v788, %v3476
        %v3541 = vmul.f32 %v789, %v3477
        %v3542 = vmul.f32 %v790, %v3478
        %v3543 = vmul.f32 %v791, %v3479
        %v3544 = vmul.f32 %v792, %v3480
        %v3545 = vmul.f32 %v793, %v3481
        %v3546 = vmul.f32 %v794, %v3482
        %v3547 = vmul.f32 %v795, %v3483
        %v3548 = vmul.f32 %v796, %v3484
        %v3549 = vmul.f32 %v797, %v3485
        %v3550 = vmul.f32 %v798, %v3486
        %v3551 = vmul.f32 %v799, %v3487
        %v3552 = vmul.f32 %v800, %v3488
        %v3553 = vmul.f32 %v801, %v3489
        %v3554 = vmul.f32 %v802, %v3490
        %v3555 = vmul.f32 %v803, %v3491
        %v3556 = vmul.f32 %v804, %v3492
        %v3557 = vmul.f32 %v805, %v3493
        %v3558 = vmul.f32 %v806, %v3494
        %v3559 = vmul.f32 %v807, %v3495
        %v3560 = vmul.f32 %v808, %v3496
        %v3561 = vmul.f32 %v809, %v3497
        %v3562 = vmul.f32 %v810, %v3498
        %v3563 = vpack.c.bf16 %v3503, %v3499
        %v3564 = vpack.c.bf16 %v3504, %v3500
        %v3565 = vpack.c.bf16 %v3505, %v3501
        %v3566 = vpack.c.bf16 %v3506, %v3502
        %v3567 = vpack.c.bf16 %v3511, %v3507
        %v3568 = vpack.c.bf16 %v3512, %v3508
        %v3569 = vpack.c.bf16 %v3513, %v3509
        %v3570 = vpack.c.bf16 %v3514, %v3510
        %v3571 = vpack.c.bf16 %v3519, %v3515
        %v3572 = vpack.c.bf16 %v3520, %v3516
        %v3573 = vpack.c.bf16 %v3521, %v3517
        %v3574 = vpack.c.bf16 %v3522, %v3518
        %v3575 = vpack.c.bf16 %v3527, %v3523
        %v3576 = vpack.c.bf16 %v3528, %v3524
        %v3577 = vpack.c.bf16 %v3529, %v3525
        %v3578 = vpack.c.bf16 %v3530, %v3526
        %v3579 = vpack.c.bf16 %v3535, %v3531
        %v3580 = vpack.c.bf16 %v3536, %v3532
        %v3581 = vpack.c.bf16 %v3537, %v3533
        %v3582 = vpack.c.bf16 %v3538, %v3534
        %v3583 = vpack.c.bf16 %v3543, %v3539
        %v3584 = vpack.c.bf16 %v3544, %v3540
        %v3585 = vpack.c.bf16 %v3545, %v3541
        %v3586 = vpack.c.bf16 %v3546, %v3542
        %v3587 = vpack.c.bf16 %v3551, %v3547
        %v3588 = vpack.c.bf16 %v3552, %v3548
        %v3589 = vpack.c.bf16 %v3553, %v3549
        %v3590 = vpack.c.bf16 %v3554, %v3550
        %v3591 = vpack.c.bf16 %v3559, %v3555
        %v3592 = vpack.c.bf16 %v3560, %v3556
        %v3593 = vpack.c.bf16 %v3561, %v3557
        %v3594 = vpack.c.bf16 %v3562, %v3558
        %v3595 = vld [vmem:[#allocation7] sm:$0xf]
        %v3596 = vld [vmem:[#allocation7 + $0x4] sm:$0xf]
        %v3597 = vld [vmem:[#allocation7 + $0x8] sm:$0xf]
        %v3598 = vld [vmem:[#allocation7 + $0xc] sm:$0xf]
        %v3599 = vld [vmem:[#allocation7 + $0x10] sm:$0xf]
        %v3600 = vld [vmem:[#allocation7 + $0x14] sm:$0xf]
        %v3601 = vld [vmem:[#allocation7 + $0x18] sm:$0xf]
        %v3602 = vld [vmem:[#allocation7 + $0x1c] sm:$0xf]
        %v3603 = vld [vmem:[#allocation7 + $0x20] sm:$0xf]
        %v3604 = vld [vmem:[#allocation7 + $0x24] sm:$0xf]
        %v3605 = vld [vmem:[#allocation7 + $0x28] sm:$0xf]
        %v3606 = vld [vmem:[#allocation7 + $0x2c] sm:$0xf]
        %v3607 = vld [vmem:[#allocation7 + $0x30] sm:$0xf]
        %v3608 = vld [vmem:[#allocation7 + $0x34] sm:$0xf]
        %v3609 = vld [vmem:[#allocation7 + $0x38] sm:$0xf]
        %v3610 = vld [vmem:[#allocation7 + $0x3c] sm:$0xf]
        %v3611 = vld [vmem:[#allocation7 + $0x40] sm:$0xf]
        %v3612 = vld [vmem:[#allocation7 + $0x44] sm:$0xf]
        %v3613 = vld [vmem:[#allocation7 + $0x48] sm:$0xf]
        %v3614 = vld [vmem:[#allocation7 + $0x4c] sm:$0xf]
        %v3615 = vld [vmem:[#allocation7 + $0x50] sm:$0xf]
        %v3616 = vld [vmem:[#allocation7 + $0x54] sm:$0xf]
        %v3617 = vld [vmem:[#allocation7 + $0x58] sm:$0xf]
        %v3618 = vld [vmem:[#allocation7 + $0x5c] sm:$0xf]
        %v3619 = vld [vmem:[#allocation7 + $0x60] sm:$0xf]
        %v3620 = vld [vmem:[#allocation7 + $0x64] sm:$0xf]
        %v3621 = vld [vmem:[#allocation7 + $0x68] sm:$0xf]
        %v3622 = vld [vmem:[#allocation7 + $0x6c] sm:$0xf]
        %v3623 = vld [vmem:[#allocation7 + $0x70] sm:$0xf]
        %v3624 = vld [vmem:[#allocation7 + $0x74] sm:$0xf]
        %v3625 = vld [vmem:[#allocation7 + $0x78] sm:$0xf]
        %v3626 = vld [vmem:[#allocation7 + $0x7c] sm:$0xf]
        %v3627 = vld [vmem:[#allocation7 + $0x80] sm:$0xf]
        %v3628 = vld [vmem:[#allocation7 + $0x84] sm:$0xf]
        %v3629 = vld [vmem:[#allocation7 + $0x88] sm:$0xf]
        %v3630 = vld [vmem:[#allocation7 + $0x8c] sm:$0xf]
        %v3631 = vld [vmem:[#allocation7 + $0x90] sm:$0xf]
        %v3632 = vld [vmem:[#allocation7 + $0x94] sm:$0xf]
        %v3633 = vld [vmem:[#allocation7 + $0x98] sm:$0xf]
        %v3634 = vld [vmem:[#allocation7 + $0x9c] sm:$0xf]
        %v3635 = vld [vmem:[#allocation7 + $0xa0] sm:$0xf]
        %v3636 = vld [vmem:[#allocation7 + $0xa4] sm:$0xf]
        %v3637 = vld [vmem:[#allocation7 + $0xa8] sm:$0xf]
        %v3638 = vld [vmem:[#allocation7 + $0xac] sm:$0xf]
        %v3639 = vld [vmem:[#allocation7 + $0xb0] sm:$0xf]
        %v3640 = vld [vmem:[#allocation7 + $0xb4] sm:$0xf]
        %v3641 = vld [vmem:[#allocation7 + $0xb8] sm:$0xf]
        %v3642 = vld [vmem:[#allocation7 + $0xbc] sm:$0xf]
        %v3643 = vld [vmem:[#allocation7 + $0xc0] sm:$0xf]
        %v3644 = vld [vmem:[#allocation7 + $0xc4] sm:$0xf]
        %v3645 = vld [vmem:[#allocation7 + $0xc8] sm:$0xf]
        %v3646 = vld [vmem:[#allocation7 + $0xcc] sm:$0xf]
        %v3647 = vld [vmem:[#allocation7 + $0xd0] sm:$0xf]
        %v3648 = vld [vmem:[#allocation7 + $0xd4] sm:$0xf]
        %v3649 = vld [vmem:[#allocation7 + $0xd8] sm:$0xf]
        %v3650 = vld [vmem:[#allocation7 + $0xdc] sm:$0xf]
        %v3651 = vld [vmem:[#allocation7 + $0xe0] sm:$0xf]
        %v3652 = vld [vmem:[#allocation7 + $0xe4] sm:$0xf]
        %v3653 = vld [vmem:[#allocation7 + $0xe8] sm:$0xf]
        %v3654 = vld [vmem:[#allocation7 + $0xec] sm:$0xf]
        %v3655 = vld [vmem:[#allocation7 + $0xf0] sm:$0xf]
        %v3656 = vld [vmem:[#allocation7 + $0xf4] sm:$0xf]
        %v3657 = vld [vmem:[#allocation7 + $0xf8] sm:$0xf]
        %v3658 = vld [vmem:[#allocation7 + $0xfc] sm:$0xf]
        %v3659 = vld [vmem:[%s4] sm:$0x1]
        %v3660 = vunpack.c.l.bf16 %v3659
        %v3661 = vperm.slane %v3660, 0
        %v3726 = vunpack.c.l.b16 %v3595
        %v3727 = vunpack.c.l.b16 %v3596
        %v3728 = vunpack.c.l.b16 %v3597
        %v3729 = vunpack.c.l.b16 %v3598
        %v3730 = vunpack.c.l.b16 %v3599
        %v3731 = vunpack.c.l.b16 %v3600
        %v3732 = vunpack.c.l.b16 %v3601
        %v3733 = vunpack.c.l.b16 %v3602
        %v3734 = vunpack.c.l.b16 %v3603
        %v3735 = vunpack.c.l.b16 %v3604
        %v3736 = vunpack.c.l.b16 %v3605
        %v3737 = vunpack.c.l.b16 %v3606
        %v3738 = vunpack.c.l.b16 %v3607
        %v3739 = vunpack.c.l.b16 %v3608
        %v3740 = vunpack.c.l.b16 %v3609
        %v3741 = vunpack.c.l.b16 %v3610
        %v3742 = vunpack.c.l.b16 %v3611
        %v3743 = vunpack.c.l.b16 %v3612
        %v3744 = vunpack.c.l.b16 %v3613
        %v3745 = vunpack.c.l.b16 %v3614
        %v3746 = vunpack.c.l.b16 %v3615
        %v3747 = vunpack.c.l.b16 %v3616
        %v3748 = vunpack.c.l.b16 %v3617
        %v3749 = vunpack.c.l.b16 %v3618
        %v3750 = vunpack.c.l.b16 %v3619
        %v3751 = vunpack.c.l.b16 %v3620
        %v3752 = vunpack.c.l.b16 %v3621
        %v3753 = vunpack.c.l.b16 %v3622
        %v3754 = vunpack.c.l.b16 %v3623
        %v3755 = vunpack.c.l.b16 %v3624
        %v3756 = vunpack.c.l.b16 %v3625
        %v3757 = vunpack.c.l.b16 %v3626
        %v3758 = vunpack.c.l.b16 %v3627
        %v3759 = vunpack.c.l.b16 %v3628
        %v3760 = vunpack.c.l.b16 %v3629
        %v3761 = vunpack.c.l.b16 %v3630
        %v3762 = vunpack.c.l.b16 %v3631
        %v3763 = vunpack.c.l.b16 %v3632
        %v3764 = vunpack.c.l.b16 %v3633
        %v3765 = vunpack.c.l.b16 %v3634
        %v3766 = vunpack.c.l.b16 %v3635
        %v3767 = vunpack.c.l.b16 %v3636
        %v3768 = vunpack.c.l.b16 %v3637
        %v3769 = vunpack.c.l.b16 %v3638
        %v3770 = vunpack.c.l.b16 %v3639
        %v3771 = vunpack.c.l.b16 %v3640
        %v3772 = vunpack.c.l.b16 %v3641
        %v3773 = vunpack.c.l.b16 %v3642
        %v3774 = vunpack.c.l.b16 %v3643
        %v3775 = vunpack.c.l.b16 %v3644
        %v3776 = vunpack.c.l.b16 %v3645
        %v3777 = vunpack.c.l.b16 %v3646
        %v3778 = vunpack.c.l.b16 %v3647
        %v3779 = vunpack.c.l.b16 %v3648
        %v3780 = vunpack.c.l.b16 %v3649
        %v3781 = vunpack.c.l.b16 %v3650
        %v3782 = vunpack.c.l.b16 %v3651
        %v3783 = vunpack.c.l.b16 %v3652
        %v3784 = vunpack.c.l.b16 %v3653
        %v3785 = vunpack.c.l.b16 %v3654
        %v3786 = vunpack.c.l.b16 %v3655
        %v3787 = vunpack.c.l.b16 %v3656
        %v3788 = vunpack.c.l.b16 %v3657
        %v3789 = vunpack.c.l.b16 %v3658
        %v3790 = vpack.c.b16 %v3727, %v3726
        %v3791 = vpack.c.b16 %v3729, %v3728
        %v3792 = vpack.c.b16 %v3731, %v3730
        %v3793 = vpack.c.b16 %v3733, %v3732
        %v3794 = vpack.c.b16 %v3735, %v3734
        %v3795 = vpack.c.b16 %v3737, %v3736
        %v3796 = vpack.c.b16 %v3739, %v3738
        %v3797 = vpack.c.b16 %v3741, %v3740
        %v3798 = vpack.c.b16 %v3743, %v3742
        %v3799 = vpack.c.b16 %v3745, %v3744
        %v3800 = vpack.c.b16 %v3747, %v3746
        %v3801 = vpack.c.b16 %v3749, %v3748
        %v3802 = vpack.c.b16 %v3751, %v3750
        %v3803 = vpack.c.b16 %v3753, %v3752
        %v3804 = vpack.c.b16 %v3755, %v3754
        %v3805 = vpack.c.b16 %v3757, %v3756
        %v3806 = vpack.c.b16 %v3759, %v3758
        %v3807 = vpack.c.b16 %v3761, %v3760
        %v3808 = vpack.c.b16 %v3763, %v3762
        %v3809 = vpack.c.b16 %v3765, %v3764
        %v3810 = vpack.c.b16 %v3767, %v3766
        %v3811 = vpack.c.b16 %v3769, %v3768
        %v3812 = vpack.c.b16 %v3771, %v3770
        %v3813 = vpack.c.b16 %v3773, %v3772
        %v3814 = vpack.c.b16 %v3775, %v3774
        %v3815 = vpack.c.b16 %v3777, %v3776
        %v3816 = vpack.c.b16 %v3779, %v3778
        %v3817 = vpack.c.b16 %v3781, %v3780
        %v3818 = vpack.c.b16 %v3783, %v3782
        %v3819 = vpack.c.b16 %v3785, %v3784
        %v3820 = vpack.c.b16 %v3787, %v3786
        %v3821 = vpack.c.b16 %v3789, %v3788
        %3854 = vmatpush.bf16.msra.mxu0 %v3797
        %3855 = vmatpush.bf16.msra.mxu0 %v3796
        %3856 = vmatpush.bf16.msra.mxu0 %v3795
        %3857 = vmatpush.bf16.msra.mxu0 %v3794
        %3858 = vmatpush.bf16.msra.mxu0 %v3793
        %3859 = vmatpush.bf16.msra.mxu0 %v3792
        %3860 = vmatpush.bf16.msra.mxu0 %v3791
        %3861 = vmatpush.bf16.msra.mxu0 %v3790
        %3862 = vmatmul.bf16.gmra.mxu0 %v3563
        %v3863 = vpop.f32.mrf.mxu0
        %v3864 = vadd.f32 %v3661, %v3863
        %v3865 = vpop.f32.mrf.mxu0
        %v3866 = vadd.f32 %v3661, %v3865
        %3867 = vmatmul.bf16.gmra.mxu0 %v3567
        %v3868 = vpop.f32.mrf.mxu0
        %v3869 = vadd.f32 %v3661, %v3868
        %v3870 = vpop.f32.mrf.mxu0
        %v3871 = vadd.f32 %v3661, %v3870
        %3872 = vmatmul.bf16.gmra.mxu0 %v3571
        %v3873 = vpop.f32.mrf.mxu0
        %v3874 = vadd.f32 %v3661, %v3873
        %v3875 = vpop.f32.mrf.mxu0
        %v3876 = vadd.f32 %v3661, %v3875
        %3877 = vmatmul.bf16.gmra.mxu0 %v3575
        %v3878 = vpop.f32.mrf.mxu0
        %v3879 = vadd.f32 %v3661, %v3878
        %v3880 = vpop.f32.mrf.mxu0
        %v3881 = vadd.f32 %v3661, %v3880
        %3882 = vmatmul.bf16.gmra.mxu0 %v3579
        %v3883 = vpop.f32.mrf.mxu0
        %v3884 = vadd.f32 %v3661, %v3883
        %v3885 = vpop.f32.mrf.mxu0
        %v3886 = vadd.f32 %v3661, %v3885
        %3887 = vmatmul.bf16.gmra.mxu0 %v3583
        %v3888 = vpop.f32.mrf.mxu0
        %v3889 = vadd.f32 %v3661, %v3888
        %v3890 = vpop.f32.mrf.mxu0
        %v3891 = vadd.f32 %v3661, %v3890
        %3892 = vmatmul.bf16.gmra.mxu0 %v3587
        %v3893 = vpop.f32.mrf.mxu0
        %v3894 = vadd.f32 %v3661, %v3893
        %v3895 = vpop.f32.mrf.mxu0
        %v3896 = vadd.f32 %v3661, %v3895
        %3897 = vmatmul.bf16.gmra.mxu0 %v3591
        %v3898 = vpop.f32.mrf.mxu0
        %v3899 = vadd.f32 %v3661, %v3898
        %v3900 = vpop.f32.mrf.mxu0
        %v3901 = vadd.f32 %v3661, %v3900
        %3902 = vdwg.mxu0
        %3903 = vmatpush.bf16.msra.mxu0 %v3805
        %3904 = vmatpush.bf16.msra.mxu0 %v3804
        %3905 = vmatpush.bf16.msra.mxu0 %v3803
        %3906 = vmatpush.bf16.msra.mxu0 %v3802
        %3907 = vmatpush.bf16.msra.mxu0 %v3801
        %3908 = vmatpush.bf16.msra.mxu0 %v3800
        %3909 = vmatpush.bf16.msra.mxu0 %v3799
        %3910 = vmatpush.bf16.msra.mxu0 %v3798
        %3911 = vmatmul.bf16.gmra.mxu0 %v3564
        %v3912 = vpop.f32.mrf.mxu0
        %v3913 = vadd.f32 %v3864, %v3912
        %v3914 = vpop.f32.mrf.mxu0
        %v3915 = vadd.f32 %v3866, %v3914
        %3916 = vmatmul.bf16.gmra.mxu0 %v3568
        %v3917 = vpop.f32.mrf.mxu0
        %v3918 = vadd.f32 %v3869, %v3917
        %v3919 = vpop.f32.mrf.mxu0
        %v3920 = vadd.f32 %v3871, %v3919
        %3921 = vmatmul.bf16.gmra.mxu0 %v3572
        %v3922 = vpop.f32.mrf.mxu0
        %v3923 = vadd.f32 %v3874, %v3922
        %v3924 = vpop.f32.mrf.mxu0
        %v3925 = vadd.f32 %v3876, %v3924
        %3926 = vmatmul.bf16.gmra.mxu0 %v3576
        %v3927 = vpop.f32.mrf.mxu0
        %v3928 = vadd.f32 %v3879, %v3927
        %v3929 = vpop.f32.mrf.mxu0
        %v3930 = vadd.f32 %v3881, %v3929
        %3931 = vmatmul.bf16.gmra.mxu0 %v3580
        %v3932 = vpop.f32.mrf.mxu0
        %v3933 = vadd.f32 %v3884, %v3932
        %v3934 = vpop.f32.mrf.mxu0
        %v3935 = vadd.f32 %v3886, %v3934
        %3936 = vmatmul.bf16.gmra.mxu0 %v3584
        %v3937 = vpop.f32.mrf.mxu0
        %v3938 = vadd.f32 %v3889, %v3937
        %v3939 = vpop.f32.mrf.mxu0
        %v3940 = vadd.f32 %v3891, %v3939
        %3941 = vmatmul.bf16.gmra.mxu0 %v3588
        %v3942 = vpop.f32.mrf.mxu0
        %v3943 = vadd.f32 %v3894, %v3942
        %v3944 = vpop.f32.mrf.mxu0
        %v3945 = vadd.f32 %v3896, %v3944
        %3946 = vmatmul.bf16.gmra.mxu0 %v3592
        %v3947 = vpop.f32.mrf.mxu0
        %v3948 = vadd.f32 %v3899, %v3947
        %v3949 = vpop.f32.mrf.mxu0
        %v3950 = vadd.f32 %v3901, %v3949
        %3951 = vdwg.mxu0
        %3952 = vmatpush.bf16.msra.mxu0 %v3813
        %3953 = vmatpush.bf16.msra.mxu0 %v3812
        %3954 = vmatpush.bf16.msra.mxu0 %v3811
        %3955 = vmatpush.bf16.msra.mxu0 %v3810
        %3956 = vmatpush.bf16.msra.mxu0 %v3809
        %3957 = vmatpush.bf16.msra.mxu0 %v3808
        %3958 = vmatpush.bf16.msra.mxu0 %v3807
        %3959 = vmatpush.bf16.msra.mxu0 %v3806
        %3960 = vmatmul.bf16.gmra.mxu0 %v3565
        %v3961 = vpop.f32.mrf.mxu0
        %v3962 = vadd.f32 %v3913, %v3961
        %v3963 = vpop.f32.mrf.mxu0
        %v3964 = vadd.f32 %v3915, %v3963
        %3965 = vmatmul.bf16.gmra.mxu0 %v3569
        %v3966 = vpop.f32.mrf.mxu0
        %v3967 = vadd.f32 %v3918, %v3966
        %v3968 = vpop.f32.mrf.mxu0
        %v3969 = vadd.f32 %v3920, %v3968
        %3970 = vmatmul.bf16.gmra.mxu0 %v3573
        %v3971 = vpop.f32.mrf.mxu0
        %v3972 = vadd.f32 %v3923, %v3971
        %v3973 = vpop.f32.mrf.mxu0
        %v3974 = vadd.f32 %v3925, %v3973
        %3975 = vmatmul.bf16.gmra.mxu0 %v3577
        %v3976 = vpop.f32.mrf.mxu0
        %v3977 = vadd.f32 %v3928, %v3976
        %v3978 = vpop.f32.mrf.mxu0
        %v3979 = vadd.f32 %v3930, %v3978
        %3980 = vmatmul.bf16.gmra.mxu0 %v3581
        %v3981 = vpop.f32.mrf.mxu0
        %v3982 = vadd.f32 %v3933, %v3981
        %v3983 = vpop.f32.mrf.mxu0
        %v3984 = vadd.f32 %v3935, %v3983
        %3985 = vmatmul.bf16.gmra.mxu0 %v3585
        %v3986 = vpop.f32.mrf.mxu0
        %v3987 = vadd.f32 %v3938, %v3986
        %v3988 = vpop.f32.mrf.mxu0
        %v3989 = vadd.f32 %v3940, %v3988
        %3990 = vmatmul.bf16.gmra.mxu0 %v3589
        %v3991 = vpop.f32.mrf.mxu0
        %v3992 = vadd.f32 %v3943, %v3991
        %v3993 = vpop.f32.mrf.mxu0
        %v3994 = vadd.f32 %v3945, %v3993
        %3995 = vmatmul.bf16.gmra.mxu0 %v3593
        %v3996 = vpop.f32.mrf.mxu0
        %v3997 = vadd.f32 %v3948, %v3996
        %v3998 = vpop.f32.mrf.mxu0
        %v3999 = vadd.f32 %v3950, %v3998
        %4000 = vdwg.mxu0
        %4001 = vmatpush.bf16.msra.mxu0 %v3821
        %4002 = vmatpush.bf16.msra.mxu0 %v3820
        %4003 = vmatpush.bf16.msra.mxu0 %v3819
        %4004 = vmatpush.bf16.msra.mxu0 %v3818
        %4005 = vmatpush.bf16.msra.mxu0 %v3817
        %4006 = vmatpush.bf16.msra.mxu0 %v3816
        %4007 = vmatpush.bf16.msra.mxu0 %v3815
        %4008 = vmatpush.bf16.msra.mxu0 %v3814
        %4009 = vmatmul.bf16.gmra.mxu0 %v3566
        %v4010 = vpop.f32.mrf.mxu0
        %v4011 = vadd.f32 %v3962, %v4010
        %v4012 = vpop.f32.mrf.mxu0
        %v4013 = vadd.f32 %v3964, %v4012
        %4014 = vmatmul.bf16.gmra.mxu0 %v3570
        %v4015 = vpop.f32.mrf.mxu0
        %v4016 = vadd.f32 %v3967, %v4015
        %v4017 = vpop.f32.mrf.mxu0
        %v4018 = vadd.f32 %v3969, %v4017
        %4019 = vmatmul.bf16.gmra.mxu0 %v3574
        %v4020 = vpop.f32.mrf.mxu0
        %v4021 = vadd.f32 %v3972, %v4020
        %v4022 = vpop.f32.mrf.mxu0
        %v4023 = vadd.f32 %v3974, %v4022
        %4024 = vmatmul.bf16.gmra.mxu0 %v3578
        %v4025 = vpop.f32.mrf.mxu0
        %v4026 = vadd.f32 %v3977, %v4025
        %v4027 = vpop.f32.mrf.mxu0
        %v4028 = vadd.f32 %v3979, %v4027
        %4029 = vmatmul.bf16.gmra.mxu0 %v3582
        %v4030 = vpop.f32.mrf.mxu0
        %v4031 = vadd.f32 %v3982, %v4030
        %v4032 = vpop.f32.mrf.mxu0
        %v4033 = vadd.f32 %v3984, %v4032
        %4034 = vmatmul.bf16.gmra.mxu0 %v3586
        %v4035 = vpop.f32.mrf.mxu0
        %v4036 = vadd.f32 %v3987, %v4035
        %v4037 = vpop.f32.mrf.mxu0
        %v4038 = vadd.f32 %v3989, %v4037
        %4039 = vmatmul.bf16.gmra.mxu0 %v3590
        %v4040 = vpop.f32.mrf.mxu0
        %v4041 = vadd.f32 %v3992, %v4040
        %v4042 = vpop.f32.mrf.mxu0
        %v4043 = vadd.f32 %v3994, %v4042
        %4044 = vmatmul.bf16.gmra.mxu0 %v3594
        %v4045 = vpop.f32.mrf.mxu0
        %v4046 = vadd.f32 %v3997, %v4045
        %v4047 = vpop.f32.mrf.mxu0
        %v4048 = vadd.f32 %v3999, %v4047
        %4049 = vdwg.mxu0
        %v4050 = vpack.c.bf16 %v4011, %v4011
        %v4051 = vpack.c.bf16 %v4013, %v4013
        %v4052 = vpack.c.bf16 %v4016, %v4016
        %v4053 = vpack.c.bf16 %v4018, %v4018
        %v4054 = vpack.c.bf16 %v4021, %v4021
        %v4055 = vpack.c.bf16 %v4023, %v4023
        %v4056 = vpack.c.bf16 %v4026, %v4026
        %v4057 = vpack.c.bf16 %v4028, %v4028
        %v4058 = vpack.c.bf16 %v4031, %v4031
        %v4059 = vpack.c.bf16 %v4033, %v4033
        %v4060 = vpack.c.bf16 %v4036, %v4036
        %v4061 = vpack.c.bf16 %v4038, %v4038
        %v4062 = vpack.c.bf16 %v4041, %v4041
        %v4063 = vpack.c.bf16 %v4043, %v4043
        %v4064 = vpack.c.bf16 %v4046, %v4046
        %v4065 = vpack.c.bf16 %v4048, %v4048
        %4066 = vst [vmem:[%s277] sm:$0xf] %v4050
        %4067 = vst [vmem:[%s277 + $0x4] sm:$0xf] %v4051
        %4068 = vst [vmem:[%s277 + $0x8] sm:$0xf] %v4052
        %4069 = vst [vmem:[%s277 + $0xc] sm:$0xf] %v4053
        %4070 = vst [vmem:[%s277 + $0x10] sm:$0xf] %v4054
        %4071 = vst [vmem:[%s277 + $0x14] sm:$0xf] %v4055
        %4072 = vst [vmem:[%s277 + $0x18] sm:$0xf] %v4056
        %4073 = vst [vmem:[%s277 + $0x1c] sm:$0xf] %v4057
        %4074 = vst [vmem:[%s277 + $0x20] sm:$0xf] %v4058
        %4075 = vst [vmem:[%s277 + $0x24] sm:$0xf] %v4059
        %4076 = vst [vmem:[%s277 + $0x28] sm:$0xf] %v4060
        %4077 = vst [vmem:[%s277 + $0x2c] sm:$0xf] %v4061
        %4078 = vst [vmem:[%s277 + $0x30] sm:$0xf] %v4062
        %4079 = vst [vmem:[%s277 + $0x34] sm:$0xf] %v4063
        %4080 = vst [vmem:[%s277 + $0x38] sm:$0xf] %v4064
        %4081 = vst [vmem:[%s277 + $0x3c] sm:$0xf] %v4065
        %s4082 = sand.u32 %s141, 1
        %s4083 = scalar_lea.sflag [#allocation4], %s4082
        %s4084 = sand.u32 %s141, 1
        %s4085 = smul.addr %s4084, 64
        %s4086 = scalar_lea.vmem [#allocation8], %s4085
        // Predicated region
        $region53: #{mlp_forward.1} parent=39 // pred_check
          %p4087 = pneg %p151
        $region54: #{mlp_forward.1} parent=39 // pred_check_branch
          %4089 = sbr.rel (%p4087) target = $region56
        $region55: #{mlp_forward.1} parent=39 // pred_region
          %s4090 = smul.u32 16, %s23
          %4092 = vsyncadd %s4083, 0
          %s4093 = smul.addr %s4090, 4
          %s4094 = scalar_lea.hbm %s5, %s4093
          %s4095 = sshll.u32 %s4086, 4
          %s4096 = int_to_ptr.vmem [resolvable:$true] %s4095
          %s4097 = sshll.u32 %s4094, 4
          %s4098 = int_to_ptr.hbm [resolvable:$true] %s4097
          %4103 = dma.vmem_to_hbm [thread:$0]  %s4096, 1024, %s4098, %s4083, 64, 64, 4
        $region56: #{mlp_forward.1} parent=39 // pred_fallthru
          _
      $region40: #{mlp_forward.1} parent=5 // pred_fallthru
        _
      %p4104 = scmp.le.s32.totalorder 2, %s18
      // Predicated region
      $region57: #{mlp_forward.1} parent=5 // pred_check
        %p4105 = pneg %p4104
      $region58: #{mlp_forward.1} parent=5 // pred_check_branch
        %4107 = sbr.rel (%p4105) target = $region60
      $region59: #{mlp_forward.1} parent=5 // pred_region
        %s4108 = ssub.s32 %s18, 2
        // Predicated region
        $region61: #{mlp_forward.1} parent=59 // pred_check
          %p4109 = pneg %p157
        $region62: #{mlp_forward.1} parent=59 // pred_check_branch
          %4111 = sbr.rel (%p4109) target = $region64
        $region63: #{mlp_forward.1} parent=59 // pred_region
          %s4112 = sand.u32 %s142, 1
          %s4113 = scalar_lea.sflag [#allocation4], %s4112
          %s4114 = sand.u32 %s142, 1
          %s4115 = smul.addr %s4114, 64
          %s4116 = scalar_lea.vmem [#allocation8], %s4115
          %4118 = dma.done %s4113, 1024
        $region64: #{mlp_forward.1} parent=59 // pred_fallthru
          _
      $region60: #{mlp_forward.1} parent=5 // pred_fallthru
        _
    $region6: #{mlp_forward.1} parent=1 // loop_footer
      %s22 = sadd.s32 1, %s18
    $region7: #{mlp_forward.1} parent=1 // loop_footer_branch
      %17 = sbr.rel target = $region3
    $region8: #{mlp_forward.1} parent=1 // loop_exit
      _
    %4119 = vsyncpa [#allocation3], 1
    %s4120 = scalar_lea.sflag [#allocation3], 1
    %4121 = vsyncpa %s4120, 1
    %4122 = vsyncpa [#allocation6], 1
    %4123 = vsyncpa [#allocation4], 1
    %s4124 = scalar_lea.sflag [#allocation4], 1
    %4125 = vsyncpa %s4124, 1

</llo_original>
